<compile_context>
chip_gen: v7x
topology: tpu7x:2x2x1
jax: 0.10.0
libtpu: 0.0.40
codegen_flags: <defaults>
</compile_context>

<pallas_src>
import functools

import jax
import jax.numpy as jnp
from jax.experimental import pallas as pl
from jax.experimental.pallas import tpu as pltpu


def _round_up(x, m):
    return (x + m - 1) // m * m


def _row_tile(h, cap=16):
    """Largest divisor of h that is <= cap (output rows handled per grid step)."""
    for t in range(min(h, cap), 0, -1):
        if h % t == 0:
            return t
    return 1


# ----------------------------------------------------------------------------
# Pallas kernels
# ----------------------------------------------------------------------------
def _enc_fused_kernel(x_ref, wenc_ref, benc_ref, wpost_ref, bpost_ref, noise_ref,
                      mean_ref, logvar_ref, sample_ref, *, th, w, ch_p):
    """Fused: 3x3 conv (+bias,ReLU) -> 1x1 post conv -> chunk -> reparam sample.

    x_ref     : (1, th+2, w+2, cin_p)  bf16, spatially padded row-tile (1-row halo)
    wenc_ref  : (9, cin_p, ch_p)       bf16, tap-major 3x3 conv weights
    benc_ref  : (1, ch_p)              f32
    wpost_ref : (ch_p, 2*ch_p)         bf16 (mean cols [0:ch], logvar cols [ch_p:ch_p+ch])
    bpost_ref : (1, 2*ch_p)            f32
    noise_ref : (1, th, w, ch_p)       f32 (zero in padded channels)
    outputs   : mean/logvar f32, sample bf16 — all (1, th, w, ch_p), lane-dense.
    """
    m = th * w
    xt = x_ref[0]                                              # (th+2, w+2, cin_p) bf16
    # 3x3 conv as 9 shifted MXU matmuls accumulated in f32 (no HBM im2col).
    acc = None
    for t in range(9):
        ki, kj = t // 3, t % 3
        a = xt[ki:ki + th, kj:kj + w, :].reshape(m, -1)        # (m, cin_p) bf16
        part = jnp.dot(a, wenc_ref[t], preferred_element_type=jnp.float32)
        acc = part if acc is None else acc + part
    h = jnp.maximum(acc + benc_ref[...], 0.0)                  # (m, ch_p) f32

    # post_conv (1x1) on the MXU: bf16 operands, f32 accumulation, bias in epilogue.
    ml = jnp.dot(h.astype(jnp.bfloat16), wpost_ref[...],
                 preferred_element_type=jnp.float32) + bpost_ref[...]
    mean = ml[:, :ch_p]
    logvar = ml[:, ch_p:]

    # Reparameterization (f32 clamp / exp / fma) fused in the epilogue (EUP exp).
    std = jnp.exp(0.5 * jnp.clip(logvar, -30.0, 20.0))
    noise = noise_ref[0].reshape(m, ch_p)
    sample = mean + std * noise

    mean_ref[...] = mean.reshape(1, th, w, ch_p)
    logvar_ref[...] = logvar.reshape(1, th, w, ch_p)
    sample_ref[...] = sample.reshape(1, th, w, ch_p).astype(sample_ref.dtype)


def _dec_conv_kernel(s_ref, wdec_ref, bdec_ref, out_ref, *, th, w, cout_p):
    """Decoder stand-in: 3x3 SAME conv as 9 shifted matmuls, bias in epilogue."""
    m = th * w
    st = s_ref[0]                                              # (th+2, w+2, ch_p) bf16
    acc = None
    for t in range(9):
        ki, kj = t // 3, t % 3
        a = st[ki:ki + th, kj:kj + w, :].reshape(m, -1)        # (m, ch_p) bf16
        part = jnp.dot(a, wdec_ref[t], preferred_element_type=jnp.float32)
        acc = part if acc is None else acc + part
    out = acc + bdec_ref[...]
    out_ref[...] = out.reshape(1, th, w, cout_p)


# ----------------------------------------------------------------------------
# Parameters (synthetic) and packing (channel padding + bf16 MXU operands)
# ----------------------------------------------------------------------------
def init_params(key, in_channels, hidden_channels):
    k = jax.random.split(key, 6)
    s = 0.1
    rnd = lambda kk, shape: s * jax.random.normal(kk, shape, jnp.float32)
    return {
        "enc_w": rnd(k[0], (3, 3, in_channels, hidden_channels)),
        "enc_b": rnd(k[1], (hidden_channels,)),
        "post_w": rnd(k[2], (hidden_channels, 2 * hidden_channels)),
        "post_b": rnd(k[3], (2 * hidden_channels,)),
        "dec_w": rnd(k[4], (3, 3, hidden_channels, in_channels)),
        "dec_b": rnd(k[5], (in_channels,)),
    }


def pack_params(params, in_channels, hidden_channels):
    """Zero-pad channel dims to TPU-friendly sizes; cast MXU operands to bf16."""
    ch = hidden_channels
    ch_p = _round_up(ch, 128)          # hidden channels -> 128-lane multiple
    cin_p = _round_up(in_channels, 8)  # tiny encoder K, pad to sublane multiple
    cout_p = _round_up(in_channels, 128)  # lane-dense decoder output stores

    enc_w = jnp.zeros((9, cin_p, ch_p), jnp.float32)
    enc_w = enc_w.at[:, :in_channels, :ch].set(
        params["enc_w"].reshape(9, in_channels, ch))
    enc_b = jnp.zeros((1, ch_p), jnp.float32).at[0, :ch].set(params["enc_b"])

    post_w = jnp.zeros((ch_p, 2 * ch_p), jnp.float32)
    post_w = post_w.at[:ch, :ch].set(params["post_w"][:, :ch])               # mean
    post_w = post_w.at[:ch, ch_p:ch_p + ch].set(params["post_w"][:, ch:])    # logvar
    post_b = jnp.zeros((1, 2 * ch_p), jnp.float32)
    post_b = post_b.at[0, :ch].set(params["post_b"][:ch])
    post_b = post_b.at[0, ch_p:ch_p + ch].set(params["post_b"][ch:])

    dec_w = jnp.zeros((9, ch_p, cout_p), jnp.float32)
    dec_w = dec_w.at[:, :ch, :in_channels].set(
        params["dec_w"].reshape(9, ch, in_channels))
    dec_b = jnp.zeros((1, cout_p), jnp.float32).at[0, :in_channels].set(params["dec_b"])

    return {
        "enc_w": enc_w.astype(jnp.bfloat16), "enc_b": enc_b,
        "post_w": post_w.astype(jnp.bfloat16), "post_b": post_b,
        "dec_w": dec_w.astype(jnp.bfloat16), "dec_b": dec_b,
        "ch": ch, "ch_p": ch_p, "cin_p": cin_p, "cout_p": cout_p,
    }


# ----------------------------------------------------------------------------
# Forward
# ----------------------------------------------------------------------------
def _row_groups(xp, th, nrt):
    """(N, H+2, Wp, C) spatially-padded -> (N*nrt, th+2, Wp, C) row tiles w/ halo."""
    groups = jnp.stack([xp[:, r * th:r * th + th + 2] for r in range(nrt)], axis=1)
    n = xp.shape[0]
    return groups.reshape(n * nrt, th + 2, xp.shape[2], xp.shape[3])


def gaussian_vae_forward(packed, x_nchw, noise):
    """Returns (mean, logvar, recon) in NCHW, matching the PyTorch module."""
    n, cin, hh, ww = x_nchw.shape
    ch, ch_p = packed["ch"], packed["ch_p"]
    cin_p, cout_p = packed["cin_p"], packed["cout_p"]
    th = _row_tile(hh)
    nrt = hh // th
    g = n * nrt
    m_tile = th * ww

    cp = pltpu.CompilerParams(dimension_semantics=("parallel",),
                              vmem_limit_bytes=32 * 1024 * 1024)

    # NCHW -> NHWC once; pad spatially (SAME halo) + channels; store bf16.
    x = jnp.transpose(x_nchw, (0, 2, 3, 1))
    xp = jnp.pad(x, ((0, 0), (1, 1), (1, 1), (0, cin_p - cin))).astype(jnp.bfloat16)
    x_groups = _row_groups(xp, th, nrt)                        # (g, th+2, ww+2, cin_p)

    noise_p = jnp.pad(noise.astype(jnp.float32),
                      ((0, 0), (0, 0), (0, 0), (0, ch_p - ch)))
    noise_g = noise_p.reshape(g, th, ww, ch_p)

    # ---- fused encoder: 3x3 conv + ReLU + 1x1 post_conv + reparam sample ----
    enc_flops = g * (9 * 2 * m_tile * cin_p * ch_p + 2 * m_tile * ch_p * 2 * ch_p)
    enc_bytes = (x_groups.size * 2 + noise_g.size * 4
                 + packed["enc_w"].size * 2 + packed["post_w"].size * 2
                 + g * m_tile * ch_p * (4 + 4 + 2))
    mean_g, logvar_g, sample_g = pl.pallas_call(
        functools.partial(_enc_fused_kernel, th=th, w=ww, ch_p=ch_p),
        out_shape=(
            jax.ShapeDtypeStruct((g, th, ww, ch_p), jnp.float32),   # mean
            jax.ShapeDtypeStruct((g, th, ww, ch_p), jnp.float32),   # logvar
            jax.ShapeDtypeStruct((g, th, ww, ch_p), jnp.bfloat16),  # sample
        ),
        grid=(g,),
        in_specs=[
            pl.BlockSpec((1, th + 2, ww + 2, cin_p), lambda i: (i, 0, 0, 0)),
            pl.BlockSpec((9, cin_p, ch_p), lambda i: (0, 0, 0)),
            pl.BlockSpec((1, ch_p), lambda i: (0, 0)),
            pl.BlockSpec((ch_p, 2 * ch_p), lambda i: (0, 0)),
            pl.BlockSpec((1, 2 * ch_p), lambda i: (0, 0)),
            pl.BlockSpec((1, th, ww, ch_p), lambda i: (i, 0, 0, 0)),
        ],
        out_specs=(
            pl.BlockSpec((1, th, ww, ch_p), lambda i: (i, 0, 0, 0)),
            pl.BlockSpec((1, th, ww, ch_p), lambda i: (i, 0, 0, 0)),
            pl.BlockSpec((1, th, ww, ch_p), lambda i: (i, 0, 0, 0)),
        ),
        compiler_params=cp,
        cost_estimate=pl.CostEstimate(flops=int(enc_flops),
                                      transcendentals=int(g * m_tile * ch_p),
                                      bytes_accessed=int(enc_bytes)),
    )(x_groups, packed["enc_w"], packed["enc_b"], packed["post_w"],
      packed["post_b"], noise_g)

    # Massager: NoMassager (identity) stand-in.
    sample = sample_g.reshape(n, hh, ww, ch_p)

    # ---- decoder 3x3 conv ----
    sp = jnp.pad(sample, ((0, 0), (1, 1), (1, 1), (0, 0)))
    s_groups = _row_groups(sp, th, nrt)                        # (g, th+2, ww+2, ch_p)

    dec_flops = g * 9 * 2 * m_tile * ch_p * cout_p
    dec_bytes = s_groups.size * 2 + packed["dec_w"].size * 2 + g * m_tile * cout_p * 4
    recon_g = pl.pallas_call(
        functools.partial(_dec_conv_kernel, th=th, w=ww, cout_p=cout_p),
        out_shape=jax.ShapeDtypeStruct((g, th, ww, cout_p), jnp.float32),
        grid=(g,),
        in_specs=[
            pl.BlockSpec((1, th + 2, ww + 2, ch_p), lambda i: (i, 0, 0, 0)),
            pl.BlockSpec((9, ch_p, cout_p), lambda i: (0, 0, 0)),
            pl.BlockSpec((1, cout_p), lambda i: (0, 0)),
        ],
        out_specs=pl.BlockSpec((1, th, ww, cout_p), lambda i: (i, 0, 0, 0)),
        compiler_params=cp,
        cost_estimate=pl.CostEstimate(flops=int(dec_flops), transcendentals=0,
                                      bytes_accessed=int(dec_bytes)),
    )(s_groups, packed["dec_w"], packed["dec_b"])

    # Slice off channel padding; transpose the small final tensors back to NCHW.
    mean = mean_g.reshape(n, hh, ww, ch_p)[..., :ch]
    logvar = logvar_g.reshape(n, hh, ww, ch_p)[..., :ch]
    recon = recon_g.reshape(n, hh, ww, cout_p)[..., :cin]
    return (jnp.transpose(mean, (0, 3, 1, 2)),
            jnp.transpose(logvar, (0, 3, 1, 2)),
            jnp.transpose(recon, (0, 3, 1, 2)))


# ----------------------------------------------------------------------------
# Pure-JAX f32 reference of the same stand-in forward (for a sanity check)
# ----------------------------------------------------------------------------
def reference_forward(params, x_nchw, noise):
    dn = ("NHWC", "HWIO", "NHWC")
    x = jnp.transpose(x_nchw, (0, 2, 3, 1))
    h = jax.lax.conv_general_dilated(x, params["enc_w"], (1, 1), "SAME",
                                     dimension_numbers=dn)
    h = jnp.maximum(h + params["enc_b"], 0.0)
    ml = jnp.einsum("nhwc,cd->nhwd", h, params["post_w"]) + params["post_b"]
    ch = params["post_w"].shape[0]
    mean, logvar = ml[..., :ch], ml[..., ch:]
    std = jnp.exp(0.5 * jnp.clip(logvar, -30.0, 20.0))
    sample = mean + std * noise
    recon = jax.lax.conv_general_dilated(sample, params["dec_w"], (1, 1), "SAME",
                                         dimension_numbers=dn) + params["dec_b"]
    to_nchw = lambda t: jnp.transpose(t, (0, 3, 1, 2))
    return to_nchw(mean), to_nchw(logvar), to_nchw(recon)


if __name__ == "__main__":
    # Small shapes consistent with the module: NCHW input, in_channels=3,
    # hidden_channels scaled down from 192 -> 32 for a tiny synthetic run.
    batch, in_channels, spatial, hidden_channels = 2, 3, 16, 32

    root = jax.random.PRNGKey(0)
    k_params, k_x, k_noise = jax.random.split(root, 3)

    params = init_params(k_params, in_channels, hidden_channels)
    packed = pack_params(params, in_channels, hidden_channels)
    x = jax.random.normal(k_x, (batch, in_channels, spatial, spatial), jnp.float32)
    noise = jax.random.normal(
        k_noise, (batch, spatial, spatial, hidden_channels), jnp.float32)

    mean, logvar, recon = gaussian_vae_forward(packed, x, noise)
    jax.block_until_ready((mean, logvar, recon))

    assert mean.shape == (batch, hidden_channels, spatial, spatial)
    assert logvar.shape == (batch, hidden_channels, spatial, spatial)
    assert recon.shape == (batch, in_channels, spatial, spatial)

    # Sanity check vs f32 reference (loose tolerance: bf16 MXU operands/storage).
    mean_r, logvar_r, recon_r = reference_forward(params, x, noise)
    for got, want in ((mean, mean_r), (logvar, logvar_r), (recon, recon_r)):
        tol = 5e-2 + 5e-2 * float(jnp.max(jnp.abs(want)))
        err = float(jnp.max(jnp.abs(got - want)))
        assert err < tol, f"max abs err {err} > tol {tol}"

    print("KERNEL_OK")
</pallas_src>

<mosaic_0001>
module attributes {stable_mosaic.version = 11 : i64} {
  func.func @_enc_fused_kernel(%arg0: i32, %arg1: memref<1x18x18x8xbf16, #tpu.memory_space<vmem>>, %arg2: memref<9x8x128xbf16, #tpu.memory_space<vmem>>, %arg3: memref<1x128xf32, #tpu.memory_space<vmem>>, %arg4: memref<128x256xbf16, #tpu.memory_space<vmem>>, %arg5: memref<1x256xf32, #tpu.memory_space<vmem>>, %arg6: memref<1x16x16x128xf32, #tpu.memory_space<vmem>>, %arg7: memref<1x16x16x128xf32, #tpu.memory_space<vmem>>, %arg8: memref<1x16x16x128xf32, #tpu.memory_space<vmem>>, %arg9: memref<1x16x16x128xbf16, #tpu.memory_space<vmem>>) attributes {dimension_semantics = [#tpu.dimension_semantics<parallel>], iteration_bounds = array<i64: 2>, scalar_prefetch = 0 : i64, scratch_operands = 0 : i64, tpu.core_type = #tpu.core_type<tc>, window_params = [{transform_indices = @transform_0, window_bounds = array<i64: 1, 18, 18, 8>}, {pipeline_mode = #tpu.pipeline_mode<synchronous>, transform_indices = @transform_1, window_bounds = array<i64: 9, 8, 128>}, {pipeline_mode = #tpu.pipeline_mode<synchronous>, transform_indices = @transform_2, window_bounds = array<i64: 1, 128>}, {pipeline_mode = #tpu.pipeline_mode<synchronous>, transform_indices = @transform_3, window_bounds = array<i64: 128, 256>}, {pipeline_mode = #tpu.pipeline_mode<synchronous>, transform_indices = @transform_4, window_bounds = array<i64: 1, 256>}, {transform_indices = @transform_5, window_bounds = array<i64: 1, 16, 16, 128>}, {transform_indices = @transform_6, window_bounds = array<i64: 1, 16, 16, 128>}, {transform_indices = @transform_7, window_bounds = array<i64: 1, 16, 16, 128>}, {transform_indices = @transform_8, window_bounds = array<i64: 1, 16, 16, 128>}]} {
    %c0 = arith.constant 0 : index
    %c0_0 = arith.constant 0 : index
    %c0_1 = arith.constant 0 : index
    %c0_2 = arith.constant 0 : index
    %0 = vector.load %arg1[%c0, %c0_0, %c0_1, %c0_2] : memref<1x18x18x8xbf16, #tpu.memory_space<vmem>>, vector<1x18x18x8xbf16>
    %1 = vector.shape_cast %0 : vector<1x18x18x8xbf16> to vector<18x18x8xbf16>
    %2 = vector.extract_strided_slice %1 {offsets = [0, 0, 0], sizes = [16, 16, 8], strides = [1, 1, 1]} : vector<18x18x8xbf16> to vector<16x16x8xbf16>
    %3 = vector.shape_cast %2 : vector<16x16x8xbf16> to vector<256x8xbf16>
    %c0_3 = arith.constant 0 : index
    %c0_4 = arith.constant 0 : index
    %c0_5 = arith.constant 0 : index
    %4 = vector.load %arg2[%c0_3, %c0_4, %c0_5] : memref<9x8x128xbf16, #tpu.memory_space<vmem>>, vector<1x8x128xbf16>
    %5 = vector.shape_cast %4 : vector<1x8x128xbf16> to vector<8x128xbf16>
    %cst = arith.constant dense<0.000000e+00> : vector<256x128xf32>
    %6 = tpu.matmul %3, %5, %cst {dimension_numbers = #tpu.dot_dimension_numbers<[1], [0], [0], [1], [0, 0, 1, 1], [], []>} : vector<256x8xbf16>, vector<8x128xbf16>, vector<256x128xf32> -> vector<256x128xf32>
    %7 = vector.extract_strided_slice %1 {offsets = [0, 1, 0], sizes = [16, 16, 8], strides = [1, 1, 1]} : vector<18x18x8xbf16> to vector<16x16x8xbf16>
    %8 = vector.shape_cast %7 : vector<16x16x8xbf16> to vector<256x8xbf16>
    %c1 = arith.constant 1 : index
    %c0_6 = arith.constant 0 : index
    %c0_7 = arith.constant 0 : index
    %9 = vector.load %arg2[%c1, %c0_6, %c0_7] : memref<9x8x128xbf16, #tpu.memory_space<vmem>>, vector<1x8x128xbf16>
    %10 = vector.shape_cast %9 : vector<1x8x128xbf16> to vector<8x128xbf16>
    %cst_8 = arith.constant dense<0.000000e+00> : vector<256x128xf32>
    %11 = tpu.matmul %8, %10, %cst_8 {dimension_numbers = #tpu.dot_dimension_numbers<[1], [0], [0], [1], [0, 0, 1, 1], [], []>} : vector<256x8xbf16>, vector<8x128xbf16>, vector<256x128xf32> -> vector<256x128xf32>
    %12 = arith.addf %6, %11 : vector<256x128xf32>
    %13 = vector.extract_strided_slice %1 {offsets = [0, 2, 0], sizes = [16, 16, 8], strides = [1, 1, 1]} : vector<18x18x8xbf16> to vector<16x16x8xbf16>
    %14 = vector.shape_cast %13 : vector<16x16x8xbf16> to vector<256x8xbf16>
    %c2 = arith.constant 2 : index
    %c0_9 = arith.constant 0 : index
    %c0_10 = arith.constant 0 : index
    %15 = vector.load %arg2[%c2, %c0_9, %c0_10] : memref<9x8x128xbf16, #tpu.memory_space<vmem>>, vector<1x8x128xbf16>
    %16 = vector.shape_cast %15 : vector<1x8x128xbf16> to vector<8x128xbf16>
    %cst_11 = arith.constant dense<0.000000e+00> : vector<256x128xf32>
    %17 = tpu.matmul %14, %16, %cst_11 {dimension_numbers = #tpu.dot_dimension_numbers<[1], [0], [0], [1], [0, 0, 1, 1], [], []>} : vector<256x8xbf16>, vector<8x128xbf16>, vector<256x128xf32> -> vector<256x128xf32>
    %18 = arith.addf %12, %17 : vector<256x128xf32>
    %19 = vector.extract_strided_slice %1 {offsets = [1, 0, 0], sizes = [16, 16, 8], strides = [1, 1, 1]} : vector<18x18x8xbf16> to vector<16x16x8xbf16>
    %20 = vector.shape_cast %19 : vector<16x16x8xbf16> to vector<256x8xbf16>
    %c3 = arith.constant 3 : index
    %c0_12 = arith.constant 0 : index
    %c0_13 = arith.constant 0 : index
    %21 = vector.load %arg2[%c3, %c0_12, %c0_13] : memref<9x8x128xbf16, #tpu.memory_space<vmem>>, vector<1x8x128xbf16>
    %22 = vector.shape_cast %21 : vector<1x8x128xbf16> to vector<8x128xbf16>
    %cst_14 = arith.constant dense<0.000000e+00> : vector<256x128xf32>
    %23 = tpu.matmul %20, %22, %cst_14 {dimension_numbers = #tpu.dot_dimension_numbers<[1], [0], [0], [1], [0, 0, 1, 1], [], []>} : vector<256x8xbf16>, vector<8x128xbf16>, vector<256x128xf32> -> vector<256x128xf32>
    %24 = arith.addf %18, %23 : vector<256x128xf32>
    %25 = vector.extract_strided_slice %1 {offsets = [1, 1, 0], sizes = [16, 16, 8], strides = [1, 1, 1]} : vector<18x18x8xbf16> to vector<16x16x8xbf16>
    %26 = vector.shape_cast %25 : vector<16x16x8xbf16> to vector<256x8xbf16>
    %c4 = arith.constant 4 : index
    %c0_15 = arith.constant 0 : index
    %c0_16 = arith.constant 0 : index
    %27 = vector.load %arg2[%c4, %c0_15, %c0_16] : memref<9x8x128xbf16, #tpu.memory_space<vmem>>, vector<1x8x128xbf16>
    %28 = vector.shape_cast %27 : vector<1x8x128xbf16> to vector<8x128xbf16>
    %cst_17 = arith.constant dense<0.000000e+00> : vector<256x128xf32>
    %29 = tpu.matmul %26, %28, %cst_17 {dimension_numbers = #tpu.dot_dimension_numbers<[1], [0], [0], [1], [0, 0, 1, 1], [], []>} : vector<256x8xbf16>, vector<8x128xbf16>, vector<256x128xf32> -> vector<256x128xf32>
    %30 = arith.addf %24, %29 : vector<256x128xf32>
    %31 = vector.extract_strided_slice %1 {offsets = [1, 2, 0], sizes = [16, 16, 8], strides = [1, 1, 1]} : vector<18x18x8xbf16> to vector<16x16x8xbf16>
    %32 = vector.shape_cast %31 : vector<16x16x8xbf16> to vector<256x8xbf16>
    %c5 = arith.constant 5 : index
    %c0_18 = arith.constant 0 : index
    %c0_19 = arith.constant 0 : index
    %33 = vector.load %arg2[%c5, %c0_18, %c0_19] : memref<9x8x128xbf16, #tpu.memory_space<vmem>>, vector<1x8x128xbf16>
    %34 = vector.shape_cast %33 : vector<1x8x128xbf16> to vector<8x128xbf16>
    %cst_20 = arith.constant dense<0.000000e+00> : vector<256x128xf32>
    %35 = tpu.matmul %32, %34, %cst_20 {dimension_numbers = #tpu.dot_dimension_numbers<[1], [0], [0], [1], [0, 0, 1, 1], [], []>} : vector<256x8xbf16>, vector<8x128xbf16>, vector<256x128xf32> -> vector<256x128xf32>
    %36 = arith.addf %30, %35 : vector<256x128xf32>
    %37 = vector.extract_strided_slice %1 {offsets = [2, 0, 0], sizes = [16, 16, 8], strides = [1, 1, 1]} : vector<18x18x8xbf16> to vector<16x16x8xbf16>
    %38 = vector.shape_cast %37 : vector<16x16x8xbf16> to vector<256x8xbf16>
    %c6 = arith.constant 6 : index
    %c0_21 = arith.constant 0 : index
    %c0_22 = arith.constant 0 : index
    %39 = vector.load %arg2[%c6, %c0_21, %c0_22] : memref<9x8x128xbf16, #tpu.memory_space<vmem>>, vector<1x8x128xbf16>
    %40 = vector.shape_cast %39 : vector<1x8x128xbf16> to vector<8x128xbf16>
    %cst_23 = arith.constant dense<0.000000e+00> : vector<256x128xf32>
    %41 = tpu.matmul %38, %40, %cst_23 {dimension_numbers = #tpu.dot_dimension_numbers<[1], [0], [0], [1], [0, 0, 1, 1], [], []>} : vector<256x8xbf16>, vector<8x128xbf16>, vector<256x128xf32> -> vector<256x128xf32>
    %42 = arith.addf %36, %41 : vector<256x128xf32>
    %43 = vector.extract_strided_slice %1 {offsets = [2, 1, 0], sizes = [16, 16, 8], strides = [1, 1, 1]} : vector<18x18x8xbf16> to vector<16x16x8xbf16>
    %44 = vector.shape_cast %43 : vector<16x16x8xbf16> to vector<256x8xbf16>
    %c7 = arith.constant 7 : index
    %c0_24 = arith.constant 0 : index
    %c0_25 = arith.constant 0 : index
    %45 = vector.load %arg2[%c7, %c0_24, %c0_25] : memref<9x8x128xbf16, #tpu.memory_space<vmem>>, vector<1x8x128xbf16>
    %46 = vector.shape_cast %45 : vector<1x8x128xbf16> to vector<8x128xbf16>
    %cst_26 = arith.constant dense<0.000000e+00> : vector<256x128xf32>
    %47 = tpu.matmul %44, %46, %cst_26 {dimension_numbers = #tpu.dot_dimension_numbers<[1], [0], [0], [1], [0, 0, 1, 1], [], []>} : vector<256x8xbf16>, vector<8x128xbf16>, vector<256x128xf32> -> vector<256x128xf32>
    %48 = arith.addf %42, %47 : vector<256x128xf32>
    %49 = vector.extract_strided_slice %1 {offsets = [2, 2, 0], sizes = [16, 16, 8], strides = [1, 1, 1]} : vector<18x18x8xbf16> to vector<16x16x8xbf16>
    %50 = vector.shape_cast %49 : vector<16x16x8xbf16> to vector<256x8xbf16>
    %c8 = arith.constant 8 : index
    %c0_27 = arith.constant 0 : index
    %c0_28 = arith.constant 0 : index
    %51 = vector.load %arg2[%c8, %c0_27, %c0_28] : memref<9x8x128xbf16, #tpu.memory_space<vmem>>, vector<1x8x128xbf16>
    %52 = vector.shape_cast %51 : vector<1x8x128xbf16> to vector<8x128xbf16>
    %cst_29 = arith.constant dense<0.000000e+00> : vector<256x128xf32>
    %53 = tpu.matmul %50, %52, %cst_29 {dimension_numbers = #tpu.dot_dimension_numbers<[1], [0], [0], [1], [0, 0, 1, 1], [], []>} : vector<256x8xbf16>, vector<8x128xbf16>, vector<256x128xf32> -> vector<256x128xf32>
    %54 = arith.addf %48, %53 : vector<256x128xf32>
    %c0_30 = arith.constant 0 : index
    %c0_31 = arith.constant 0 : index
    %55 = vector.load %arg3[%c0_30, %c0_31] : memref<1x128xf32, #tpu.memory_space<vmem>>, vector<1x128xf32>
    %56 = vector.broadcast %55 : vector<1x128xf32> to vector<256x128xf32>
    %57 = arith.addf %54, %56 : vector<256x128xf32>
    %cst_32 = arith.constant 0.000000e+00 : f32
    %58 = vector.broadcast %cst_32 : f32 to vector<256x128xf32>
    %59 = arith.maximumf %57, %58 : vector<256x128xf32>
    %60 = arith.truncf %59 : vector<256x128xf32> to vector<256x128xbf16>
    %c0_33 = arith.constant 0 : index
    %c0_34 = arith.constant 0 : index
    %61 = vector.load %arg4[%c0_33, %c0_34] : memref<128x256xbf16, #tpu.memory_space<vmem>>, vector<128x256xbf16>
    %cst_35 = arith.constant dense<0.000000e+00> : vector<256x256xf32>
    %62 = tpu.matmul %60, %61, %cst_35 {dimension_numbers = #tpu.dot_dimension_numbers<[1], [0], [0], [1], [0, 0, 1, 1], [], []>} : vector<256x128xbf16>, vector<128x256xbf16>, vector<256x256xf32> -> vector<256x256xf32>
    %c0_36 = arith.constant 0 : index
    %c0_37 = arith.constant 0 : index
    %63 = vector.load %arg5[%c0_36, %c0_37] : memref<1x256xf32, #tpu.memory_space<vmem>>, vector<1x256xf32>
    %64 = vector.broadcast %63 : vector<1x256xf32> to vector<256x256xf32>
    %65 = arith.addf %62, %64 : vector<256x256xf32>
    %66 = vector.extract_strided_slice %65 {offsets = [0, 0], sizes = [256, 128], strides = [1, 1]} : vector<256x256xf32> to vector<256x128xf32>
    %67 = vector.extract_strided_slice %65 {offsets = [0, 128], sizes = [256, 128], strides = [1, 1]} : vector<256x256xf32> to vector<256x128xf32>
    %cst_38 = arith.constant -3.000000e+01 : f32
    %cst_39 = arith.constant 2.000000e+01 : f32
    %68 = vector.broadcast %cst_38 : f32 to vector<256x128xf32>
    %69 = arith.maximumf %68, %67 : vector<256x128xf32>
    %70 = vector.broadcast %cst_39 : f32 to vector<256x128xf32>
    %71 = arith.minimumf %70, %69 : vector<256x128xf32>
    %cst_40 = arith.constant 5.000000e-01 : f32
    %72 = vector.broadcast %cst_40 : f32 to vector<256x128xf32>
    %73 = arith.mulf %72, %71 : vector<256x128xf32>
    %74 = math.exp %73 : vector<256x128xf32>
    %c0_41 = arith.constant 0 : index
    %c0_42 = arith.constant 0 : index
    %c0_43 = arith.constant 0 : index
    %c0_44 = arith.constant 0 : index
    %75 = vector.load %arg6[%c0_41, %c0_42, %c0_43, %c0_44] : memref<1x16x16x128xf32, #tpu.memory_space<vmem>>, vector<1x16x16x128xf32>
    %76 = vector.shape_cast %75 : vector<1x16x16x128xf32> to vector<16x16x128xf32>
    %77 = vector.shape_cast %76 : vector<16x16x128xf32> to vector<256x128xf32>
    %78 = arith.mulf %74, %77 : vector<256x128xf32>
    %79 = arith.addf %66, %78 : vector<256x128xf32>
    %80 = vector.shape_cast %66 : vector<256x128xf32> to vector<1x16x16x128xf32>
    %c0_45 = arith.constant 0 : index
    %c0_46 = arith.constant 0 : index
    %c0_47 = arith.constant 0 : index
    %c0_48 = arith.constant 0 : index
    %81 = vector.load %arg7[%c0_45, %c0_46, %c0_47, %c0_48] : memref<1x16x16x128xf32, #tpu.memory_space<vmem>>, vector<1x16x16x128xf32>
    tpu.vector_store %arg7[%c0_45, %c0_46, %c0_47, %c0_48], %80 {strides = array<i32>} : memref<1x16x16x128xf32, #tpu.memory_space<vmem>>, vector<1x16x16x128xf32>,
    %82 = vector.shape_cast %67 : vector<256x128xf32> to vector<1x16x16x128xf32>
    %c0_49 = arith.constant 0 : index
    %c0_50 = arith.constant 0 : index
    %c0_51 = arith.constant 0 : index
    %c0_52 = arith.constant 0 : index
    %83 = vector.load %arg8[%c0_49, %c0_50, %c0_51, %c0_52] : memref<1x16x16x128xf32, #tpu.memory_space<vmem>>, vector<1x16x16x128xf32>
    tpu.vector_store %arg8[%c0_49, %c0_50, %c0_51, %c0_52], %82 {strides = array<i32>} : memref<1x16x16x128xf32, #tpu.memory_space<vmem>>, vector<1x16x16x128xf32>,
    %84 = vector.shape_cast %79 : vector<256x128xf32> to vector<1x16x16x128xf32>
    %85 = arith.truncf %84 : vector<1x16x16x128xf32> to vector<1x16x16x128xbf16>
    %c0_53 = arith.constant 0 : index
    %c0_54 = arith.constant 0 : index
    %c0_55 = arith.constant 0 : index
    %c0_56 = arith.constant 0 : index
    %86 = vector.load %arg9[%c0_53, %c0_54, %c0_55, %c0_56] : memref<1x16x16x128xbf16, #tpu.memory_space<vmem>>, vector<1x16x16x128xbf16>
    tpu.vector_store %arg9[%c0_53, %c0_54, %c0_55, %c0_56], %85 {strides = array<i32>} : memref<1x16x16x128xbf16, #tpu.memory_space<vmem>>, vector<1x16x16x128xbf16>,
    return
  }
  func.func @transform_0(%arg0: i32) -> (i32, i32, i32, i32) {
    %c0_i32 = arith.constant 0 : i32
    %c0_i32_0 = arith.constant 0 : i32
    %c0_i32_1 = arith.constant 0 : i32
    %c0_i32_2 = arith.constant 0 : i32
    return %arg0, %c0_i32, %c0_i32_0, %c0_i32_1 : i32, i32, i32, i32
  }
  func.func @transform_1(%arg0: i32) -> (i32, i32, i32) {
    %c0_i32 = arith.constant 0 : i32
    %c0_i32_0 = arith.constant 0 : i32
    %c0_i32_1 = arith.constant 0 : i32
    %c0_i32_2 = arith.constant 0 : i32
    return %c0_i32, %c0_i32_0, %c0_i32_1 : i32, i32, i32
  }
  func.func @transform_2(%arg0: i32) -> (i32, i32) {
    %c0_i32 = arith.constant 0 : i32
    %c0_i32_0 = arith.constant 0 : i32
    %c0_i32_1 = arith.constant 0 : i32
    return %c0_i32, %c0_i32_0 : i32, i32
  }
  func.func @transform_3(%arg0: i32) -> (i32, i32) {
    %c0_i32 = arith.constant 0 : i32
    %c0_i32_0 = arith.constant 0 : i32
    %c0_i32_1 = arith.constant 0 : i32
    return %c0_i32, %c0_i32_0 : i32, i32
  }
  func.func @transform_4(%arg0: i32) -> (i32, i32) {
    %c0_i32 = arith.constant 0 : i32
    %c0_i32_0 = arith.constant 0 : i32
    %c0_i32_1 = arith.constant 0 : i32
    return %c0_i32, %c0_i32_0 : i32, i32
  }
  func.func @transform_5(%arg0: i32) -> (i32, i32, i32, i32) {
    %c0_i32 = arith.constant 0 : i32
    %c0_i32_0 = arith.constant 0 : i32
    %c0_i32_1 = arith.constant 0 : i32
    %c0_i32_2 = arith.constant 0 : i32
    return %arg0, %c0_i32, %c0_i32_0, %c0_i32_1 : i32, i32, i32, i32
  }
  func.func @transform_6(%arg0: i32) -> (i32, i32, i32, i32) {
    %c0_i32 = arith.constant 0 : i32
    %c0_i32_0 = arith.constant 0 : i32
    %c0_i32_1 = arith.constant 0 : i32
    %c0_i32_2 = arith.constant 0 : i32
    return %arg0, %c0_i32, %c0_i32_0, %c0_i32_1 : i32, i32, i32, i32
  }
  func.func @transform_7(%arg0: i32) -> (i32, i32, i32, i32) {
    %c0_i32 = arith.constant 0 : i32
    %c0_i32_0 = arith.constant 0 : i32
    %c0_i32_1 = arith.constant 0 : i32
    %c0_i32_2 = arith.constant 0 : i32
    return %arg0, %c0_i32, %c0_i32_0, %c0_i32_1 : i32, i32, i32, i32
  }
  func.func @transform_8(%arg0: i32) -> (i32, i32, i32, i32) {
    %c0_i32 = arith.constant 0 : i32
    %c0_i32_0 = arith.constant 0 : i32
    %c0_i32_1 = arith.constant 0 : i32
    %c0_i32_2 = arith.constant 0 : i32
    return %arg0, %c0_i32, %c0_i32_0, %c0_i32_1 : i32, i32, i32, i32
  }
}

</mosaic_0001>

<llo_original>
// kernel: tpu_custom_call.1
$region0: #{tpu_custom_call.1}
  #allocation0 [shape = 'u32[]', space=smem, size = 0x4, offset = 0x4, fixed_abs, tag = 'smem constant byte address 0x4 - core index']
  #allocation1 [shape = 'u32[144,128]{1,0:T(1,128)}', space=vmem, size = 0x12000, scoped, tag = 'internal scratch']
  %s0 = inlined_call_operand.vmem [shape: bf16[2,18,18,8], index: 0, kind: input, shape index: {}]
  %s1 = inlined_call_operand.vmem [shape: bf16[9,8,128], index: 1, kind: input, shape index: {}]
  %s2 = inlined_call_operand.vmem [shape: f32[1,128], index: 2, kind: input, shape index: {}]
  %s3 = inlined_call_operand.hbm [shape: bf16[128,256], index: 3, kind: input, shape index: {}]
  %s4 = inlined_call_operand.vmem [shape: f32[1,256], index: 4, kind: input, shape index: {}]
  %s5 = inlined_call_operand.vmem [shape: f32[2,16,16,128], index: 5, kind: input, shape index: {}]
  %s6 = inlined_call_operand.hbm [shape: f32[2,16,16,128], index: 6, kind: output, shape index: {0}]
  %s7 = inlined_call_operand.hbm [shape: f32[2,16,16,128], index: 7, kind: output, shape index: {1}]
  %s8 = inlined_call_operand.hbm [shape: bf16[2,16,16,128], index: 8, kind: output, shape index: {2}]
  %9 = xla_tuple %s6, %s7, %s8
  %s10 = sld [smem:[#allocation0]]
  $region77: #{tpu_custom_call.1} parent=0
    _
  %s12 = ssub.s32 1, %s10
  %s13 = scalar_select 0, %s12, %s10
  $region1: #{tpu_custom_call.1} parent=0
    #allocation2 [shape = 'u8[65536]{0}', space=vmem, size = 0x10000, scoped, tag = 'input window, operand 3, single buffered']
    #allocation3 [shape = 's32[2]{0}', space=sflag, size = 0x8, scoped, tag = 'scoped memory for tpu_custom_call.1']
    #allocation4 [shape = 's32[2]{0}', space=sflag, size = 0x8, scoped, tag = 'scoped memory for tpu_custom_call.1']
    #allocation5 [shape = 'u8[262144]{0}', space=vmem, size = 0x40000, scoped, tag = 'output window, operand 0']
    #allocation6 [shape = 'u8[262144]{0}', space=vmem, size = 0x40000, scoped, tag = 'output window, operand 1']
    #allocation7 [shape = 's32[2]{0}', space=sflag, size = 0x8, scoped, tag = 'scoped memory for tpu_custom_call.1']
    #allocation8 [shape = 'u8[131072]{0}', space=vmem, size = 0x20000, scoped, tag = 'output window, operand 2']
    %14 = vsyncpa [#allocation3], 0
    %15 = vsyncpa [#allocation4], 0
    %s16 = scalar_lea.sflag [#allocation4], 1
    %17 = vsyncpa %s16, 0
    %18 = vsyncpa [#allocation7], 0
    %s19 = scalar_lea.sflag [#allocation7], 1
    %20 = vsyncpa %s19, 0
    loop: start=0, step=1, limit=4
    $region2: #{tpu_custom_call.1} parent=1 // loop_pre_header
      _
    $region3: #{tpu_custom_call.1} parent=1 // loop_header
      %s22 = sphi 0, %s26
      %p23 = scmp.ge.s32.totalorder %s22, 4
      %s32 = sphi 0, %s34
      %s35 = sphi 0, %s32
      %s36 = sphi 0, %s35
      %s52 = sphi 0, %s36
      %s56 = sphi 0, %s56
      %s58 = sphi 0, %s56
      %s59 = sphi 0, %s58
      %s73 = sphi 0, %s59
      %s77 = sphi 0, %s77
      %s79 = sphi 0, %s77
      %s80 = sphi 0, %s79
      %s94 = sphi 0, %s80
      %s98 = sphi 0, %s98
      %s100 = sphi 0, %s98
      %s101 = sphi 0, %s100
      %s115 = sphi 0, %s101
      %s119 = sphi 0, %s119
      %s121 = sphi 0, %s119
      %s122 = sphi 0, %s121
      %s136 = sphi 0, %s122
      %s142 = sphi 0, %s144
      %s145 = sphi 0, %s142
      %s146 = sphi 0, %s145
      %s162 = sphi 0, %s146
      %s168 = sphi 0, %s170
      %s171 = sphi 0, %s168
      %s172 = sphi 0, %s171
      %s188 = sphi 0, %s172
      %s194 = sphi 0, %s196
      %s197 = sphi 0, %s194
      %s198 = sphi 0, %s197
      %s214 = sphi 0, %s198
      %s220 = sphi 0, %s222
      %s223 = sphi 0, %s220
      %s224 = sphi 0, %s223
      %s240 = sphi 0, %s224
    $region4: #{tpu_custom_call.1} parent=1 // loop_header_branch
      %25 = sbr.rel (%p23) target = $region8
    $region5: #{tpu_custom_call.1} parent=1 // loop_body
      %s27 = ssub.s32 %s22, 1
      %s28 = ssub.s32 %s22, 2
      %s29 = sadd.s32 %s22, 1
      %s30 = ssub.s32 %s22, %s29
      %p31 = scmp.eq.s32.totalorder %s30, 0
      %s33 = sadd.s32 %s32, 1
      %s34 = scalar_select %p31, %s32, %s33
      %p37 = pneg %p31
      %p38 = scmp.eq.s32.totalorder %s22, 1
      %p39 = por %p37, %p38
      %p40 = scmp.ne.s32.totalorder %s32, %s35
      %p41 = scmp.eq.s32.totalorder %s22, 0
      %p42 = por %p40, %p41
      %p43 = scmp.ne.s32.totalorder %s32, %s35
      %p44 = scmp.eq.s32.totalorder %s27, 1
      %p45 = por %p43, %p44
      %p46 = scmp.ne.s32.totalorder %s35, %s36
      %p47 = scmp.eq.s32.totalorder %s27, 0
      %p48 = por %p46, %p47
      %p49 = scmp.ne.s32.totalorder %s35, %s36
      %p50 = scmp.eq.s32.totalorder %s28, 1
      %p51 = por %p49, %p50
      %p53 = scmp.ne.s32.totalorder %s36, %s52
      %p54 = scmp.eq.s32.totalorder %s28, 0
      %p55 = por %p53, %p54
      %s57 = sadd.s32 %s56, 1
      %p60 = scmp.eq.s32.totalorder %s22, 1
      %p61 = scmp.ne.s32.totalorder %s56, %s58
      %p62 = scmp.eq.s32.totalorder %s22, 0
      %p63 = por %p61, %p62
      %p64 = scmp.ne.s32.totalorder %s56, %s58
      %p65 = scmp.eq.s32.totalorder %s27, 1
      %p66 = por %p64, %p65
      %p67 = scmp.ne.s32.totalorder %s58, %s59
      %p68 = scmp.eq.s32.totalorder %s27, 0
      %p69 = por %p67, %p68
      %p70 = scmp.ne.s32.totalorder %s58, %s59
      %p71 = scmp.eq.s32.totalorder %s28, 1
      %p72 = por %p70, %p71
      %p74 = scmp.ne.s32.totalorder %s59, %s73
      %p75 = scmp.eq.s32.totalorder %s28, 0
      %p76 = por %p74, %p75
      %s78 = sadd.s32 %s77, 1
      %p81 = scmp.eq.s32.totalorder %s22, 1
      %p82 = scmp.ne.s32.totalorder %s77, %s79
      %p83 = scmp.eq.s32.totalorder %s22, 0
      %p84 = por %p82, %p83
      %p85 = scmp.ne.s32.totalorder %s77, %s79
      %p86 = scmp.eq.s32.totalorder %s27, 1
      %p87 = por %p85, %p86
      %p88 = scmp.ne.s32.totalorder %s79, %s80
      %p89 = scmp.eq.s32.totalorder %s27, 0
      %p90 = por %p88, %p89
      %p91 = scmp.ne.s32.totalorder %s79, %s80
      %p92 = scmp.eq.s32.totalorder %s28, 1
      %p93 = por %p91, %p92
      %p95 = scmp.ne.s32.totalorder %s80, %s94
      %p96 = scmp.eq.s32.totalorder %s28, 0
      %p97 = por %p95, %p96
      %s99 = sadd.s32 %s98, 1
      %p102 = scmp.eq.s32.totalorder %s22, 1
      %p103 = scmp.ne.s32.totalorder %s98, %s100
      %p104 = scmp.eq.s32.totalorder %s22, 0
      %p105 = por %p103, %p104
      %p106 = scmp.ne.s32.totalorder %s98, %s100
      %p107 = scmp.eq.s32.totalorder %s27, 1
      %p108 = por %p106, %p107
      %p109 = scmp.ne.s32.totalorder %s100, %s101
      %p110 = scmp.eq.s32.totalorder %s27, 0
      %p111 = por %p109, %p110
      %p112 = scmp.ne.s32.totalorder %s100, %s101
      %p113 = scmp.eq.s32.totalorder %s28, 1
      %p114 = por %p112, %p113
      %p116 = scmp.ne.s32.totalorder %s101, %s115
      %p117 = scmp.eq.s32.totalorder %s28, 0
      %p118 = por %p116, %p117
      %s120 = sadd.s32 %s119, 1
      %p123 = scmp.eq.s32.totalorder %s22, 1
      %p124 = scmp.ne.s32.totalorder %s119, %s121
      %p125 = scmp.eq.s32.totalorder %s22, 0
      %p126 = por %p124, %p125
      %p127 = scmp.ne.s32.totalorder %s119, %s121
      %p128 = scmp.eq.s32.totalorder %s27, 1
      %p129 = por %p127, %p128
      %p130 = scmp.ne.s32.totalorder %s121, %s122
      %p131 = scmp.eq.s32.totalorder %s27, 0
      %p132 = por %p130, %p131
      %p133 = scmp.ne.s32.totalorder %s121, %s122
      %p134 = scmp.eq.s32.totalorder %s28, 1
      %p135 = por %p133, %p134
      %p137 = scmp.ne.s32.totalorder %s122, %s136
      %p138 = scmp.eq.s32.totalorder %s28, 0
      %p139 = por %p137, %p138
      %s140 = ssub.s32 %s22, %s29
      %p141 = scmp.eq.s32.totalorder %s140, 0
      %s143 = sadd.s32 %s142, 1
      %s144 = scalar_select %p141, %s142, %s143
      %p147 = pneg %p141
      %p148 = scmp.eq.s32.totalorder %s22, 1
      %p149 = por %p147, %p148
      %p150 = scmp.ne.s32.totalorder %s142, %s145
      %p151 = scmp.eq.s32.totalorder %s22, 0
      %p152 = por %p150, %p151
      %p153 = scmp.ne.s32.totalorder %s142, %s145
      %p154 = scmp.eq.s32.totalorder %s27, 1
      %p155 = por %p153, %p154
      %p156 = scmp.ne.s32.totalorder %s145, %s146
      %p157 = scmp.eq.s32.totalorder %s27, 0
      %p158 = por %p156, %p157
      %p159 = scmp.ne.s32.totalorder %s145, %s146
      %p160 = scmp.eq.s32.totalorder %s28, 1
      %p161 = por %p159, %p160
      %p163 = scmp.ne.s32.totalorder %s146, %s162
      %p164 = scmp.eq.s32.totalorder %s28, 0
      %p165 = por %p163, %p164
      %s166 = ssub.s32 %s22, %s29
      %p167 = scmp.eq.s32.totalorder %s166, 0
      %s169 = sadd.s32 %s168, 1
      %s170 = scalar_select %p167, %s168, %s169
      %p173 = pneg %p167
      %p174 = scmp.eq.s32.totalorder %s22, 1
      %p175 = por %p173, %p174
      %p176 = scmp.ne.s32.totalorder %s168, %s171
      %p177 = scmp.eq.s32.totalorder %s22, 0
      %p178 = por %p176, %p177
      %p179 = scmp.ne.s32.totalorder %s168, %s171
      %p180 = scmp.eq.s32.totalorder %s27, 1
      %p181 = por %p179, %p180
      %p182 = scmp.ne.s32.totalorder %s171, %s172
      %p183 = scmp.eq.s32.totalorder %s27, 0
      %p184 = por %p182, %p183
      %p185 = scmp.ne.s32.totalorder %s171, %s172
      %p186 = scmp.eq.s32.totalorder %s28, 1
      %p187 = por %p185, %p186
      %p189 = scmp.ne.s32.totalorder %s172, %s188
      %p190 = scmp.eq.s32.totalorder %s28, 0
      %p191 = por %p189, %p190
      %s192 = ssub.s32 %s22, %s29
      %p193 = scmp.eq.s32.totalorder %s192, 0
      %s195 = sadd.s32 %s194, 1
      %s196 = scalar_select %p193, %s194, %s195
      %p199 = pneg %p193
      %p200 = scmp.eq.s32.totalorder %s22, 1
      %p201 = por %p199, %p200
      %p202 = scmp.ne.s32.totalorder %s194, %s197
      %p203 = scmp.eq.s32.totalorder %s22, 0
      %p204 = por %p202, %p203
      %p205 = scmp.ne.s32.totalorder %s194, %s197
      %p206 = scmp.eq.s32.totalorder %s27, 1
      %p207 = por %p205, %p206
      %p208 = scmp.ne.s32.totalorder %s197, %s198
      %p209 = scmp.eq.s32.totalorder %s27, 0
      %p210 = por %p208, %p209
      %p211 = scmp.ne.s32.totalorder %s197, %s198
      %p212 = scmp.eq.s32.totalorder %s28, 1
      %p213 = por %p211, %p212
      %p215 = scmp.ne.s32.totalorder %s198, %s214
      %p216 = scmp.eq.s32.totalorder %s28, 0
      %p217 = por %p215, %p216
      %s218 = ssub.s32 %s22, %s29
      %p219 = scmp.eq.s32.totalorder %s218, 0
      %s221 = sadd.s32 %s220, 1
      %s222 = scalar_select %p219, %s220, %s221
      %p225 = pneg %p219
      %p226 = scmp.eq.s32.totalorder %s22, 1
      %p227 = por %p225, %p226
      %p228 = scmp.ne.s32.totalorder %s220, %s223
      %p229 = scmp.eq.s32.totalorder %s22, 0
      %p230 = por %p228, %p229
      %p231 = scmp.ne.s32.totalorder %s220, %s223
      %p232 = scmp.eq.s32.totalorder %s27, 1
      %p233 = por %p231, %p232
      %p234 = scmp.ne.s32.totalorder %s223, %s224
      %p235 = scmp.eq.s32.totalorder %s27, 0
      %p236 = por %p234, %p235
      %p237 = scmp.ne.s32.totalorder %s223, %s224
      %p238 = scmp.eq.s32.totalorder %s28, 1
      %p239 = por %p237, %p238
      %p241 = scmp.ne.s32.totalorder %s224, %s240
      %p242 = scmp.eq.s32.totalorder %s28, 0
      %p243 = por %p241, %p242
      %p244 = scmp.le.s32.totalorder 1, %s22
      %p245 = scmp.lt.s32.totalorder %s22, 3
      %p246 = pnand %p244, %p245
      %p247 = pneg %p246
      // Predicated region
      $region9: #{tpu_custom_call.1} parent=5 // pred_check
        _
      $region10: #{tpu_custom_call.1} parent=5 // pred_check_branch
        %249 = sbr.rel (%p246) target = $region12
      $region11: #{tpu_custom_call.1} parent=5 // pred_region
        %s250 = ssub.s32 %s22, 1
        // Predicated region
        $region13: #{tpu_custom_call.1} parent=11 // pred_check
          %p251 = pneg %p69
        $region14: #{tpu_custom_call.1} parent=11 // pred_check_branch
          %253 = sbr.rel (%p251) target = $region16
        $region15: #{tpu_custom_call.1} parent=11 // pred_region
          _
        $region16: #{tpu_custom_call.1} parent=11 // pred_fallthru
          _
        // Predicated region
        $region17: #{tpu_custom_call.1} parent=11 // pred_check
          %p254 = pneg %p90
        $region18: #{tpu_custom_call.1} parent=11 // pred_check_branch
          %256 = sbr.rel (%p254) target = $region20
        $region19: #{tpu_custom_call.1} parent=11 // pred_region
          _
        $region20: #{tpu_custom_call.1} parent=11 // pred_fallthru
          _
        // Predicated region
        $region21: #{tpu_custom_call.1} parent=11 // pred_check
          %p257 = pneg %p111
        $region22: #{tpu_custom_call.1} parent=11 // pred_check_branch
          %259 = sbr.rel (%p257) target = $region24
        $region23: #{tpu_custom_call.1} parent=11 // pred_region
          %s261 = ssub.s32 2048, 2048
          %262 = vsyncadd [#allocation3], %s261
          %s263 = sshll.u32 [#allocation2], 4
          %s264 = int_to_ptr.vmem [resolvable:$true] %s263
          %269 = dma.hbm_to_vmem [thread:$0]  %s3, 2048, %s264, [#allocation3], 128, 128, 8
        $region24: #{tpu_custom_call.1} parent=11 // pred_fallthru
          _
        // Predicated region
        $region25: #{tpu_custom_call.1} parent=11 // pred_check
          %p270 = pneg %p132
        $region26: #{tpu_custom_call.1} parent=11 // pred_check_branch
          %272 = sbr.rel (%p270) target = $region28
        $region27: #{tpu_custom_call.1} parent=11 // pred_region
          _
        $region28: #{tpu_custom_call.1} parent=11 // pred_fallthru
          _
      $region12: #{tpu_custom_call.1} parent=5 // pred_fallthru
        _
      %p273 = scmp.lt.s32.totalorder %s22, 2
      // Predicated region
      $region29: #{tpu_custom_call.1} parent=5 // pred_check
        %p274 = pneg %p273
      $region30: #{tpu_custom_call.1} parent=5 // pred_check_branch
        %276 = sbr.rel (%p274) target = $region32
      $region31: #{tpu_custom_call.1} parent=5 // pred_region
        // Predicated region
        $region33: #{tpu_custom_call.1} parent=31 // pred_check
          %p277 = pneg %p42
        $region34: #{tpu_custom_call.1} parent=31 // pred_check_branch
          %279 = sbr.rel (%p277) target = $region36
        $region35: #{tpu_custom_call.1} parent=31 // pred_region
          %p280 = scmp.lt.s32.totalorder %s22, 1
          %s281 = scalar_select %p280, %s22, 1
          %s282 = smul.addr %s281, 54
          %s283 = smul.addr %s282, 4
          %s284 = scalar_lea.vmem %s0, %s283
        $region36: #{tpu_custom_call.1} parent=31 // pred_fallthru
          _
        // Predicated region
        $region37: #{tpu_custom_call.1} parent=31 // pred_check
          %p285 = pneg %p152
        $region38: #{tpu_custom_call.1} parent=31 // pred_check_branch
          %287 = sbr.rel (%p285) target = $region40
        $region39: #{tpu_custom_call.1} parent=31 // pred_region
          %p288 = scmp.lt.s32.totalorder %s22, 1
          %s289 = scalar_select %p288, %s22, 1
          %s290 = smul.addr %s289, 32
          %s291 = smul.addr %s290, 8
          %s292 = scalar_lea.vmem %s5, %s291
        $region40: #{tpu_custom_call.1} parent=31 // pred_fallthru
          _
      $region32: #{tpu_custom_call.1} parent=5 // pred_fallthru
        _
      %p293 = scmp.le.s32.totalorder 1, %s22
      %p294 = scmp.lt.s32.totalorder %s22, 3
      %p295 = pnand %p293, %p294
      %p296 = pneg %p295
      // Predicated region
      $region41: #{tpu_custom_call.1} parent=5 // pred_check
        _
      $region42: #{tpu_custom_call.1} parent=5 // pred_check_branch
        %298 = sbr.rel (%p295) target = $region44
      $region43: #{tpu_custom_call.1} parent=5 // pred_region
        %s299 = ssub.s32 %s22, 1
        // Predicated region
        $region45: #{tpu_custom_call.1} parent=43 // pred_check
          %p300 = pneg %p111
        $region46: #{tpu_custom_call.1} parent=43 // pred_check_branch
          %302 = sbr.rel (%p300) target = $region48
        $region47: #{tpu_custom_call.1} parent=43 // pred_region
          %303 = dma.done [#allocation3], 2048
        $region48: #{tpu_custom_call.1} parent=43 // pred_fallthru
          _
        %p304 = scmp.lt.s32.totalorder %s27, 1
        %s305 = scalar_select %p304, %s27, 1
        %s306 = smul.addr %s305, 54
        %s307 = smul.addr %s306, 4
        %s308 = scalar_lea.vmem %s0, %s307
        %p309 = pneg %p48
        %p310 = pneg %p45
        %p311 = pneg %p69
        %p312 = pneg %p66
        %p313 = pneg %p90
        %p314 = pneg %p87
        %p315 = pneg %p111
        %p316 = pneg %p108
        %p317 = pneg %p132
        %p318 = pneg %p129
        %p319 = scmp.lt.s32.totalorder %s27, 1
        %s320 = scalar_select %p319, %s27, 1
        %s321 = smul.addr %s320, 32
        %s322 = smul.addr %s321, 8
        %s323 = scalar_lea.vmem %s5, %s322
        %p324 = pneg %p158
        %p325 = pneg %p155
        %p326 = pneg %p184
        %p327 = pneg %p181
        %s328 = sand.u32 %s171, 1
        %s329 = scalar_lea.sflag [#allocation4], %s328
        %s330 = sand.u32 %s171, 1
        %s331 = smul.addr %s330, 256
        %s332 = scalar_lea.vmem [#allocation5], %s331
        %p333 = pneg %p210
        %p334 = pneg %p207
        %s335 = sand.u32 %s27, 1
        %s336 = scalar_lea.sflag [#allocation7], %s335
        %s337 = sand.u32 %s197, 1
        %s338 = smul.addr %s337, 256
        %s339 = scalar_lea.vmem [#allocation6], %s338
        %p340 = pneg %p236
        %p341 = pneg %p233
        %s342 = sand.u32 %s27, 1
        %s343 = scalar_lea.sflag [#allocation7], %s342
        %s344 = sand.u32 %s223, 1
        %s345 = smul.addr %s344, 128
        %s346 = scalar_lea.vmem [#allocation8], %s345
        %p347 = scmp.lt.s32.totalorder %s27, 1
        %s348 = scalar_select %p347, %s27, 1
        %s349 = smul.addr %s348, 54
        %s350 = smul.addr %s349, 4
        %s351 = scalar_lea.vmem %s0, %s350
        %p352 = scmp.lt.s32.totalorder %s27, 1
        %s353 = scalar_select %p352, %s27, 1
        %s354 = smul.addr %s353, 32
        %s355 = smul.addr %s354, 8
        %s356 = scalar_lea.vmem %s5, %s355
        %v358 = vld [vmem:[%s351] sm:$0xf]
        %v359 = vld [vmem:[%s351 + $0x4] sm:$0xf]
        %v360 = vld [vmem:[%s351 + $0x8] sm:$0x1]
        %v361 = vld [vmem:[%s351 + $0xc] sm:$0xf]
        %v362 = vld [vmem:[%s351 + $0x10] sm:$0xf]
        %v363 = vld [vmem:[%s351 + $0x14] sm:$0x1]
        %v364 = vld [vmem:[%s351 + $0x18] sm:$0xf]
        %v365 = vld [vmem:[%s351 + $0x1c] sm:$0xf]
        %v366 = vld [vmem:[%s351 + $0x20] sm:$0x1]
        %v367 = vld [vmem:[%s351 + $0x24] sm:$0xf]
        %v368 = vld [vmem:[%s351 + $0x28] sm:$0xf]
        %v369 = vld [vmem:[%s351 + $0x2c] sm:$0x1]
        %v370 = vld [vmem:[%s351 + $0x30] sm:$0xf]
        %v371 = vld [vmem:[%s351 + $0x34] sm:$0xf]
        %v372 = vld [vmem:[%s351 + $0x38] sm:$0x1]
        %v373 = vld [vmem:[%s351 + $0x3c] sm:$0xf]
        %v374 = vld [vmem:[%s351 + $0x40] sm:$0xf]
        %v375 = vld [vmem:[%s351 + $0x44] sm:$0x1]
        %v376 = vld [vmem:[%s351 + $0x48] sm:$0xf]
        %v377 = vld [vmem:[%s351 + $0x4c] sm:$0xf]
        %v378 = vld [vmem:[%s351 + $0x50] sm:$0x1]
        %v379 = vld [vmem:[%s351 + $0x54] sm:$0xf]
        %v380 = vld [vmem:[%s351 + $0x58] sm:$0xf]
        %v381 = vld [vmem:[%s351 + $0x5c] sm:$0x1]
        %v382 = vld [vmem:[%s351 + $0x60] sm:$0xf]
        %v383 = vld [vmem:[%s351 + $0x64] sm:$0xf]
        %v384 = vld [vmem:[%s351 + $0x68] sm:$0x1]
        %v385 = vld [vmem:[%s351 + $0x6c] sm:$0xf]
        %v386 = vld [vmem:[%s351 + $0x70] sm:$0xf]
        %v387 = vld [vmem:[%s351 + $0x74] sm:$0x1]
        %v388 = vld [vmem:[%s351 + $0x78] sm:$0xf]
        %v389 = vld [vmem:[%s351 + $0x7c] sm:$0xf]
        %v390 = vld [vmem:[%s351 + $0x80] sm:$0x1]
        %v391 = vld [vmem:[%s351 + $0x84] sm:$0xf]
        %v392 = vld [vmem:[%s351 + $0x88] sm:$0xf]
        %v393 = vld [vmem:[%s351 + $0x8c] sm:$0x1]
        %v394 = vld [vmem:[%s351 + $0x90] sm:$0xf]
        %v395 = vld [vmem:[%s351 + $0x94] sm:$0xf]
        %v396 = vld [vmem:[%s351 + $0x98] sm:$0x1]
        %v397 = vld [vmem:[%s351 + $0x9c] sm:$0xf]
        %v398 = vld [vmem:[%s351 + $0xa0] sm:$0xf]
        %v399 = vld [vmem:[%s351 + $0xa4] sm:$0x1]
        %v400 = vld [vmem:[%s351 + $0xa8] sm:$0xf]
        %v401 = vld [vmem:[%s351 + $0xac] sm:$0xf]
        %v402 = vld [vmem:[%s351 + $0xb0] sm:$0x1]
        %v403 = vld [vmem:[%s351 + $0xb4] sm:$0xf]
        %v404 = vld [vmem:[%s351 + $0xb8] sm:$0xf]
        %v405 = vld [vmem:[%s351 + $0xbc] sm:$0x1]
        %v406 = vld [vmem:[%s351 + $0xc0] sm:$0xf]
        %v407 = vld [vmem:[%s351 + $0xc4] sm:$0xf]
        %v408 = vld [vmem:[%s351 + $0xc8] sm:$0x1]
        %v409 = vld [vmem:[%s351 + $0xcc] sm:$0xf]
        %v410 = vld [vmem:[%s351 + $0xd0] sm:$0xf]
        %v411 = vld [vmem:[%s351 + $0xd4] sm:$0x1]
        %v412 = vld [vmem:[%s1] sm:$0xf]
        %vm413 = vsmask.f32 3328
        %vm414 = vsmask.f32 7440
        %vm415 = vmor %vm413, %vm414
        %v417 = vshrl.u32 %v358, 16
        %v419 = vrot.slane %v417, 4
        %v420 = vshll.u32 %v358, 16
        %v422 = vrot.slane %v420, 5
        %v423 = vor.u32 %v419, %v422
        %v424 = vrot.slane %v423, 4
        %v426 = vshll.u32 %v359, 16
        %v428 = vrot.slane %v426, 5
        %v429 = vsel %vm415, %v424, %v428
        %v430 = vshrl.u32 %v359, 16
        %v432 = vrot.slane %v430, 4
        %v433 = vor.u32 %v432, %v428
        %v434 = vrot.slane %v433, 4
        %v436 = vshll.u32 %v360, 16
        %v438 = vrot.slane %v436, 5
        %v439 = vsel %vm415, %v434, %v438
        %v441 = vshrl.u32 %v361, 16
        %v443 = vrot.slane %v441, 4
        %v444 = vshll.u32 %v361, 16
        %v446 = vrot.slane %v444, 5
        %v447 = vor.u32 %v443, %v446
        %v448 = vrot.slane %v447, 4
        %v450 = vshll.u32 %v362, 16
        %v452 = vrot.slane %v450, 5
        %v453 = vsel %vm415, %v448, %v452
        %v454 = vshrl.u32 %v362, 16
        %v456 = vrot.slane %v454, 4
        %v457 = vor.u32 %v456, %v452
        %v458 = vrot.slane %v457, 4
        %v460 = vshll.u32 %v363, 16
        %v462 = vrot.slane %v460, 5
        %v463 = vsel %vm415, %v458, %v462
        %v465 = vshrl.u32 %v364, 16
        %v467 = vrot.slane %v465, 4
        %v468 = vshll.u32 %v364, 16
        %v470 = vrot.slane %v468, 5
        %v471 = vor.u32 %v467, %v470
        %v472 = vrot.slane %v471, 4
        %v474 = vshll.u32 %v365, 16
        %v476 = vrot.slane %v474, 5
        %v477 = vsel %vm415, %v472, %v476
        %v478 = vshrl.u32 %v365, 16
        %v480 = vrot.slane %v478, 4
        %v481 = vor.u32 %v480, %v476
        %v482 = vrot.slane %v481, 4
        %v484 = vshll.u32 %v366, 16
        %v486 = vrot.slane %v484, 5
        %v487 = vsel %vm415, %v482, %v486
        %v489 = vshrl.u32 %v367, 16
        %v491 = vrot.slane %v489, 4
        %v492 = vshll.u32 %v367, 16
        %v494 = vrot.slane %v492, 5
        %v495 = vor.u32 %v491, %v494
        %v496 = vrot.slane %v495, 4
        %v498 = vshll.u32 %v368, 16
        %v500 = vrot.slane %v498, 5
        %v501 = vsel %vm415, %v496, %v500
        %v502 = vshrl.u32 %v368, 16
        %v504 = vrot.slane %v502, 4
        %v505 = vor.u32 %v504, %v500
        %v506 = vrot.slane %v505, 4
        %v508 = vshll.u32 %v369, 16
        %v510 = vrot.slane %v508, 5
        %v511 = vsel %vm415, %v506, %v510
        %v513 = vshrl.u32 %v370, 16
        %v515 = vrot.slane %v513, 4
        %v516 = vshll.u32 %v370, 16
        %v518 = vrot.slane %v516, 5
        %v519 = vor.u32 %v515, %v518
        %v520 = vrot.slane %v519, 4
        %v522 = vshll.u32 %v371, 16
        %v524 = vrot.slane %v522, 5
        %v525 = vsel %vm415, %v520, %v524
        %v526 = vshrl.u32 %v371, 16
        %v528 = vrot.slane %v526, 4
        %v529 = vor.u32 %v528, %v524
        %v530 = vrot.slane %v529, 4
        %v532 = vshll.u32 %v372, 16
        %v534 = vrot.slane %v532, 5
        %v535 = vsel %vm415, %v530, %v534
        %v537 = vshrl.u32 %v373, 16
        %v539 = vrot.slane %v537, 4
        %v540 = vshll.u32 %v373, 16
        %v542 = vrot.slane %v540, 5
        %v543 = vor.u32 %v539, %v542
        %v544 = vrot.slane %v543, 4
        %v546 = vshll.u32 %v374, 16
        %v548 = vrot.slane %v546, 5
        %v549 = vsel %vm415, %v544, %v548
        %v550 = vshrl.u32 %v374, 16
        %v552 = vrot.slane %v550, 4
        %v553 = vor.u32 %v552, %v548
        %v554 = vrot.slane %v553, 4
        %v556 = vshll.u32 %v375, 16
        %v558 = vrot.slane %v556, 5
        %v559 = vsel %vm415, %v554, %v558
        %v561 = vshrl.u32 %v376, 16
        %v563 = vrot.slane %v561, 4
        %v564 = vshll.u32 %v376, 16
        %v566 = vrot.slane %v564, 5
        %v567 = vor.u32 %v563, %v566
        %v568 = vrot.slane %v567, 4
        %v570 = vshll.u32 %v377, 16
        %v572 = vrot.slane %v570, 5
        %v573 = vsel %vm415, %v568, %v572
        %v574 = vshrl.u32 %v377, 16
        %v576 = vrot.slane %v574, 4
        %v577 = vor.u32 %v576, %v572
        %v578 = vrot.slane %v577, 4
        %v580 = vshll.u32 %v378, 16
        %v582 = vrot.slane %v580, 5
        %v583 = vsel %vm415, %v578, %v582
        %v585 = vshrl.u32 %v379, 16
        %v587 = vrot.slane %v585, 4
        %v588 = vshll.u32 %v379, 16
        %v590 = vrot.slane %v588, 5
        %v591 = vor.u32 %v587, %v590
        %v592 = vrot.slane %v591, 4
        %v594 = vshll.u32 %v380, 16
        %v596 = vrot.slane %v594, 5
        %v597 = vsel %vm415, %v592, %v596
        %v598 = vshrl.u32 %v380, 16
        %v600 = vrot.slane %v598, 4
        %v601 = vor.u32 %v600, %v596
        %v602 = vrot.slane %v601, 4
        %v604 = vshll.u32 %v381, 16
        %v606 = vrot.slane %v604, 5
        %v607 = vsel %vm415, %v602, %v606
        %v609 = vshrl.u32 %v382, 16
        %v611 = vrot.slane %v609, 4
        %v612 = vshll.u32 %v382, 16
        %v614 = vrot.slane %v612, 5
        %v615 = vor.u32 %v611, %v614
        %v616 = vrot.slane %v615, 4
        %v618 = vshll.u32 %v383, 16
        %v620 = vrot.slane %v618, 5
        %v621 = vsel %vm415, %v616, %v620
        %v622 = vshrl.u32 %v383, 16
        %v624 = vrot.slane %v622, 4
        %v625 = vor.u32 %v624, %v620
        %v626 = vrot.slane %v625, 4
        %v628 = vshll.u32 %v384, 16
        %v630 = vrot.slane %v628, 5
        %v631 = vsel %vm415, %v626, %v630
        %v633 = vshrl.u32 %v385, 16
        %v635 = vrot.slane %v633, 4
        %v636 = vshll.u32 %v385, 16
        %v638 = vrot.slane %v636, 5
        %v639 = vor.u32 %v635, %v638
        %v640 = vrot.slane %v639, 4
        %v642 = vshll.u32 %v386, 16
        %v644 = vrot.slane %v642, 5
        %v645 = vsel %vm415, %v640, %v644
        %v646 = vshrl.u32 %v386, 16
        %v648 = vrot.slane %v646, 4
        %v649 = vor.u32 %v648, %v644
        %v650 = vrot.slane %v649, 4
        %v652 = vshll.u32 %v387, 16
        %v654 = vrot.slane %v652, 5
        %v655 = vsel %vm415, %v650, %v654
        %v657 = vshrl.u32 %v388, 16
        %v659 = vrot.slane %v657, 4
        %v660 = vshll.u32 %v388, 16
        %v662 = vrot.slane %v660, 5
        %v663 = vor.u32 %v659, %v662
        %v664 = vrot.slane %v663, 4
        %v666 = vshll.u32 %v389, 16
        %v668 = vrot.slane %v666, 5
        %v669 = vsel %vm415, %v664, %v668
        %v670 = vshrl.u32 %v389, 16
        %v672 = vrot.slane %v670, 4
        %v673 = vor.u32 %v672, %v668
        %v674 = vrot.slane %v673, 4
        %v676 = vshll.u32 %v390, 16
        %v678 = vrot.slane %v676, 5
        %v679 = vsel %vm415, %v674, %v678
        %v681 = vshrl.u32 %v391, 16
        %v683 = vrot.slane %v681, 4
        %v684 = vshll.u32 %v391, 16
        %v686 = vrot.slane %v684, 5
        %v687 = vor.u32 %v683, %v686
        %v688 = vrot.slane %v687, 4
        %v690 = vshll.u32 %v392, 16
        %v692 = vrot.slane %v690, 5
        %v693 = vsel %vm415, %v688, %v692
        %v694 = vshrl.u32 %v392, 16
        %v696 = vrot.slane %v694, 4
        %v697 = vor.u32 %v696, %v692
        %v698 = vrot.slane %v697, 4
        %v700 = vshll.u32 %v393, 16
        %v702 = vrot.slane %v700, 5
        %v703 = vsel %vm415, %v698, %v702
        %v705 = vshrl.u32 %v394, 16
        %v707 = vrot.slane %v705, 4
        %v708 = vshll.u32 %v394, 16
        %v710 = vrot.slane %v708, 5
        %v711 = vor.u32 %v707, %v710
        %v712 = vrot.slane %v711, 4
        %v714 = vshll.u32 %v395, 16
        %v716 = vrot.slane %v714, 5
        %v717 = vsel %vm415, %v712, %v716
        %v718 = vshrl.u32 %v395, 16
        %v720 = vrot.slane %v718, 4
        %v721 = vor.u32 %v720, %v716
        %v722 = vrot.slane %v721, 4
        %v724 = vshll.u32 %v396, 16
        %v726 = vrot.slane %v724, 5
        %v727 = vsel %vm415, %v722, %v726
        %v729 = vshrl.u32 %v397, 16
        %v731 = vrot.slane %v729, 4
        %v732 = vshll.u32 %v397, 16
        %v734 = vrot.slane %v732, 5
        %v735 = vor.u32 %v731, %v734
        %v736 = vrot.slane %v735, 4
        %v738 = vshll.u32 %v398, 16
        %v740 = vrot.slane %v738, 5
        %v741 = vsel %vm415, %v736, %v740
        %v742 = vshrl.u32 %v398, 16
        %v744 = vrot.slane %v742, 4
        %v745 = vor.u32 %v744, %v740
        %v746 = vrot.slane %v745, 4
        %v748 = vshll.u32 %v399, 16
        %v750 = vrot.slane %v748, 5
        %v751 = vsel %vm415, %v746, %v750
        %v753 = vshrl.u32 %v400, 16
        %v755 = vrot.slane %v753, 4
        %v756 = vshll.u32 %v400, 16
        %v758 = vrot.slane %v756, 5
        %v759 = vor.u32 %v755, %v758
        %v760 = vrot.slane %v759, 4
        %v762 = vshll.u32 %v401, 16
        %v764 = vrot.slane %v762, 5
        %v765 = vsel %vm415, %v760, %v764
        %v766 = vshrl.u32 %v401, 16
        %v768 = vrot.slane %v766, 4
        %v769 = vor.u32 %v768, %v764
        %v770 = vrot.slane %v769, 4
        %v772 = vshll.u32 %v402, 16
        %v774 = vrot.slane %v772, 5
        %v775 = vsel %vm415, %v770, %v774
        %v777 = vshrl.u32 %v403, 16
        %v779 = vrot.slane %v777, 4
        %v780 = vshll.u32 %v403, 16
        %v782 = vrot.slane %v780, 5
        %v783 = vor.u32 %v779, %v782
        %v784 = vrot.slane %v783, 4
        %v786 = vshll.u32 %v404, 16
        %v788 = vrot.slane %v786, 5
        %v789 = vsel %vm415, %v784, %v788
        %v790 = vshrl.u32 %v404, 16
        %v792 = vrot.slane %v790, 4
        %v793 = vor.u32 %v792, %v788
        %v794 = vrot.slane %v793, 4
        %v796 = vshll.u32 %v405, 16
        %v798 = vrot.slane %v796, 5
        %v799 = vsel %vm415, %v794, %v798
        %s800 = scalar_lea.vmem %s1, 4
        %v801 = vld [vmem:[%s800] sm:$0xf]
        %v802 = vunpack.c.l.b16 %v429
        %v803 = vunpack.c.l.b16 %v439
        %v804 = vunpack.c.l.b16 %v453
        %v805 = vunpack.c.l.b16 %v463
        %v806 = vunpack.c.l.b16 %v477
        %v807 = vunpack.c.l.b16 %v487
        %v808 = vunpack.c.l.b16 %v501
        %v809 = vunpack.c.l.b16 %v511
        %v810 = vunpack.c.l.b16 %v525
        %v811 = vunpack.c.l.b16 %v535
        %v812 = vunpack.c.l.b16 %v549
        %v813 = vunpack.c.l.b16 %v559
        %v814 = vunpack.c.l.b16 %v573
        %v815 = vunpack.c.l.b16 %v583
        %v816 = vunpack.c.l.b16 %v597
        %v817 = vunpack.c.l.b16 %v607
        %v818 = vunpack.c.l.b16 %v621
        %v819 = vunpack.c.l.b16 %v631
        %v820 = vunpack.c.l.b16 %v645
        %v821 = vunpack.c.l.b16 %v655
        %v822 = vunpack.c.l.b16 %v669
        %v823 = vunpack.c.l.b16 %v679
        %v824 = vunpack.c.l.b16 %v693
        %v825 = vunpack.c.l.b16 %v703
        %v826 = vunpack.c.l.b16 %v717
        %v827 = vunpack.c.l.b16 %v727
        %v828 = vunpack.c.l.b16 %v741
        %v829 = vunpack.c.l.b16 %v751
        %v830 = vunpack.c.l.b16 %v765
        %v831 = vunpack.c.l.b16 %v775
        %v832 = vunpack.c.l.b16 %v789
        %v833 = vunpack.c.l.b16 %v799
        %v834 = vpack.c.b16 %v803, %v802
        %v835 = vpack.c.b16 %v805, %v804
        %v836 = vpack.c.b16 %v807, %v806
        %v837 = vpack.c.b16 %v809, %v808
        %v838 = vpack.c.b16 %v811, %v810
        %v839 = vpack.c.b16 %v813, %v812
        %v840 = vpack.c.b16 %v815, %v814
        %v841 = vpack.c.b16 %v817, %v816
        %v842 = vpack.c.b16 %v819, %v818
        %v843 = vpack.c.b16 %v821, %v820
        %v844 = vpack.c.b16 %v823, %v822
        %v845 = vpack.c.b16 %v825, %v824
        %v846 = vpack.c.b16 %v827, %v826
        %v847 = vpack.c.b16 %v829, %v828
        %v848 = vpack.c.b16 %v831, %v830
        %v849 = vpack.c.b16 %v833, %v832
        %vm850 = vcmask 64512
        %v852 = vsel %vm850, %v834, 0
        %v855 = vsel %vm850, %v835, 0
        %v858 = vsel %vm850, %v836, 0
        %v861 = vsel %vm850, %v837, 0
        %v864 = vsel %vm850, %v838, 0
        %v867 = vsel %vm850, %v839, 0
        %v870 = vsel %vm850, %v840, 0
        %v873 = vsel %vm850, %v841, 0
        %v876 = vsel %vm850, %v842, 0
        %v879 = vsel %vm850, %v843, 0
        %v882 = vsel %vm850, %v844, 0
        %v885 = vsel %vm850, %v845, 0
        %v888 = vsel %vm850, %v846, 0
        %v891 = vsel %vm850, %v847, 0
        %v894 = vsel %vm850, %v848, 0
        %v897 = vsel %vm850, %v849, 0
        %vm899 = vcmask 1043456
        %v901 = vsel %vm899, %v801, 0
        %903 = vmatprep.subr.bf16.mxu0 0
        %904 = vmatpush1.bf16.msra.mxu0 %v901
        %905 = vmatprep.subr.bf16.mxu0 0
        %906 = vmatpush1.bf16.msra.mxu0 0
        %907 = vmatprep.subr.bf16.mxu0 0
        %908 = vmatpush1.bf16.msra.mxu0 0
        %909 = vmatprep.subr.bf16.mxu0 0
        %910 = vmatpush1.bf16.msra.mxu0 0
        %911 = vmatprep.subr.bf16.mxu0 0
        %912 = vmatpush1.bf16.msra.mxu0 0
        %913 = vmatprep.subr.bf16.mxu0 0
        %914 = vmatpush1.bf16.msra.mxu0 0
        %915 = vmatprep.subr.bf16.mxu0 0
        %916 = vmatpush1.bf16.msra.mxu0 0
        %917 = vmatprep.subr.bf16.mxu0 0
        %918 = vmatpush1.bf16.msra.mxu0 0
        %919 = vmatprep.subr.bf16.mxu0 0
        %920 = vmatpush1.bf16.msra.mxu0 0
        %921 = vmatprep.subr.bf16.mxu0 0
        %922 = vmatpush1.bf16.msra.mxu0 0
        %923 = vmatprep.subr.bf16.mxu0 0
        %924 = vmatpush1.bf16.msra.mxu0 0
        %925 = vmatprep.subr.bf16.mxu0 0
        %926 = vmatpush1.bf16.msra.mxu0 0
        %927 = vmatprep.subr.bf16.mxu0 0
        %928 = vmatpush1.bf16.msra.mxu0 0
        %929 = vmatprep.subr.bf16.mxu0 0
        %930 = vmatpush1.bf16.msra.mxu0 0
        %931 = vmatprep.subr.bf16.mxu0 0
        %932 = vmatpush1.bf16.msra.mxu0 0
        %933 = vmatprep.subr.bf16.mxu0 0
        %934 = vmatpush1.bf16.msra.mxu0 0
        %935 = vmatprep.mubr.bf16.mxu0 0
        %936 = vmatmul.mubr.bf16.gmra.mrb[0].mxu0 %v852
        %v937 = vpop.f32.mrb[0].mxu0
        %v938 = vadd.f32 0.0, %v937
        %v939 = vpop.f32.mrb[0].mxu0
        %v940 = vpop.f32.mrb[0].mxu0
        %v941 = vadd.f32 0.0, %v940
        %v942 = vpop.f32.mrb[0].mxu0
        %943 = vmatprep.mubr.bf16.mxu0 0
        %944 = vmatmul.mubr.bf16.gmra.mrb[0].mxu0 %v855
        %v945 = vpop.f32.mrb[0].mxu0
        %v946 = vadd.f32 0.0, %v945
        %v947 = vpop.f32.mrb[0].mxu0
        %v948 = vpop.f32.mrb[0].mxu0
        %v949 = vadd.f32 0.0, %v948
        %v950 = vpop.f32.mrb[0].mxu0
        %951 = vmatprep.mubr.bf16.mxu0 0
        %952 = vmatmul.mubr.bf16.gmra.mrb[0].mxu0 %v858
        %v953 = vpop.f32.mrb[0].mxu0
        %v954 = vadd.f32 0.0, %v953
        %v955 = vpop.f32.mrb[0].mxu0
        %v956 = vpop.f32.mrb[0].mxu0
        %v957 = vadd.f32 0.0, %v956
        %v958 = vpop.f32.mrb[0].mxu0
        %959 = vmatprep.mubr.bf16.mxu0 0
        %960 = vmatmul.mubr.bf16.gmra.mrb[0].mxu0 %v861
        %v961 = vpop.f32.mrb[0].mxu0
        %v962 = vadd.f32 0.0, %v961
        %v963 = vpop.f32.mrb[0].mxu0
        %v964 = vpop.f32.mrb[0].mxu0
        %v965 = vadd.f32 0.0, %v964
        %v966 = vpop.f32.mrb[0].mxu0
        %967 = vmatprep.mubr.bf16.mxu0 0
        %968 = vmatmul.mubr.bf16.gmra.mrb[0].mxu0 %v864
        %v969 = vpop.f32.mrb[0].mxu0
        %v970 = vadd.f32 0.0, %v969
        %v971 = vpop.f32.mrb[0].mxu0
        %v972 = vpop.f32.mrb[0].mxu0
        %v973 = vadd.f32 0.0, %v972
        %v974 = vpop.f32.mrb[0].mxu0
        %975 = vmatprep.mubr.bf16.mxu0 0
        %976 = vmatmul.mubr.bf16.gmra.mrb[0].mxu0 %v867
        %v977 = vpop.f32.mrb[0].mxu0
        %v978 = vadd.f32 0.0, %v977
        %v979 = vpop.f32.mrb[0].mxu0
        %v980 = vpop.f32.mrb[0].mxu0
        %v981 = vadd.f32 0.0, %v980
        %v982 = vpop.f32.mrb[0].mxu0
        %983 = vmatprep.mubr.bf16.mxu0 0
        %984 = vmatmul.mubr.bf16.gmra.mrb[0].mxu0 %v870
        %v985 = vpop.f32.mrb[0].mxu0
        %v986 = vadd.f32 0.0, %v985
        %v987 = vpop.f32.mrb[0].mxu0
        %v988 = vpop.f32.mrb[0].mxu0
        %v989 = vadd.f32 0.0, %v988
        %v990 = vpop.f32.mrb[0].mxu0
        %991 = vmatprep.mubr.bf16.mxu0 0
        %992 = vmatmul.mubr.bf16.gmra.mrb[0].mxu0 %v873
        %v993 = vpop.f32.mrb[0].mxu0
        %v994 = vadd.f32 0.0, %v993
        %v995 = vpop.f32.mrb[0].mxu0
        %v996 = vpop.f32.mrb[0].mxu0
        %v997 = vadd.f32 0.0, %v996
        %v998 = vpop.f32.mrb[0].mxu0
        %999 = vmatprep.mubr.bf16.mxu0 0
        %1000 = vmatmul.mubr.bf16.gmra.mrb[0].mxu0 %v876
        %v1001 = vpop.f32.mrb[0].mxu0
        %v1002 = vadd.f32 0.0, %v1001
        %v1003 = vpop.f32.mrb[0].mxu0
        %v1004 = vpop.f32.mrb[0].mxu0
        %v1005 = vadd.f32 0.0, %v1004
        %v1006 = vpop.f32.mrb[0].mxu0
        %1007 = vmatprep.mubr.bf16.mxu0 0
        %1008 = vmatmul.mubr.bf16.gmra.mrb[0].mxu0 %v879
        %v1009 = vpop.f32.mrb[0].mxu0
        %v1010 = vadd.f32 0.0, %v1009
        %v1011 = vpop.f32.mrb[0].mxu0
        %v1012 = vpop.f32.mrb[0].mxu0
        %v1013 = vadd.f32 0.0, %v1012
        %v1014 = vpop.f32.mrb[0].mxu0
        %1015 = vmatprep.mubr.bf16.mxu0 0
        %1016 = vmatmul.mubr.bf16.gmra.mrb[0].mxu0 %v882
        %v1017 = vpop.f32.mrb[0].mxu0
        %v1018 = vadd.f32 0.0, %v1017
        %v1019 = vpop.f32.mrb[0].mxu0
        %v1020 = vpop.f32.mrb[0].mxu0
        %v1021 = vadd.f32 0.0, %v1020
        %v1022 = vpop.f32.mrb[0].mxu0
        %1023 = vmatprep.mubr.bf16.mxu0 0
        %1024 = vmatmul.mubr.bf16.gmra.mrb[0].mxu0 %v885
        %v1025 = vpop.f32.mrb[0].mxu0
        %v1026 = vadd.f32 0.0, %v1025
        %v1027 = vpop.f32.mrb[0].mxu0
        %v1028 = vpop.f32.mrb[0].mxu0
        %v1029 = vadd.f32 0.0, %v1028
        %v1030 = vpop.f32.mrb[0].mxu0
        %1031 = vmatprep.mubr.bf16.mxu0 0
        %1032 = vmatmul.mubr.bf16.gmra.mrb[0].mxu0 %v888
        %v1033 = vpop.f32.mrb[0].mxu0
        %v1034 = vadd.f32 0.0, %v1033
        %v1035 = vpop.f32.mrb[0].mxu0
        %v1036 = vpop.f32.mrb[0].mxu0
        %v1037 = vadd.f32 0.0, %v1036
        %v1038 = vpop.f32.mrb[0].mxu0
        %1039 = vmatprep.mubr.bf16.mxu0 0
        %1040 = vmatmul.mubr.bf16.gmra.mrb[0].mxu0 %v891
        %v1041 = vpop.f32.mrb[0].mxu0
        %v1042 = vadd.f32 0.0, %v1041
        %v1043 = vpop.f32.mrb[0].mxu0
        %v1044 = vpop.f32.mrb[0].mxu0
        %v1045 = vadd.f32 0.0, %v1044
        %v1046 = vpop.f32.mrb[0].mxu0
        %1047 = vmatprep.mubr.bf16.mxu0 0
        %1048 = vmatmul.mubr.bf16.gmra.mrb[0].mxu0 %v894
        %v1049 = vpop.f32.mrb[0].mxu0
        %v1050 = vadd.f32 0.0, %v1049
        %v1051 = vpop.f32.mrb[0].mxu0
        %v1052 = vpop.f32.mrb[0].mxu0
        %v1053 = vadd.f32 0.0, %v1052
        %v1054 = vpop.f32.mrb[0].mxu0
        %1055 = vmatprep.mubr.bf16.mxu0 0
        %1056 = vmatmul.mubr.bf16.gmra.mrb[0].mxu0 %v897
        %v1057 = vpop.f32.mrb[0].mxu0
        %v1058 = vadd.f32 0.0, %v1057
        %v1059 = vpop.f32.mrb[0].mxu0
        %v1060 = vpop.f32.mrb[0].mxu0
        %v1061 = vadd.f32 0.0, %v1060
        %v1062 = vpop.f32.mrb[0].mxu0
        %1063 = vdwg.mxu0
        %v1096 = vunpack.c.l.b16 %v358
        %v1097 = vunpack.c.l.b16 %v359
        %v1098 = vunpack.c.l.b16 %v361
        %v1099 = vunpack.c.l.b16 %v362
        %v1100 = vunpack.c.l.b16 %v364
        %v1101 = vunpack.c.l.b16 %v365
        %v1102 = vunpack.c.l.b16 %v367
        %v1103 = vunpack.c.l.b16 %v368
        %v1104 = vunpack.c.l.b16 %v370
        %v1105 = vunpack.c.l.b16 %v371
        %v1106 = vunpack.c.l.b16 %v373
        %v1107 = vunpack.c.l.b16 %v374
        %v1108 = vunpack.c.l.b16 %v376
        %v1109 = vunpack.c.l.b16 %v377
        %v1110 = vunpack.c.l.b16 %v379
        %v1111 = vunpack.c.l.b16 %v380
        %v1112 = vunpack.c.l.b16 %v382
        %v1113 = vunpack.c.l.b16 %v383
        %v1114 = vunpack.c.l.b16 %v385
        %v1115 = vunpack.c.l.b16 %v386
        %v1116 = vunpack.c.l.b16 %v388
        %v1117 = vunpack.c.l.b16 %v389
        %v1118 = vunpack.c.l.b16 %v391
        %v1119 = vunpack.c.l.b16 %v392
        %v1120 = vunpack.c.l.b16 %v394
        %v1121 = vunpack.c.l.b16 %v395
        %v1122 = vunpack.c.l.b16 %v397
        %v1123 = vunpack.c.l.b16 %v398
        %v1124 = vunpack.c.l.b16 %v400
        %v1125 = vunpack.c.l.b16 %v401
        %v1126 = vunpack.c.l.b16 %v403
        %v1127 = vunpack.c.l.b16 %v404
        %v1128 = vpack.c.b16 %v1097, %v1096
        %v1129 = vpack.c.b16 %v1099, %v1098
        %v1130 = vpack.c.b16 %v1101, %v1100
        %v1131 = vpack.c.b16 %v1103, %v1102
        %v1132 = vpack.c.b16 %v1105, %v1104
        %v1133 = vpack.c.b16 %v1107, %v1106
        %v1134 = vpack.c.b16 %v1109, %v1108
        %v1135 = vpack.c.b16 %v1111, %v1110
        %v1136 = vpack.c.b16 %v1113, %v1112
        %v1137 = vpack.c.b16 %v1115, %v1114
        %v1138 = vpack.c.b16 %v1117, %v1116
        %v1139 = vpack.c.b16 %v1119, %v1118
        %v1140 = vpack.c.b16 %v1121, %v1120
        %v1141 = vpack.c.b16 %v1123, %v1122
        %v1142 = vpack.c.b16 %v1125, %v1124
        %v1143 = vpack.c.b16 %v1127, %v1126
        %v1145 = vsel %vm850, %v1128, 0
        %v1148 = vsel %vm850, %v1129, 0
        %v1151 = vsel %vm850, %v1130, 0
        %v1154 = vsel %vm850, %v1131, 0
        %v1157 = vsel %vm850, %v1132, 0
        %v1160 = vsel %vm850, %v1133, 0
        %v1163 = vsel %vm850, %v1134, 0
        %v1166 = vsel %vm850, %v1135, 0
        %v1169 = vsel %vm850, %v1136, 0
        %v1172 = vsel %vm850, %v1137, 0
        %v1175 = vsel %vm850, %v1138, 0
        %v1178 = vsel %vm850, %v1139, 0
        %v1181 = vsel %vm850, %v1140, 0
        %v1184 = vsel %vm850, %v1141, 0
        %v1187 = vsel %vm850, %v1142, 0
        %v1190 = vsel %vm850, %v1143, 0
        %v1193 = vsel %vm899, %v412, 0
        %1195 = vmatprep.subr.bf16.mxu0 0
        %1196 = vmatpush1.bf16.msra.mxu0 %v1193
        %1197 = vmatprep.subr.bf16.mxu0 0
        %1198 = vmatpush1.bf16.msra.mxu0 0
        %1199 = vmatprep.subr.bf16.mxu0 0
        %1200 = vmatpush1.bf16.msra.mxu0 0
        %1201 = vmatprep.subr.bf16.mxu0 0
        %1202 = vmatpush1.bf16.msra.mxu0 0
        %1203 = vmatprep.subr.bf16.mxu0 0
        %1204 = vmatpush1.bf16.msra.mxu0 0
        %1205 = vmatprep.subr.bf16.mxu0 0
        %1206 = vmatpush1.bf16.msra.mxu0 0
        %1207 = vmatprep.subr.bf16.mxu0 0
        %1208 = vmatpush1.bf16.msra.mxu0 0
        %1209 = vmatprep.subr.bf16.mxu0 0
        %1210 = vmatpush1.bf16.msra.mxu0 0
        %1211 = vmatprep.subr.bf16.mxu0 0
        %1212 = vmatpush1.bf16.msra.mxu0 0
        %1213 = vmatprep.subr.bf16.mxu0 0
        %1214 = vmatpush1.bf16.msra.mxu0 0
        %1215 = vmatprep.subr.bf16.mxu0 0
        %1216 = vmatpush1.bf16.msra.mxu0 0
        %1217 = vmatprep.subr.bf16.mxu0 0
        %1218 = vmatpush1.bf16.msra.mxu0 0
        %1219 = vmatprep.subr.bf16.mxu0 0
        %1220 = vmatpush1.bf16.msra.mxu0 0
        %1221 = vmatprep.subr.bf16.mxu0 0
        %1222 = vmatpush1.bf16.msra.mxu0 0
        %1223 = vmatprep.subr.bf16.mxu0 0
        %1224 = vmatpush1.bf16.msra.mxu0 0
        %1225 = vmatprep.subr.bf16.mxu0 0
        %1226 = vmatpush1.bf16.msra.mxu0 0
        %1227 = vmatprep.mubr.bf16.mxu0 0
        %1228 = vmatmul.mubr.bf16.gmra.mrb[0].mxu0 %v1145
        %v1229 = vpop.f32.mrb[0].mxu0
        %v1230 = vadd.f32 %v938, %v1229
        %v1231 = vpop.f32.mrb[0].mxu0
        %v1232 = vpop.f32.mrb[0].mxu0
        %v1233 = vadd.f32 %v941, %v1232
        %v1234 = vpop.f32.mrb[0].mxu0
        %1235 = vmatprep.mubr.bf16.mxu0 0
        %1236 = vmatmul.mubr.bf16.gmra.mrb[0].mxu0 %v1148
        %v1237 = vpop.f32.mrb[0].mxu0
        %v1238 = vadd.f32 %v946, %v1237
        %v1239 = vpop.f32.mrb[0].mxu0
        %v1240 = vpop.f32.mrb[0].mxu0
        %v1241 = vadd.f32 %v949, %v1240
        %v1242 = vpop.f32.mrb[0].mxu0
        %1243 = vmatprep.mubr.bf16.mxu0 0
        %1244 = vmatmul.mubr.bf16.gmra.mrb[0].mxu0 %v1151
        %v1245 = vpop.f32.mrb[0].mxu0
        %v1246 = vadd.f32 %v954, %v1245
        %v1247 = vpop.f32.mrb[0].mxu0
        %v1248 = vpop.f32.mrb[0].mxu0
        %v1249 = vadd.f32 %v957, %v1248
        %v1250 = vpop.f32.mrb[0].mxu0
        %1251 = vmatprep.mubr.bf16.mxu0 0
        %1252 = vmatmul.mubr.bf16.gmra.mrb[0].mxu0 %v1154
        %v1253 = vpop.f32.mrb[0].mxu0
        %v1254 = vadd.f32 %v962, %v1253
        %v1255 = vpop.f32.mrb[0].mxu0
        %v1256 = vpop.f32.mrb[0].mxu0
        %v1257 = vadd.f32 %v965, %v1256
        %v1258 = vpop.f32.mrb[0].mxu0
        %1259 = vmatprep.mubr.bf16.mxu0 0
        %1260 = vmatmul.mubr.bf16.gmra.mrb[0].mxu0 %v1157
        %v1261 = vpop.f32.mrb[0].mxu0
        %v1262 = vadd.f32 %v970, %v1261
        %v1263 = vpop.f32.mrb[0].mxu0
        %v1264 = vpop.f32.mrb[0].mxu0
        %v1265 = vadd.f32 %v973, %v1264
        %v1266 = vpop.f32.mrb[0].mxu0
        %1267 = vmatprep.mubr.bf16.mxu0 0
        %1268 = vmatmul.mubr.bf16.gmra.mrb[0].mxu0 %v1160
        %v1269 = vpop.f32.mrb[0].mxu0
        %v1270 = vadd.f32 %v978, %v1269
        %v1271 = vpop.f32.mrb[0].mxu0
        %v1272 = vpop.f32.mrb[0].mxu0
        %v1273 = vadd.f32 %v981, %v1272
        %v1274 = vpop.f32.mrb[0].mxu0
        %1275 = vmatprep.mubr.bf16.mxu0 0
        %1276 = vmatmul.mubr.bf16.gmra.mrb[0].mxu0 %v1163
        %v1277 = vpop.f32.mrb[0].mxu0
        %v1278 = vadd.f32 %v986, %v1277
        %v1279 = vpop.f32.mrb[0].mxu0
        %v1280 = vpop.f32.mrb[0].mxu0
        %v1281 = vadd.f32 %v989, %v1280
        %v1282 = vpop.f32.mrb[0].mxu0
        %1283 = vmatprep.mubr.bf16.mxu0 0
        %1284 = vmatmul.mubr.bf16.gmra.mrb[0].mxu0 %v1166
        %v1285 = vpop.f32.mrb[0].mxu0
        %v1286 = vadd.f32 %v994, %v1285
        %v1287 = vpop.f32.mrb[0].mxu0
        %v1288 = vpop.f32.mrb[0].mxu0
        %v1289 = vadd.f32 %v997, %v1288
        %v1290 = vpop.f32.mrb[0].mxu0
        %1291 = vmatprep.mubr.bf16.mxu0 0
        %1292 = vmatmul.mubr.bf16.gmra.mrb[0].mxu0 %v1169
        %v1293 = vpop.f32.mrb[0].mxu0
        %v1294 = vadd.f32 %v1002, %v1293
        %v1295 = vpop.f32.mrb[0].mxu0
        %v1296 = vpop.f32.mrb[0].mxu0
        %v1297 = vadd.f32 %v1005, %v1296
        %v1298 = vpop.f32.mrb[0].mxu0
        %1299 = vmatprep.mubr.bf16.mxu0 0
        %1300 = vmatmul.mubr.bf16.gmra.mrb[0].mxu0 %v1172
        %v1301 = vpop.f32.mrb[0].mxu0
        %v1302 = vadd.f32 %v1010, %v1301
        %v1303 = vpop.f32.mrb[0].mxu0
        %v1304 = vpop.f32.mrb[0].mxu0
        %v1305 = vadd.f32 %v1013, %v1304
        %v1306 = vpop.f32.mrb[0].mxu0
        %1307 = vmatprep.mubr.bf16.mxu0 0
        %1308 = vmatmul.mubr.bf16.gmra.mrb[0].mxu0 %v1175
        %v1309 = vpop.f32.mrb[0].mxu0
        %v1310 = vadd.f32 %v1018, %v1309
        %v1311 = vpop.f32.mrb[0].mxu0
        %v1312 = vpop.f32.mrb[0].mxu0
        %v1313 = vadd.f32 %v1021, %v1312
        %v1314 = vpop.f32.mrb[0].mxu0
        %1315 = vmatprep.mubr.bf16.mxu0 0
        %1316 = vmatmul.mubr.bf16.gmra.mrb[0].mxu0 %v1178
        %v1317 = vpop.f32.mrb[0].mxu0
        %v1318 = vadd.f32 %v1026, %v1317
        %v1319 = vpop.f32.mrb[0].mxu0
        %v1320 = vpop.f32.mrb[0].mxu0
        %v1321 = vadd.f32 %v1029, %v1320
        %v1322 = vpop.f32.mrb[0].mxu0
        %1323 = vmatprep.mubr.bf16.mxu0 0
        %1324 = vmatmul.mubr.bf16.gmra.mrb[0].mxu0 %v1181
        %v1325 = vpop.f32.mrb[0].mxu0
        %v1326 = vadd.f32 %v1034, %v1325
        %v1327 = vpop.f32.mrb[0].mxu0
        %v1328 = vpop.f32.mrb[0].mxu0
        %v1329 = vadd.f32 %v1037, %v1328
        %v1330 = vpop.f32.mrb[0].mxu0
        %1331 = vmatprep.mubr.bf16.mxu0 0
        %1332 = vmatmul.mubr.bf16.gmra.mrb[0].mxu0 %v1184
        %v1333 = vpop.f32.mrb[0].mxu0
        %v1334 = vadd.f32 %v1042, %v1333
        %v1335 = vpop.f32.mrb[0].mxu0
        %v1336 = vpop.f32.mrb[0].mxu0
        %v1337 = vadd.f32 %v1045, %v1336
        %v1338 = vpop.f32.mrb[0].mxu0
        %1339 = vmatprep.mubr.bf16.mxu0 0
        %1340 = vmatmul.mubr.bf16.gmra.mrb[0].mxu0 %v1187
        %v1341 = vpop.f32.mrb[0].mxu0
        %v1342 = vadd.f32 %v1050, %v1341
        %v1343 = vpop.f32.mrb[0].mxu0
        %v1344 = vpop.f32.mrb[0].mxu0
        %v1345 = vadd.f32 %v1053, %v1344
        %v1346 = vpop.f32.mrb[0].mxu0
        %1347 = vmatprep.mubr.bf16.mxu0 0
        %1348 = vmatmul.mubr.bf16.gmra.mrb[0].mxu0 %v1190
        %v1349 = vpop.f32.mrb[0].mxu0
        %v1350 = vadd.f32 %v1058, %v1349
        %v1351 = vpop.f32.mrb[0].mxu0
        %v1352 = vpop.f32.mrb[0].mxu0
        %v1353 = vadd.f32 %v1061, %v1352
        %v1354 = vpop.f32.mrb[0].mxu0
        %1355 = vdwg.mxu0
        %vm1372 = vcmask 1042432
        %vm1373 = vcmask 1046532
        %vm1374 = vmor %vm1372, %vm1373
        %v1375 = vrot.slane %v358, 5
        %v1376 = vrot.slane %v1375, 4
        %v1377 = vrot.slane %v359, 5
        %v1378 = vsel %vm1374, %v1376, %v1377
        %v1379 = vrot.slane %v1377, 4
        %v1380 = vrot.slane %v360, 5
        %v1381 = vsel %vm1374, %v1379, %v1380
        %v1382 = vrot.slane %v361, 5
        %v1383 = vrot.slane %v1382, 4
        %v1384 = vrot.slane %v362, 5
        %v1385 = vsel %vm1374, %v1383, %v1384
        %v1386 = vrot.slane %v1384, 4
        %v1387 = vrot.slane %v363, 5
        %v1388 = vsel %vm1374, %v1386, %v1387
        %v1389 = vrot.slane %v364, 5
        %v1390 = vrot.slane %v1389, 4
        %v1391 = vrot.slane %v365, 5
        %v1392 = vsel %vm1374, %v1390, %v1391
        %v1393 = vrot.slane %v1391, 4
        %v1394 = vrot.slane %v366, 5
        %v1395 = vsel %vm1374, %v1393, %v1394
        %v1396 = vrot.slane %v367, 5
        %v1397 = vrot.slane %v1396, 4
        %v1398 = vrot.slane %v368, 5
        %v1399 = vsel %vm1374, %v1397, %v1398
        %v1400 = vrot.slane %v1398, 4
        %v1401 = vrot.slane %v369, 5
        %v1402 = vsel %vm1374, %v1400, %v1401
        %v1403 = vrot.slane %v370, 5
        %v1404 = vrot.slane %v1403, 4
        %v1405 = vrot.slane %v371, 5
        %v1406 = vsel %vm1374, %v1404, %v1405
        %v1407 = vrot.slane %v1405, 4
        %v1408 = vrot.slane %v372, 5
        %v1409 = vsel %vm1374, %v1407, %v1408
        %v1410 = vrot.slane %v373, 5
        %v1411 = vrot.slane %v1410, 4
        %v1412 = vrot.slane %v374, 5
        %v1413 = vsel %vm1374, %v1411, %v1412
        %v1414 = vrot.slane %v1412, 4
        %v1415 = vrot.slane %v375, 5
        %v1416 = vsel %vm1374, %v1414, %v1415
        %v1417 = vrot.slane %v376, 5
        %v1418 = vrot.slane %v1417, 4
        %v1419 = vrot.slane %v377, 5
        %v1420 = vsel %vm1374, %v1418, %v1419
        %v1421 = vrot.slane %v1419, 4
        %v1422 = vrot.slane %v378, 5
        %v1423 = vsel %vm1374, %v1421, %v1422
        %v1424 = vrot.slane %v379, 5
        %v1425 = vrot.slane %v1424, 4
        %v1426 = vrot.slane %v380, 5
        %v1427 = vsel %vm1374, %v1425, %v1426
        %v1428 = vrot.slane %v1426, 4
        %v1429 = vrot.slane %v381, 5
        %v1430 = vsel %vm1374, %v1428, %v1429
        %v1431 = vrot.slane %v382, 5
        %v1432 = vrot.slane %v1431, 4
        %v1433 = vrot.slane %v383, 5
        %v1434 = vsel %vm1374, %v1432, %v1433
        %v1435 = vrot.slane %v1433, 4
        %v1436 = vrot.slane %v384, 5
        %v1437 = vsel %vm1374, %v1435, %v1436
        %v1438 = vrot.slane %v385, 5
        %v1439 = vrot.slane %v1438, 4
        %v1440 = vrot.slane %v386, 5
        %v1441 = vsel %vm1374, %v1439, %v1440
        %v1442 = vrot.slane %v1440, 4
        %v1443 = vrot.slane %v387, 5
        %v1444 = vsel %vm1374, %v1442, %v1443
        %v1445 = vrot.slane %v388, 5
        %v1446 = vrot.slane %v1445, 4
        %v1447 = vrot.slane %v389, 5
        %v1448 = vsel %vm1374, %v1446, %v1447
        %v1449 = vrot.slane %v1447, 4
        %v1450 = vrot.slane %v390, 5
        %v1451 = vsel %vm1374, %v1449, %v1450
        %v1452 = vrot.slane %v391, 5
        %v1453 = vrot.slane %v1452, 4
        %v1454 = vrot.slane %v392, 5
        %v1455 = vsel %vm1374, %v1453, %v1454
        %v1456 = vrot.slane %v1454, 4
        %v1457 = vrot.slane %v393, 5
        %v1458 = vsel %vm1374, %v1456, %v1457
        %v1459 = vrot.slane %v394, 5
        %v1460 = vrot.slane %v1459, 4
        %v1461 = vrot.slane %v395, 5
        %v1462 = vsel %vm1374, %v1460, %v1461
        %v1463 = vrot.slane %v1461, 4
        %v1464 = vrot.slane %v396, 5
        %v1465 = vsel %vm1374, %v1463, %v1464
        %v1466 = vrot.slane %v397, 5
        %v1467 = vrot.slane %v1466, 4
        %v1468 = vrot.slane %v398, 5
        %v1469 = vsel %vm1374, %v1467, %v1468
        %v1470 = vrot.slane %v1468, 4
        %v1471 = vrot.slane %v399, 5
        %v1472 = vsel %vm1374, %v1470, %v1471
        %v1473 = vrot.slane %v400, 5
        %v1474 = vrot.slane %v1473, 4
        %v1475 = vrot.slane %v401, 5
        %v1476 = vsel %vm1374, %v1474, %v1475
        %v1477 = vrot.slane %v1475, 4
        %v1478 = vrot.slane %v402, 5
        %v1479 = vsel %vm1374, %v1477, %v1478
        %v1480 = vrot.slane %v403, 5
        %v1481 = vrot.slane %v1480, 4
        %v1482 = vrot.slane %v404, 5
        %v1483 = vsel %vm1374, %v1481, %v1482
        %v1484 = vrot.slane %v1482, 4
        %v1485 = vrot.slane %v405, 5
        %v1486 = vsel %vm1374, %v1484, %v1485
        %s1487 = scalar_lea.vmem %s1, 8
        %v1488 = vld [vmem:[%s1487] sm:$0xf]
        %v1489 = vunpack.c.l.b16 %v1378
        %v1490 = vunpack.c.l.b16 %v1381
        %v1491 = vunpack.c.l.b16 %v1385
        %v1492 = vunpack.c.l.b16 %v1388
        %v1493 = vunpack.c.l.b16 %v1392
        %v1494 = vunpack.c.l.b16 %v1395
        %v1495 = vunpack.c.l.b16 %v1399
        %v1496 = vunpack.c.l.b16 %v1402
        %v1497 = vunpack.c.l.b16 %v1406
        %v1498 = vunpack.c.l.b16 %v1409
        %v1499 = vunpack.c.l.b16 %v1413
        %v1500 = vunpack.c.l.b16 %v1416
        %v1501 = vunpack.c.l.b16 %v1420
        %v1502 = vunpack.c.l.b16 %v1423
        %v1503 = vunpack.c.l.b16 %v1427
        %v1504 = vunpack.c.l.b16 %v1430
        %v1505 = vunpack.c.l.b16 %v1434
        %v1506 = vunpack.c.l.b16 %v1437
        %v1507 = vunpack.c.l.b16 %v1441
        %v1508 = vunpack.c.l.b16 %v1444
        %v1509 = vunpack.c.l.b16 %v1448
        %v1510 = vunpack.c.l.b16 %v1451
        %v1511 = vunpack.c.l.b16 %v1455
        %v1512 = vunpack.c.l.b16 %v1458
        %v1513 = vunpack.c.l.b16 %v1462
        %v1514 = vunpack.c.l.b16 %v1465
        %v1515 = vunpack.c.l.b16 %v1469
        %v1516 = vunpack.c.l.b16 %v1472
        %v1517 = vunpack.c.l.b16 %v1476
        %v1518 = vunpack.c.l.b16 %v1479
        %v1519 = vunpack.c.l.b16 %v1483
        %v1520 = vunpack.c.l.b16 %v1486
        %v1521 = vpack.c.b16 %v1490, %v1489
        %v1522 = vpack.c.b16 %v1492, %v1491
        %v1523 = vpack.c.b16 %v1494, %v1493
        %v1524 = vpack.c.b16 %v1496, %v1495
        %v1525 = vpack.c.b16 %v1498, %v1497
        %v1526 = vpack.c.b16 %v1500, %v1499
        %v1527 = vpack.c.b16 %v1502, %v1501
        %v1528 = vpack.c.b16 %v1504, %v1503
        %v1529 = vpack.c.b16 %v1506, %v1505
        %v1530 = vpack.c.b16 %v1508, %v1507
        %v1531 = vpack.c.b16 %v1510, %v1509
        %v1532 = vpack.c.b16 %v1512, %v1511
        %v1533 = vpack.c.b16 %v1514, %v1513
        %v1534 = vpack.c.b16 %v1516, %v1515
        %v1535 = vpack.c.b16 %v1518, %v1517
        %v1536 = vpack.c.b16 %v1520, %v1519
        %v1538 = vsel %vm850, %v1521, 0
        %v1541 = vsel %vm850, %v1522, 0
        %v1544 = vsel %vm850, %v1523, 0
        %v1547 = vsel %vm850, %v1524, 0
        %v1550 = vsel %vm850, %v1525, 0
        %v1553 = vsel %vm850, %v1526, 0
        %v1556 = vsel %vm850, %v1527, 0
        %v1559 = vsel %vm850, %v1528, 0
        %v1562 = vsel %vm850, %v1529, 0
        %v1565 = vsel %vm850, %v1530, 0
        %v1568 = vsel %vm850, %v1531, 0
        %v1571 = vsel %vm850, %v1532, 0
        %v1574 = vsel %vm850, %v1533, 0
        %v1577 = vsel %vm850, %v1534, 0
        %v1580 = vsel %vm850, %v1535, 0
        %v1583 = vsel %vm850, %v1536, 0
        %v1586 = vsel %vm899, %v1488, 0
        %1588 = vmatprep.subr.bf16.mxu0 0
        %1589 = vmatpush1.bf16.msra.mxu0 %v1586
        %1590 = vmatprep.subr.bf16.mxu0 0
        %1591 = vmatpush1.bf16.msra.mxu0 0
        %1592 = vmatprep.subr.bf16.mxu0 0
        %1593 = vmatpush1.bf16.msra.mxu0 0
        %1594 = vmatprep.subr.bf16.mxu0 0
        %1595 = vmatpush1.bf16.msra.mxu0 0
        %1596 = vmatprep.subr.bf16.mxu0 0
        %1597 = vmatpush1.bf16.msra.mxu0 0
        %1598 = vmatprep.subr.bf16.mxu0 0
        %1599 = vmatpush1.bf16.msra.mxu0 0
        %1600 = vmatprep.subr.bf16.mxu0 0
        %1601 = vmatpush1.bf16.msra.mxu0 0
        %1602 = vmatprep.subr.bf16.mxu0 0
        %1603 = vmatpush1.bf16.msra.mxu0 0
        %1604 = vmatprep.subr.bf16.mxu0 0
        %1605 = vmatpush1.bf16.msra.mxu0 0
        %1606 = vmatprep.subr.bf16.mxu0 0
        %1607 = vmatpush1.bf16.msra.mxu0 0
        %1608 = vmatprep.subr.bf16.mxu0 0
        %1609 = vmatpush1.bf16.msra.mxu0 0
        %1610 = vmatprep.subr.bf16.mxu0 0
        %1611 = vmatpush1.bf16.msra.mxu0 0
        %1612 = vmatprep.subr.bf16.mxu0 0
        %1613 = vmatpush1.bf16.msra.mxu0 0
        %1614 = vmatprep.subr.bf16.mxu0 0
        %1615 = vmatpush1.bf16.msra.mxu0 0
        %1616 = vmatprep.subr.bf16.mxu0 0
        %1617 = vmatpush1.bf16.msra.mxu0 0
        %1618 = vmatprep.subr.bf16.mxu0 0
        %1619 = vmatpush1.bf16.msra.mxu0 0
        %1620 = vmatprep.mubr.bf16.mxu0 0
        %1621 = vmatmul.mubr.bf16.gmra.mrb[0].mxu0 %v1538
        %v1622 = vpop.f32.mrb[0].mxu0
        %v1623 = vadd.f32 0.0, %v1622
        %v1624 = vpop.f32.mrb[0].mxu0
        %v1625 = vpop.f32.mrb[0].mxu0
        %v1626 = vadd.f32 0.0, %v1625
        %v1627 = vpop.f32.mrb[0].mxu0
        %1628 = vmatprep.mubr.bf16.mxu0 0
        %1629 = vmatmul.mubr.bf16.gmra.mrb[0].mxu0 %v1541
        %v1630 = vpop.f32.mrb[0].mxu0
        %v1631 = vadd.f32 0.0, %v1630
        %v1632 = vpop.f32.mrb[0].mxu0
        %v1633 = vpop.f32.mrb[0].mxu0
        %v1634 = vadd.f32 0.0, %v1633
        %v1635 = vpop.f32.mrb[0].mxu0
        %1636 = vmatprep.mubr.bf16.mxu0 0
        %1637 = vmatmul.mubr.bf16.gmra.mrb[0].mxu0 %v1544
        %v1638 = vpop.f32.mrb[0].mxu0
        %v1639 = vadd.f32 0.0, %v1638
        %v1640 = vpop.f32.mrb[0].mxu0
        %v1641 = vpop.f32.mrb[0].mxu0
        %v1642 = vadd.f32 0.0, %v1641
        %v1643 = vpop.f32.mrb[0].mxu0
        %1644 = vmatprep.mubr.bf16.mxu0 0
        %1645 = vmatmul.mubr.bf16.gmra.mrb[0].mxu0 %v1547
        %v1646 = vpop.f32.mrb[0].mxu0
        %v1647 = vadd.f32 0.0, %v1646
        %v1648 = vpop.f32.mrb[0].mxu0
        %v1649 = vpop.f32.mrb[0].mxu0
        %v1650 = vadd.f32 0.0, %v1649
        %v1651 = vpop.f32.mrb[0].mxu0
        %1652 = vmatprep.mubr.bf16.mxu0 0
        %1653 = vmatmul.mubr.bf16.gmra.mrb[0].mxu0 %v1550
        %v1654 = vpop.f32.mrb[0].mxu0
        %v1655 = vadd.f32 0.0, %v1654
        %v1656 = vpop.f32.mrb[0].mxu0
        %v1657 = vpop.f32.mrb[0].mxu0
        %v1658 = vadd.f32 0.0, %v1657
        %v1659 = vpop.f32.mrb[0].mxu0
        %1660 = vmatprep.mubr.bf16.mxu0 0
        %1661 = vmatmul.mubr.bf16.gmra.mrb[0].mxu0 %v1553
        %v1662 = vpop.f32.mrb[0].mxu0
        %v1663 = vadd.f32 0.0, %v1662
        %v1664 = vpop.f32.mrb[0].mxu0
        %v1665 = vpop.f32.mrb[0].mxu0
        %v1666 = vadd.f32 0.0, %v1665
        %v1667 = vpop.f32.mrb[0].mxu0
        %1668 = vmatprep.mubr.bf16.mxu0 0
        %1669 = vmatmul.mubr.bf16.gmra.mrb[0].mxu0 %v1556
        %v1670 = vpop.f32.mrb[0].mxu0
        %v1671 = vadd.f32 0.0, %v1670
        %v1672 = vpop.f32.mrb[0].mxu0
        %v1673 = vpop.f32.mrb[0].mxu0
        %v1674 = vadd.f32 0.0, %v1673
        %v1675 = vpop.f32.mrb[0].mxu0
        %1676 = vmatprep.mubr.bf16.mxu0 0
        %1677 = vmatmul.mubr.bf16.gmra.mrb[0].mxu0 %v1559
        %v1678 = vpop.f32.mrb[0].mxu0
        %v1679 = vadd.f32 0.0, %v1678
        %v1680 = vpop.f32.mrb[0].mxu0
        %v1681 = vpop.f32.mrb[0].mxu0
        %v1682 = vadd.f32 0.0, %v1681
        %v1683 = vpop.f32.mrb[0].mxu0
        %1684 = vmatprep.mubr.bf16.mxu0 0
        %1685 = vmatmul.mubr.bf16.gmra.mrb[0].mxu0 %v1562
        %v1686 = vpop.f32.mrb[0].mxu0
        %v1687 = vadd.f32 0.0, %v1686
        %v1688 = vpop.f32.mrb[0].mxu0
        %v1689 = vpop.f32.mrb[0].mxu0
        %v1690 = vadd.f32 0.0, %v1689
        %v1691 = vpop.f32.mrb[0].mxu0
        %1692 = vmatprep.mubr.bf16.mxu0 0
        %1693 = vmatmul.mubr.bf16.gmra.mrb[0].mxu0 %v1565
        %v1694 = vpop.f32.mrb[0].mxu0
        %v1695 = vadd.f32 0.0, %v1694
        %v1696 = vpop.f32.mrb[0].mxu0
        %v1697 = vpop.f32.mrb[0].mxu0
        %v1698 = vadd.f32 0.0, %v1697
        %v1699 = vpop.f32.mrb[0].mxu0
        %1700 = vmatprep.mubr.bf16.mxu0 0
        %1701 = vmatmul.mubr.bf16.gmra.mrb[0].mxu0 %v1568
        %v1702 = vpop.f32.mrb[0].mxu0
        %v1703 = vadd.f32 0.0, %v1702
        %v1704 = vpop.f32.mrb[0].mxu0
        %v1705 = vpop.f32.mrb[0].mxu0
        %v1706 = vadd.f32 0.0, %v1705
        %v1707 = vpop.f32.mrb[0].mxu0
        %1708 = vmatprep.mubr.bf16.mxu0 0
        %1709 = vmatmul.mubr.bf16.gmra.mrb[0].mxu0 %v1571
        %v1710 = vpop.f32.mrb[0].mxu0
        %v1711 = vadd.f32 0.0, %v1710
        %v1712 = vpop.f32.mrb[0].mxu0
        %v1713 = vpop.f32.mrb[0].mxu0
        %v1714 = vadd.f32 0.0, %v1713
        %v1715 = vpop.f32.mrb[0].mxu0
        %1716 = vmatprep.mubr.bf16.mxu0 0
        %1717 = vmatmul.mubr.bf16.gmra.mrb[0].mxu0 %v1574
        %v1718 = vpop.f32.mrb[0].mxu0
        %v1719 = vadd.f32 0.0, %v1718
        %v1720 = vpop.f32.mrb[0].mxu0
        %v1721 = vpop.f32.mrb[0].mxu0
        %v1722 = vadd.f32 0.0, %v1721
        %v1723 = vpop.f32.mrb[0].mxu0
        %1724 = vmatprep.mubr.bf16.mxu0 0
        %1725 = vmatmul.mubr.bf16.gmra.mrb[0].mxu0 %v1577
        %v1726 = vpop.f32.mrb[0].mxu0
        %v1727 = vadd.f32 0.0, %v1726
        %v1728 = vpop.f32.mrb[0].mxu0
        %v1729 = vpop.f32.mrb[0].mxu0
        %v1730 = vadd.f32 0.0, %v1729
        %v1731 = vpop.f32.mrb[0].mxu0
        %1732 = vmatprep.mubr.bf16.mxu0 0
        %1733 = vmatmul.mubr.bf16.gmra.mrb[0].mxu0 %v1580
        %v1734 = vpop.f32.mrb[0].mxu0
        %v1735 = vadd.f32 0.0, %v1734
        %v1736 = vpop.f32.mrb[0].mxu0
        %v1737 = vpop.f32.mrb[0].mxu0
        %v1738 = vadd.f32 0.0, %v1737
        %v1739 = vpop.f32.mrb[0].mxu0
        %1740 = vmatprep.mubr.bf16.mxu0 0
        %1741 = vmatmul.mubr.bf16.gmra.mrb[0].mxu0 %v1583
        %v1742 = vpop.f32.mrb[0].mxu0
        %v1743 = vadd.f32 0.0, %v1742
        %v1744 = vpop.f32.mrb[0].mxu0
        %v1745 = vpop.f32.mrb[0].mxu0
        %v1746 = vadd.f32 0.0, %v1745
        %v1747 = vpop.f32.mrb[0].mxu0
        %1748 = vdwg.mxu0
        %v1749 = vadd.f32 %v1230, %v1623
        %v1750 = vadd.f32 %v1233, %v1626
        %v1751 = vadd.f32 %v1238, %v1631
        %v1752 = vadd.f32 %v1241, %v1634
        %v1753 = vadd.f32 %v1246, %v1639
        %v1754 = vadd.f32 %v1249, %v1642
        %v1755 = vadd.f32 %v1254, %v1647
        %v1756 = vadd.f32 %v1257, %v1650
        %v1757 = vadd.f32 %v1262, %v1655
        %v1758 = vadd.f32 %v1265, %v1658
        %v1759 = vadd.f32 %v1270, %v1663
        %v1760 = vadd.f32 %v1273, %v1666
        %v1761 = vadd.f32 %v1278, %v1671
        %v1762 = vadd.f32 %v1281, %v1674
        %v1763 = vadd.f32 %v1286, %v1679
        %v1764 = vadd.f32 %v1289, %v1682
        %v1765 = vadd.f32 %v1294, %v1687
        %v1766 = vadd.f32 %v1297, %v1690
        %v1767 = vadd.f32 %v1302, %v1695
        %v1768 = vadd.f32 %v1305, %v1698
        %v1769 = vadd.f32 %v1310, %v1703
        %v1770 = vadd.f32 %v1313, %v1706
        %v1771 = vadd.f32 %v1318, %v1711
        %v1772 = vadd.f32 %v1321, %v1714
        %v1773 = vadd.f32 %v1326, %v1719
        %v1774 = vadd.f32 %v1329, %v1722
        %v1775 = vadd.f32 %v1334, %v1727
        %v1776 = vadd.f32 %v1337, %v1730
        %v1777 = vadd.f32 %v1342, %v1735
        %v1778 = vadd.f32 %v1345, %v1738
        %v1779 = vadd.f32 %v1350, %v1743
        %v1780 = vadd.f32 %v1353, %v1746
        %s1781 = scalar_lea.vmem %s1, 12
        %v1782 = vld [vmem:[%s1781] sm:$0xf]
        %v1785 = vunpack.c.l.b16 %v406
        %v1786 = vunpack.c.l.b16 %v407
        %v1787 = vpack.c.b16 %v1786, %v1785
        %v1789 = vsel %vm850, %v1787, 0
        %v1792 = vsel %vm899, %v1782, 0
        %1794 = vmatprep.subr.bf16.mxu0 0
        %1795 = vmatpush1.bf16.msra.mxu0 %v1792
        %1796 = vmatprep.subr.bf16.mxu0 0
        %1797 = vmatpush1.bf16.msra.mxu0 0
        %1798 = vmatprep.subr.bf16.mxu0 0
        %1799 = vmatpush1.bf16.msra.mxu0 0
        %1800 = vmatprep.subr.bf16.mxu0 0
        %1801 = vmatpush1.bf16.msra.mxu0 0
        %1802 = vmatprep.subr.bf16.mxu0 0
        %1803 = vmatpush1.bf16.msra.mxu0 0
        %1804 = vmatprep.subr.bf16.mxu0 0
        %1805 = vmatpush1.bf16.msra.mxu0 0
        %1806 = vmatprep.subr.bf16.mxu0 0
        %1807 = vmatpush1.bf16.msra.mxu0 0
        %1808 = vmatprep.subr.bf16.mxu0 0
        %1809 = vmatpush1.bf16.msra.mxu0 0
        %1810 = vmatprep.subr.bf16.mxu0 0
        %1811 = vmatpush1.bf16.msra.mxu0 0
        %1812 = vmatprep.subr.bf16.mxu0 0
        %1813 = vmatpush1.bf16.msra.mxu0 0
        %1814 = vmatprep.subr.bf16.mxu0 0
        %1815 = vmatpush1.bf16.msra.mxu0 0
        %1816 = vmatprep.subr.bf16.mxu0 0
        %1817 = vmatpush1.bf16.msra.mxu0 0
        %1818 = vmatprep.subr.bf16.mxu0 0
        %1819 = vmatpush1.bf16.msra.mxu0 0
        %1820 = vmatprep.subr.bf16.mxu0 0
        %1821 = vmatpush1.bf16.msra.mxu0 0
        %1822 = vmatprep.subr.bf16.mxu0 0
        %1823 = vmatpush1.bf16.msra.mxu0 0
        %1824 = vmatprep.subr.bf16.mxu0 0
        %1825 = vmatpush1.bf16.msra.mxu0 0
        %1826 = vmatprep.mubr.bf16.mxu0 0
        %1827 = vmatmul.mubr.bf16.gmra.mrb[0].mxu0 %v1148
        %v1828 = vpop.f32.mrb[0].mxu0
        %v1829 = vadd.f32 0.0, %v1828
        %v1830 = vpop.f32.mrb[0].mxu0
        %v1831 = vpop.f32.mrb[0].mxu0
        %v1832 = vadd.f32 0.0, %v1831
        %v1833 = vpop.f32.mrb[0].mxu0
        %1834 = vmatprep.mubr.bf16.mxu0 0
        %1835 = vmatmul.mubr.bf16.gmra.mrb[0].mxu0 %v1151
        %v1836 = vpop.f32.mrb[0].mxu0
        %v1837 = vadd.f32 0.0, %v1836
        %v1838 = vpop.f32.mrb[0].mxu0
        %v1839 = vpop.f32.mrb[0].mxu0
        %v1840 = vadd.f32 0.0, %v1839
        %v1841 = vpop.f32.mrb[0].mxu0
        %1842 = vmatprep.mubr.bf16.mxu0 0
        %1843 = vmatmul.mubr.bf16.gmra.mrb[0].mxu0 %v1154
        %v1844 = vpop.f32.mrb[0].mxu0
        %v1845 = vadd.f32 0.0, %v1844
        %v1846 = vpop.f32.mrb[0].mxu0
        %v1847 = vpop.f32.mrb[0].mxu0
        %v1848 = vadd.f32 0.0, %v1847
        %v1849 = vpop.f32.mrb[0].mxu0
        %1850 = vmatprep.mubr.bf16.mxu0 0
        %1851 = vmatmul.mubr.bf16.gmra.mrb[0].mxu0 %v1157
        %v1852 = vpop.f32.mrb[0].mxu0
        %v1853 = vadd.f32 0.0, %v1852
        %v1854 = vpop.f32.mrb[0].mxu0
        %v1855 = vpop.f32.mrb[0].mxu0
        %v1856 = vadd.f32 0.0, %v1855
        %v1857 = vpop.f32.mrb[0].mxu0
        %1858 = vmatprep.mubr.bf16.mxu0 0
        %1859 = vmatmul.mubr.bf16.gmra.mrb[0].mxu0 %v1160
        %v1860 = vpop.f32.mrb[0].mxu0
        %v1861 = vadd.f32 0.0, %v1860
        %v1862 = vpop.f32.mrb[0].mxu0
        %v1863 = vpop.f32.mrb[0].mxu0
        %v1864 = vadd.f32 0.0, %v1863
        %v1865 = vpop.f32.mrb[0].mxu0
        %1866 = vmatprep.mubr.bf16.mxu0 0
        %1867 = vmatmul.mubr.bf16.gmra.mrb[0].mxu0 %v1163
        %v1868 = vpop.f32.mrb[0].mxu0
        %v1869 = vadd.f32 0.0, %v1868
        %v1870 = vpop.f32.mrb[0].mxu0
        %v1871 = vpop.f32.mrb[0].mxu0
        %v1872 = vadd.f32 0.0, %v1871
        %v1873 = vpop.f32.mrb[0].mxu0
        %1874 = vmatprep.mubr.bf16.mxu0 0
        %1875 = vmatmul.mubr.bf16.gmra.mrb[0].mxu0 %v1166
        %v1876 = vpop.f32.mrb[0].mxu0
        %v1877 = vadd.f32 0.0, %v1876
        %v1878 = vpop.f32.mrb[0].mxu0
        %v1879 = vpop.f32.mrb[0].mxu0
        %v1880 = vadd.f32 0.0, %v1879
        %v1881 = vpop.f32.mrb[0].mxu0
        %1882 = vmatprep.mubr.bf16.mxu0 0
        %1883 = vmatmul.mubr.bf16.gmra.mrb[0].mxu0 %v1169
        %v1884 = vpop.f32.mrb[0].mxu0
        %v1885 = vadd.f32 0.0, %v1884
        %v1886 = vpop.f32.mrb[0].mxu0
        %v1887 = vpop.f32.mrb[0].mxu0
        %v1888 = vadd.f32 0.0, %v1887
        %v1889 = vpop.f32.mrb[0].mxu0
        %1890 = vmatprep.mubr.bf16.mxu0 0
        %1891 = vmatmul.mubr.bf16.gmra.mrb[0].mxu0 %v1172
        %v1892 = vpop.f32.mrb[0].mxu0
        %v1893 = vadd.f32 0.0, %v1892
        %v1894 = vpop.f32.mrb[0].mxu0
        %v1895 = vpop.f32.mrb[0].mxu0
        %v1896 = vadd.f32 0.0, %v1895
        %v1897 = vpop.f32.mrb[0].mxu0
        %1898 = vmatprep.mubr.bf16.mxu0 0
        %1899 = vmatmul.mubr.bf16.gmra.mrb[0].mxu0 %v1175
        %v1900 = vpop.f32.mrb[0].mxu0
        %v1901 = vadd.f32 0.0, %v1900
        %v1902 = vpop.f32.mrb[0].mxu0
        %v1903 = vpop.f32.mrb[0].mxu0
        %v1904 = vadd.f32 0.0, %v1903
        %v1905 = vpop.f32.mrb[0].mxu0
        %1906 = vmatprep.mubr.bf16.mxu0 0
        %1907 = vmatmul.mubr.bf16.gmra.mrb[0].mxu0 %v1178
        %v1908 = vpop.f32.mrb[0].mxu0
        %v1909 = vadd.f32 0.0, %v1908
        %v1910 = vpop.f32.mrb[0].mxu0
        %v1911 = vpop.f32.mrb[0].mxu0
        %v1912 = vadd.f32 0.0, %v1911
        %v1913 = vpop.f32.mrb[0].mxu0
        %1914 = vmatprep.mubr.bf16.mxu0 0
        %1915 = vmatmul.mubr.bf16.gmra.mrb[0].mxu0 %v1181
        %v1916 = vpop.f32.mrb[0].mxu0
        %v1917 = vadd.f32 0.0, %v1916
        %v1918 = vpop.f32.mrb[0].mxu0
        %v1919 = vpop.f32.mrb[0].mxu0
        %v1920 = vadd.f32 0.0, %v1919
        %v1921 = vpop.f32.mrb[0].mxu0
        %1922 = vmatprep.mubr.bf16.mxu0 0
        %1923 = vmatmul.mubr.bf16.gmra.mrb[0].mxu0 %v1184
        %v1924 = vpop.f32.mrb[0].mxu0
        %v1925 = vadd.f32 0.0, %v1924
        %v1926 = vpop.f32.mrb[0].mxu0
        %v1927 = vpop.f32.mrb[0].mxu0
        %v1928 = vadd.f32 0.0, %v1927
        %v1929 = vpop.f32.mrb[0].mxu0
        %1930 = vmatprep.mubr.bf16.mxu0 0
        %1931 = vmatmul.mubr.bf16.gmra.mrb[0].mxu0 %v1187
        %v1932 = vpop.f32.mrb[0].mxu0
        %v1933 = vadd.f32 0.0, %v1932
        %v1934 = vpop.f32.mrb[0].mxu0
        %v1935 = vpop.f32.mrb[0].mxu0
        %v1936 = vadd.f32 0.0, %v1935
        %v1937 = vpop.f32.mrb[0].mxu0
        %1938 = vmatprep.mubr.bf16.mxu0 0
        %1939 = vmatmul.mubr.bf16.gmra.mrb[0].mxu0 %v1190
        %v1940 = vpop.f32.mrb[0].mxu0
        %v1941 = vadd.f32 0.0, %v1940
        %v1942 = vpop.f32.mrb[0].mxu0
        %v1943 = vpop.f32.mrb[0].mxu0
        %v1944 = vadd.f32 0.0, %v1943
        %v1945 = vpop.f32.mrb[0].mxu0
        %1946 = vmatprep.mubr.bf16.mxu0 0
        %1947 = vmatmul.mubr.bf16.gmra.mrb[0].mxu0 %v1789
        %v1948 = vpop.f32.mrb[0].mxu0
        %v1949 = vadd.f32 0.0, %v1948
        %v1950 = vpop.f32.mrb[0].mxu0
        %v1951 = vpop.f32.mrb[0].mxu0
        %v1952 = vadd.f32 0.0, %v1951
        %v1953 = vpop.f32.mrb[0].mxu0
        %1954 = vdwg.mxu0
        %v1955 = vadd.f32 %v1749, %v1829
        %v1956 = vadd.f32 %v1750, %v1832
        %v1957 = vadd.f32 %v1751, %v1837
        %v1958 = vadd.f32 %v1752, %v1840
        %v1959 = vadd.f32 %v1753, %v1845
        %v1960 = vadd.f32 %v1754, %v1848
        %v1961 = vadd.f32 %v1755, %v1853
        %v1962 = vadd.f32 %v1756, %v1856
        %v1963 = vadd.f32 %v1757, %v1861
        %v1964 = vadd.f32 %v1758, %v1864
        %v1965 = vadd.f32 %v1759, %v1869
        %v1966 = vadd.f32 %v1760, %v1872
        %v1967 = vadd.f32 %v1761, %v1877
        %v1968 = vadd.f32 %v1762, %v1880
        %v1969 = vadd.f32 %v1763, %v1885
        %v1970 = vadd.f32 %v1764, %v1888
        %v1971 = vadd.f32 %v1765, %v1893
        %v1972 = vadd.f32 %v1766, %v1896
        %v1973 = vadd.f32 %v1767, %v1901
        %v1974 = vadd.f32 %v1768, %v1904
        %v1975 = vadd.f32 %v1769, %v1909
        %v1976 = vadd.f32 %v1770, %v1912
        %v1977 = vadd.f32 %v1771, %v1917
        %v1978 = vadd.f32 %v1772, %v1920
        %v1979 = vadd.f32 %v1773, %v1925
        %v1980 = vadd.f32 %v1774, %v1928
        %v1981 = vadd.f32 %v1775, %v1933
        %v1982 = vadd.f32 %v1776, %v1936
        %v1983 = vadd.f32 %v1777, %v1941
        %v1984 = vadd.f32 %v1778, %v1944
        %v1985 = vadd.f32 %v1779, %v1949
        %v1986 = vadd.f32 %v1780, %v1952
        %v1988 = vshrl.u32 %v406, 16
        %v1990 = vrot.slane %v1988, 4
        %v1991 = vshll.u32 %v406, 16
        %v1993 = vrot.slane %v1991, 5
        %v1994 = vor.u32 %v1990, %v1993
        %v1995 = vrot.slane %v1994, 4
        %v1997 = vshll.u32 %v407, 16
        %v1999 = vrot.slane %v1997, 5
        %v2000 = vsel %vm415, %v1995, %v1999
        %v2001 = vshrl.u32 %v407, 16
        %v2003 = vrot.slane %v2001, 4
        %v2004 = vor.u32 %v2003, %v1999
        %v2005 = vrot.slane %v2004, 4
        %v2007 = vshll.u32 %v408, 16
        %v2009 = vrot.slane %v2007, 5
        %v2010 = vsel %vm415, %v2005, %v2009
        %s2011 = scalar_lea.vmem %s1, 16
        %v2012 = vld [vmem:[%s2011] sm:$0xf]
        %v2013 = vunpack.c.l.b16 %v2000
        %v2014 = vunpack.c.l.b16 %v2010
        %v2015 = vpack.c.b16 %v2014, %v2013
        %v2017 = vsel %vm850, %v2015, 0
        %v2020 = vsel %vm899, %v2012, 0
        %2022 = vmatprep.subr.bf16.mxu0 0
        %2023 = vmatpush1.bf16.msra.mxu0 %v2020
        %2024 = vmatprep.subr.bf16.mxu0 0
        %2025 = vmatpush1.bf16.msra.mxu0 0
        %2026 = vmatprep.subr.bf16.mxu0 0
        %2027 = vmatpush1.bf16.msra.mxu0 0
        %2028 = vmatprep.subr.bf16.mxu0 0
        %2029 = vmatpush1.bf16.msra.mxu0 0
        %2030 = vmatprep.subr.bf16.mxu0 0
        %2031 = vmatpush1.bf16.msra.mxu0 0
        %2032 = vmatprep.subr.bf16.mxu0 0
        %2033 = vmatpush1.bf16.msra.mxu0 0
        %2034 = vmatprep.subr.bf16.mxu0 0
        %2035 = vmatpush1.bf16.msra.mxu0 0
        %2036 = vmatprep.subr.bf16.mxu0 0
        %2037 = vmatpush1.bf16.msra.mxu0 0
        %2038 = vmatprep.subr.bf16.mxu0 0
        %2039 = vmatpush1.bf16.msra.mxu0 0
        %2040 = vmatprep.subr.bf16.mxu0 0
        %2041 = vmatpush1.bf16.msra.mxu0 0
        %2042 = vmatprep.subr.bf16.mxu0 0
        %2043 = vmatpush1.bf16.msra.mxu0 0
        %2044 = vmatprep.subr.bf16.mxu0 0
        %2045 = vmatpush1.bf16.msra.mxu0 0
        %2046 = vmatprep.subr.bf16.mxu0 0
        %2047 = vmatpush1.bf16.msra.mxu0 0
        %2048 = vmatprep.subr.bf16.mxu0 0
        %2049 = vmatpush1.bf16.msra.mxu0 0
        %2050 = vmatprep.subr.bf16.mxu0 0
        %2051 = vmatpush1.bf16.msra.mxu0 0
        %2052 = vmatprep.subr.bf16.mxu0 0
        %2053 = vmatpush1.bf16.msra.mxu0 0
        %2054 = vmatprep.mubr.bf16.mxu0 0
        %2055 = vmatmul.mubr.bf16.gmra.mrb[0].mxu0 %v855
        %v2056 = vpop.f32.mrb[0].mxu0
        %v2057 = vadd.f32 0.0, %v2056
        %v2058 = vpop.f32.mrb[0].mxu0
        %v2059 = vpop.f32.mrb[0].mxu0
        %v2060 = vadd.f32 0.0, %v2059
        %v2061 = vpop.f32.mrb[0].mxu0
        %2062 = vmatprep.mubr.bf16.mxu0 0
        %2063 = vmatmul.mubr.bf16.gmra.mrb[0].mxu0 %v858
        %v2064 = vpop.f32.mrb[0].mxu0
        %v2065 = vadd.f32 0.0, %v2064
        %v2066 = vpop.f32.mrb[0].mxu0
        %v2067 = vpop.f32.mrb[0].mxu0
        %v2068 = vadd.f32 0.0, %v2067
        %v2069 = vpop.f32.mrb[0].mxu0
        %2070 = vmatprep.mubr.bf16.mxu0 0
        %2071 = vmatmul.mubr.bf16.gmra.mrb[0].mxu0 %v861
        %v2072 = vpop.f32.mrb[0].mxu0
        %v2073 = vadd.f32 0.0, %v2072
        %v2074 = vpop.f32.mrb[0].mxu0
        %v2075 = vpop.f32.mrb[0].mxu0
        %v2076 = vadd.f32 0.0, %v2075
        %v2077 = vpop.f32.mrb[0].mxu0
        %2078 = vmatprep.mubr.bf16.mxu0 0
        %2079 = vmatmul.mubr.bf16.gmra.mrb[0].mxu0 %v864
        %v2080 = vpop.f32.mrb[0].mxu0
        %v2081 = vadd.f32 0.0, %v2080
        %v2082 = vpop.f32.mrb[0].mxu0
        %v2083 = vpop.f32.mrb[0].mxu0
        %v2084 = vadd.f32 0.0, %v2083
        %v2085 = vpop.f32.mrb[0].mxu0
        %2086 = vmatprep.mubr.bf16.mxu0 0
        %2087 = vmatmul.mubr.bf16.gmra.mrb[0].mxu0 %v867
        %v2088 = vpop.f32.mrb[0].mxu0
        %v2089 = vadd.f32 0.0, %v2088
        %v2090 = vpop.f32.mrb[0].mxu0
        %v2091 = vpop.f32.mrb[0].mxu0
        %v2092 = vadd.f32 0.0, %v2091
        %v2093 = vpop.f32.mrb[0].mxu0
        %2094 = vmatprep.mubr.bf16.mxu0 0
        %2095 = vmatmul.mubr.bf16.gmra.mrb[0].mxu0 %v870
        %v2096 = vpop.f32.mrb[0].mxu0
        %v2097 = vadd.f32 0.0, %v2096
        %v2098 = vpop.f32.mrb[0].mxu0
        %v2099 = vpop.f32.mrb[0].mxu0
        %v2100 = vadd.f32 0.0, %v2099
        %v2101 = vpop.f32.mrb[0].mxu0
        %2102 = vmatprep.mubr.bf16.mxu0 0
        %2103 = vmatmul.mubr.bf16.gmra.mrb[0].mxu0 %v873
        %v2104 = vpop.f32.mrb[0].mxu0
        %v2105 = vadd.f32 0.0, %v2104
        %v2106 = vpop.f32.mrb[0].mxu0
        %v2107 = vpop.f32.mrb[0].mxu0
        %v2108 = vadd.f32 0.0, %v2107
        %v2109 = vpop.f32.mrb[0].mxu0
        %2110 = vmatprep.mubr.bf16.mxu0 0
        %2111 = vmatmul.mubr.bf16.gmra.mrb[0].mxu0 %v876
        %v2112 = vpop.f32.mrb[0].mxu0
        %v2113 = vadd.f32 0.0, %v2112
        %v2114 = vpop.f32.mrb[0].mxu0
        %v2115 = vpop.f32.mrb[0].mxu0
        %v2116 = vadd.f32 0.0, %v2115
        %v2117 = vpop.f32.mrb[0].mxu0
        %2118 = vmatprep.mubr.bf16.mxu0 0
        %2119 = vmatmul.mubr.bf16.gmra.mrb[0].mxu0 %v879
        %v2120 = vpop.f32.mrb[0].mxu0
        %v2121 = vadd.f32 0.0, %v2120
        %v2122 = vpop.f32.mrb[0].mxu0
        %v2123 = vpop.f32.mrb[0].mxu0
        %v2124 = vadd.f32 0.0, %v2123
        %v2125 = vpop.f32.mrb[0].mxu0
        %2126 = vmatprep.mubr.bf16.mxu0 0
        %2127 = vmatmul.mubr.bf16.gmra.mrb[0].mxu0 %v882
        %v2128 = vpop.f32.mrb[0].mxu0
        %v2129 = vadd.f32 0.0, %v2128
        %v2130 = vpop.f32.mrb[0].mxu0
        %v2131 = vpop.f32.mrb[0].mxu0
        %v2132 = vadd.f32 0.0, %v2131
        %v2133 = vpop.f32.mrb[0].mxu0
        %2134 = vmatprep.mubr.bf16.mxu0 0
        %2135 = vmatmul.mubr.bf16.gmra.mrb[0].mxu0 %v885
        %v2136 = vpop.f32.mrb[0].mxu0
        %v2137 = vadd.f32 0.0, %v2136
        %v2138 = vpop.f32.mrb[0].mxu0
        %v2139 = vpop.f32.mrb[0].mxu0
        %v2140 = vadd.f32 0.0, %v2139
        %v2141 = vpop.f32.mrb[0].mxu0
        %2142 = vmatprep.mubr.bf16.mxu0 0
        %2143 = vmatmul.mubr.bf16.gmra.mrb[0].mxu0 %v888
        %v2144 = vpop.f32.mrb[0].mxu0
        %v2145 = vadd.f32 0.0, %v2144
        %v2146 = vpop.f32.mrb[0].mxu0
        %v2147 = vpop.f32.mrb[0].mxu0
        %v2148 = vadd.f32 0.0, %v2147
        %v2149 = vpop.f32.mrb[0].mxu0
        %2150 = vmatprep.mubr.bf16.mxu0 0
        %2151 = vmatmul.mubr.bf16.gmra.mrb[0].mxu0 %v891
        %v2152 = vpop.f32.mrb[0].mxu0
        %v2153 = vadd.f32 0.0, %v2152
        %v2154 = vpop.f32.mrb[0].mxu0
        %v2155 = vpop.f32.mrb[0].mxu0
        %v2156 = vadd.f32 0.0, %v2155
        %v2157 = vpop.f32.mrb[0].mxu0
        %2158 = vmatprep.mubr.bf16.mxu0 0
        %2159 = vmatmul.mubr.bf16.gmra.mrb[0].mxu0 %v894
        %v2160 = vpop.f32.mrb[0].mxu0
        %v2161 = vadd.f32 0.0, %v2160
        %v2162 = vpop.f32.mrb[0].mxu0
        %v2163 = vpop.f32.mrb[0].mxu0
        %v2164 = vadd.f32 0.0, %v2163
        %v2165 = vpop.f32.mrb[0].mxu0
        %2166 = vmatprep.mubr.bf16.mxu0 0
        %2167 = vmatmul.mubr.bf16.gmra.mrb[0].mxu0 %v897
        %v2168 = vpop.f32.mrb[0].mxu0
        %v2169 = vadd.f32 0.0, %v2168
        %v2170 = vpop.f32.mrb[0].mxu0
        %v2171 = vpop.f32.mrb[0].mxu0
        %v2172 = vadd.f32 0.0, %v2171
        %v2173 = vpop.f32.mrb[0].mxu0
        %2174 = vmatprep.mubr.bf16.mxu0 0
        %2175 = vmatmul.mubr.bf16.gmra.mrb[0].mxu0 %v2017
        %v2176 = vpop.f32.mrb[0].mxu0
        %v2177 = vadd.f32 0.0, %v2176
        %v2178 = vpop.f32.mrb[0].mxu0
        %v2179 = vpop.f32.mrb[0].mxu0
        %v2180 = vadd.f32 0.0, %v2179
        %v2181 = vpop.f32.mrb[0].mxu0
        %2182 = vdwg.mxu0
        %v2183 = vadd.f32 %v1955, %v2057
        %v2184 = vadd.f32 %v1956, %v2060
        %v2185 = vadd.f32 %v1957, %v2065
        %v2186 = vadd.f32 %v1958, %v2068
        %v2187 = vadd.f32 %v1959, %v2073
        %v2188 = vadd.f32 %v1960, %v2076
        %v2189 = vadd.f32 %v1961, %v2081
        %v2190 = vadd.f32 %v1962, %v2084
        %v2191 = vadd.f32 %v1963, %v2089
        %v2192 = vadd.f32 %v1964, %v2092
        %v2193 = vadd.f32 %v1965, %v2097
        %v2194 = vadd.f32 %v1966, %v2100
        %v2195 = vadd.f32 %v1967, %v2105
        %v2196 = vadd.f32 %v1968, %v2108
        %v2197 = vadd.f32 %v1969, %v2113
        %v2198 = vadd.f32 %v1970, %v2116
        %v2199 = vadd.f32 %v1971, %v2121
        %v2200 = vadd.f32 %v1972, %v2124
        %v2201 = vadd.f32 %v1973, %v2129
        %v2202 = vadd.f32 %v1974, %v2132
        %v2203 = vadd.f32 %v1975, %v2137
        %v2204 = vadd.f32 %v1976, %v2140
        %v2205 = vadd.f32 %v1977, %v2145
        %v2206 = vadd.f32 %v1978, %v2148
        %v2207 = vadd.f32 %v1979, %v2153
        %v2208 = vadd.f32 %v1980, %v2156
        %v2209 = vadd.f32 %v1981, %v2161
        %v2210 = vadd.f32 %v1982, %v2164
        %v2211 = vadd.f32 %v1983, %v2169
        %v2212 = vadd.f32 %v1984, %v2172
        %v2213 = vadd.f32 %v1985, %v2177
        %v2214 = vadd.f32 %v1986, %v2180
        %v2216 = vrot.slane %v406, 5
        %v2217 = vrot.slane %v2216, 4
        %v2218 = vrot.slane %v407, 5
        %v2219 = vsel %vm1374, %v2217, %v2218
        %v2220 = vrot.slane %v2218, 4
        %v2221 = vrot.slane %v408, 5
        %v2222 = vsel %vm1374, %v2220, %v2221
        %s2223 = scalar_lea.vmem %s1, 20
        %v2224 = vld [vmem:[%s2223] sm:$0xf]
        %v2225 = vunpack.c.l.b16 %v2219
        %v2226 = vunpack.c.l.b16 %v2222
        %v2227 = vpack.c.b16 %v2226, %v2225
        %v2229 = vsel %vm850, %v2227, 0
        %v2232 = vsel %vm899, %v2224, 0
        %2234 = vmatprep.subr.bf16.mxu0 0
        %2235 = vmatpush1.bf16.msra.mxu0 %v2232
        %2236 = vmatprep.subr.bf16.mxu0 0
        %2237 = vmatpush1.bf16.msra.mxu0 0
        %2238 = vmatprep.subr.bf16.mxu0 0
        %2239 = vmatpush1.bf16.msra.mxu0 0
        %2240 = vmatprep.subr.bf16.mxu0 0
        %2241 = vmatpush1.bf16.msra.mxu0 0
        %2242 = vmatprep.subr.bf16.mxu0 0
        %2243 = vmatpush1.bf16.msra.mxu0 0
        %2244 = vmatprep.subr.bf16.mxu0 0
        %2245 = vmatpush1.bf16.msra.mxu0 0
        %2246 = vmatprep.subr.bf16.mxu0 0
        %2247 = vmatpush1.bf16.msra.mxu0 0
        %2248 = vmatprep.subr.bf16.mxu0 0
        %2249 = vmatpush1.bf16.msra.mxu0 0
        %2250 = vmatprep.subr.bf16.mxu0 0
        %2251 = vmatpush1.bf16.msra.mxu0 0
        %2252 = vmatprep.subr.bf16.mxu0 0
        %2253 = vmatpush1.bf16.msra.mxu0 0
        %2254 = vmatprep.subr.bf16.mxu0 0
        %2255 = vmatpush1.bf16.msra.mxu0 0
        %2256 = vmatprep.subr.bf16.mxu0 0
        %2257 = vmatpush1.bf16.msra.mxu0 0
        %2258 = vmatprep.subr.bf16.mxu0 0
        %2259 = vmatpush1.bf16.msra.mxu0 0
        %2260 = vmatprep.subr.bf16.mxu0 0
        %2261 = vmatpush1.bf16.msra.mxu0 0
        %2262 = vmatprep.subr.bf16.mxu0 0
        %2263 = vmatpush1.bf16.msra.mxu0 0
        %2264 = vmatprep.subr.bf16.mxu0 0
        %2265 = vmatpush1.bf16.msra.mxu0 0
        %2266 = vmatprep.mubr.bf16.mxu0 0
        %2267 = vmatmul.mubr.bf16.gmra.mrb[0].mxu0 %v1541
        %v2268 = vpop.f32.mrb[0].mxu0
        %v2269 = vadd.f32 0.0, %v2268
        %v2270 = vpop.f32.mrb[0].mxu0
        %v2271 = vpop.f32.mrb[0].mxu0
        %v2272 = vadd.f32 0.0, %v2271
        %v2273 = vpop.f32.mrb[0].mxu0
        %2274 = vmatprep.mubr.bf16.mxu0 0
        %2275 = vmatmul.mubr.bf16.gmra.mrb[0].mxu0 %v1544
        %v2276 = vpop.f32.mrb[0].mxu0
        %v2277 = vadd.f32 0.0, %v2276
        %v2278 = vpop.f32.mrb[0].mxu0
        %v2279 = vpop.f32.mrb[0].mxu0
        %v2280 = vadd.f32 0.0, %v2279
        %v2281 = vpop.f32.mrb[0].mxu0
        %2282 = vmatprep.mubr.bf16.mxu0 0
        %2283 = vmatmul.mubr.bf16.gmra.mrb[0].mxu0 %v1547
        %v2284 = vpop.f32.mrb[0].mxu0
        %v2285 = vadd.f32 0.0, %v2284
        %v2286 = vpop.f32.mrb[0].mxu0
        %v2287 = vpop.f32.mrb[0].mxu0
        %v2288 = vadd.f32 0.0, %v2287
        %v2289 = vpop.f32.mrb[0].mxu0
        %2290 = vmatprep.mubr.bf16.mxu0 0
        %2291 = vmatmul.mubr.bf16.gmra.mrb[0].mxu0 %v1550
        %v2292 = vpop.f32.mrb[0].mxu0
        %v2293 = vadd.f32 0.0, %v2292
        %v2294 = vpop.f32.mrb[0].mxu0
        %v2295 = vpop.f32.mrb[0].mxu0
        %v2296 = vadd.f32 0.0, %v2295
        %v2297 = vpop.f32.mrb[0].mxu0
        %2298 = vmatprep.mubr.bf16.mxu0 0
        %2299 = vmatmul.mubr.bf16.gmra.mrb[0].mxu0 %v1553
        %v2300 = vpop.f32.mrb[0].mxu0
        %v2301 = vadd.f32 0.0, %v2300
        %v2302 = vpop.f32.mrb[0].mxu0
        %v2303 = vpop.f32.mrb[0].mxu0
        %v2304 = vadd.f32 0.0, %v2303
        %v2305 = vpop.f32.mrb[0].mxu0
        %2306 = vmatprep.mubr.bf16.mxu0 0
        %2307 = vmatmul.mubr.bf16.gmra.mrb[0].mxu0 %v1556
        %v2308 = vpop.f32.mrb[0].mxu0
        %v2309 = vadd.f32 0.0, %v2308
        %v2310 = vpop.f32.mrb[0].mxu0
        %v2311 = vpop.f32.mrb[0].mxu0
        %v2312 = vadd.f32 0.0, %v2311
        %v2313 = vpop.f32.mrb[0].mxu0
        %2314 = vmatprep.mubr.bf16.mxu0 0
        %2315 = vmatmul.mubr.bf16.gmra.mrb[0].mxu0 %v1559
        %v2316 = vpop.f32.mrb[0].mxu0
        %v2317 = vadd.f32 0.0, %v2316
        %v2318 = vpop.f32.mrb[0].mxu0
        %v2319 = vpop.f32.mrb[0].mxu0
        %v2320 = vadd.f32 0.0, %v2319
        %v2321 = vpop.f32.mrb[0].mxu0
        %2322 = vmatprep.mubr.bf16.mxu0 0
        %2323 = vmatmul.mubr.bf16.gmra.mrb[0].mxu0 %v1562
        %v2324 = vpop.f32.mrb[0].mxu0
        %v2325 = vadd.f32 0.0, %v2324
        %v2326 = vpop.f32.mrb[0].mxu0
        %v2327 = vpop.f32.mrb[0].mxu0
        %v2328 = vadd.f32 0.0, %v2327
        %v2329 = vpop.f32.mrb[0].mxu0
        %2330 = vmatprep.mubr.bf16.mxu0 0
        %2331 = vmatmul.mubr.bf16.gmra.mrb[0].mxu0 %v1565
        %v2332 = vpop.f32.mrb[0].mxu0
        %v2333 = vadd.f32 0.0, %v2332
        %v2334 = vpop.f32.mrb[0].mxu0
        %v2335 = vpop.f32.mrb[0].mxu0
        %v2336 = vadd.f32 0.0, %v2335
        %v2337 = vpop.f32.mrb[0].mxu0
        %2338 = vmatprep.mubr.bf16.mxu0 0
        %2339 = vmatmul.mubr.bf16.gmra.mrb[0].mxu0 %v1568
        %v2340 = vpop.f32.mrb[0].mxu0
        %v2341 = vadd.f32 0.0, %v2340
        %v2342 = vpop.f32.mrb[0].mxu0
        %v2343 = vpop.f32.mrb[0].mxu0
        %v2344 = vadd.f32 0.0, %v2343
        %v2345 = vpop.f32.mrb[0].mxu0
        %2346 = vmatprep.mubr.bf16.mxu0 0
        %2347 = vmatmul.mubr.bf16.gmra.mrb[0].mxu0 %v1571
        %v2348 = vpop.f32.mrb[0].mxu0
        %v2349 = vadd.f32 0.0, %v2348
        %v2350 = vpop.f32.mrb[0].mxu0
        %v2351 = vpop.f32.mrb[0].mxu0
        %v2352 = vadd.f32 0.0, %v2351
        %v2353 = vpop.f32.mrb[0].mxu0
        %2354 = vmatprep.mubr.bf16.mxu0 0
        %2355 = vmatmul.mubr.bf16.gmra.mrb[0].mxu0 %v1574
        %v2356 = vpop.f32.mrb[0].mxu0
        %v2357 = vadd.f32 0.0, %v2356
        %v2358 = vpop.f32.mrb[0].mxu0
        %v2359 = vpop.f32.mrb[0].mxu0
        %v2360 = vadd.f32 0.0, %v2359
        %v2361 = vpop.f32.mrb[0].mxu0
        %2362 = vmatprep.mubr.bf16.mxu0 0
        %2363 = vmatmul.mubr.bf16.gmra.mrb[0].mxu0 %v1577
        %v2364 = vpop.f32.mrb[0].mxu0
        %v2365 = vadd.f32 0.0, %v2364
        %v2366 = vpop.f32.mrb[0].mxu0
        %v2367 = vpop.f32.mrb[0].mxu0
        %v2368 = vadd.f32 0.0, %v2367
        %v2369 = vpop.f32.mrb[0].mxu0
        %2370 = vmatprep.mubr.bf16.mxu0 0
        %2371 = vmatmul.mubr.bf16.gmra.mrb[0].mxu0 %v1580
        %v2372 = vpop.f32.mrb[0].mxu0
        %v2373 = vadd.f32 0.0, %v2372
        %v2374 = vpop.f32.mrb[0].mxu0
        %v2375 = vpop.f32.mrb[0].mxu0
        %v2376 = vadd.f32 0.0, %v2375
        %v2377 = vpop.f32.mrb[0].mxu0
        %2378 = vmatprep.mubr.bf16.mxu0 0
        %2379 = vmatmul.mubr.bf16.gmra.mrb[0].mxu0 %v1583
        %v2380 = vpop.f32.mrb[0].mxu0
        %v2381 = vadd.f32 0.0, %v2380
        %v2382 = vpop.f32.mrb[0].mxu0
        %v2383 = vpop.f32.mrb[0].mxu0
        %v2384 = vadd.f32 0.0, %v2383
        %v2385 = vpop.f32.mrb[0].mxu0
        %2386 = vmatprep.mubr.bf16.mxu0 0
        %2387 = vmatmul.mubr.bf16.gmra.mrb[0].mxu0 %v2229
        %v2388 = vpop.f32.mrb[0].mxu0
        %v2389 = vadd.f32 0.0, %v2388
        %v2390 = vpop.f32.mrb[0].mxu0
        %v2391 = vpop.f32.mrb[0].mxu0
        %v2392 = vadd.f32 0.0, %v2391
        %v2393 = vpop.f32.mrb[0].mxu0
        %2394 = vdwg.mxu0
        %v2395 = vadd.f32 %v2183, %v2269
        %v2396 = vadd.f32 %v2184, %v2272
        %v2397 = vadd.f32 %v2185, %v2277
        %v2398 = vadd.f32 %v2186, %v2280
        %v2399 = vadd.f32 %v2187, %v2285
        %v2400 = vadd.f32 %v2188, %v2288
        %v2401 = vadd.f32 %v2189, %v2293
        %v2402 = vadd.f32 %v2190, %v2296
        %v2403 = vadd.f32 %v2191, %v2301
        %v2404 = vadd.f32 %v2192, %v2304
        %v2405 = vadd.f32 %v2193, %v2309
        %v2406 = vadd.f32 %v2194, %v2312
        %v2407 = vadd.f32 %v2195, %v2317
        %v2408 = vadd.f32 %v2196, %v2320
        %v2409 = vadd.f32 %v2197, %v2325
        %v2410 = vadd.f32 %v2198, %v2328
        %v2411 = vadd.f32 %v2199, %v2333
        %v2412 = vadd.f32 %v2200, %v2336
        %v2413 = vadd.f32 %v2201, %v2341
        %v2414 = vadd.f32 %v2202, %v2344
        %v2415 = vadd.f32 %v2203, %v2349
        %v2416 = vadd.f32 %v2204, %v2352
        %v2417 = vadd.f32 %v2205, %v2357
        %v2418 = vadd.f32 %v2206, %v2360
        %v2419 = vadd.f32 %v2207, %v2365
        %v2420 = vadd.f32 %v2208, %v2368
        %v2421 = vadd.f32 %v2209, %v2373
        %v2422 = vadd.f32 %v2210, %v2376
        %v2423 = vadd.f32 %v2211, %v2381
        %v2424 = vadd.f32 %v2212, %v2384
        %v2425 = vadd.f32 %v2213, %v2389
        %v2426 = vadd.f32 %v2214, %v2392
        %s2427 = scalar_lea.vmem %s1, 24
        %v2428 = vld [vmem:[%s2427] sm:$0xf]
        %v2431 = vunpack.c.l.b16 %v409
        %v2432 = vunpack.c.l.b16 %v410
        %v2433 = vpack.c.b16 %v2432, %v2431
        %v2435 = vsel %vm850, %v2433, 0
        %v2438 = vsel %vm899, %v2428, 0
        %2440 = vmatprep.subr.bf16.mxu0 0
        %2441 = vmatpush1.bf16.msra.mxu0 %v2438
        %2442 = vmatprep.subr.bf16.mxu0 0
        %2443 = vmatpush1.bf16.msra.mxu0 0
        %2444 = vmatprep.subr.bf16.mxu0 0
        %2445 = vmatpush1.bf16.msra.mxu0 0
        %2446 = vmatprep.subr.bf16.mxu0 0
        %2447 = vmatpush1.bf16.msra.mxu0 0
        %2448 = vmatprep.subr.bf16.mxu0 0
        %2449 = vmatpush1.bf16.msra.mxu0 0
        %2450 = vmatprep.subr.bf16.mxu0 0
        %2451 = vmatpush1.bf16.msra.mxu0 0
        %2452 = vmatprep.subr.bf16.mxu0 0
        %2453 = vmatpush1.bf16.msra.mxu0 0
        %2454 = vmatprep.subr.bf16.mxu0 0
        %2455 = vmatpush1.bf16.msra.mxu0 0
        %2456 = vmatprep.subr.bf16.mxu0 0
        %2457 = vmatpush1.bf16.msra.mxu0 0
        %2458 = vmatprep.subr.bf16.mxu0 0
        %2459 = vmatpush1.bf16.msra.mxu0 0
        %2460 = vmatprep.subr.bf16.mxu0 0
        %2461 = vmatpush1.bf16.msra.mxu0 0
        %2462 = vmatprep.subr.bf16.mxu0 0
        %2463 = vmatpush1.bf16.msra.mxu0 0
        %2464 = vmatprep.subr.bf16.mxu0 0
        %2465 = vmatpush1.bf16.msra.mxu0 0
        %2466 = vmatprep.subr.bf16.mxu0 0
        %2467 = vmatpush1.bf16.msra.mxu0 0
        %2468 = vmatprep.subr.bf16.mxu0 0
        %2469 = vmatpush1.bf16.msra.mxu0 0
        %2470 = vmatprep.subr.bf16.mxu0 0
        %2471 = vmatpush1.bf16.msra.mxu0 0
        %2472 = vmatprep.mubr.bf16.mxu0 0
        %2473 = vmatmul.mubr.bf16.gmra.mrb[0].mxu0 %v1151
        %v2474 = vpop.f32.mrb[0].mxu0
        %v2475 = vadd.f32 0.0, %v2474
        %v2476 = vpop.f32.mrb[0].mxu0
        %v2477 = vpop.f32.mrb[0].mxu0
        %v2478 = vadd.f32 0.0, %v2477
        %v2479 = vpop.f32.mrb[0].mxu0
        %2480 = vmatprep.mubr.bf16.mxu0 0
        %2481 = vmatmul.mubr.bf16.gmra.mrb[0].mxu0 %v1154
        %v2482 = vpop.f32.mrb[0].mxu0
        %v2483 = vadd.f32 0.0, %v2482
        %v2484 = vpop.f32.mrb[0].mxu0
        %v2485 = vpop.f32.mrb[0].mxu0
        %v2486 = vadd.f32 0.0, %v2485
        %v2487 = vpop.f32.mrb[0].mxu0
        %2488 = vmatprep.mubr.bf16.mxu0 0
        %2489 = vmatmul.mubr.bf16.gmra.mrb[0].mxu0 %v1157
        %v2490 = vpop.f32.mrb[0].mxu0
        %v2491 = vadd.f32 0.0, %v2490
        %v2492 = vpop.f32.mrb[0].mxu0
        %v2493 = vpop.f32.mrb[0].mxu0
        %v2494 = vadd.f32 0.0, %v2493
        %v2495 = vpop.f32.mrb[0].mxu0
        %2496 = vmatprep.mubr.bf16.mxu0 0
        %2497 = vmatmul.mubr.bf16.gmra.mrb[0].mxu0 %v1160
        %v2498 = vpop.f32.mrb[0].mxu0
        %v2499 = vadd.f32 0.0, %v2498
        %v2500 = vpop.f32.mrb[0].mxu0
        %v2501 = vpop.f32.mrb[0].mxu0
        %v2502 = vadd.f32 0.0, %v2501
        %v2503 = vpop.f32.mrb[0].mxu0
        %2504 = vmatprep.mubr.bf16.mxu0 0
        %2505 = vmatmul.mubr.bf16.gmra.mrb[0].mxu0 %v1163
        %v2506 = vpop.f32.mrb[0].mxu0
        %v2507 = vadd.f32 0.0, %v2506
        %v2508 = vpop.f32.mrb[0].mxu0
        %v2509 = vpop.f32.mrb[0].mxu0
        %v2510 = vadd.f32 0.0, %v2509
        %v2511 = vpop.f32.mrb[0].mxu0
        %2512 = vmatprep.mubr.bf16.mxu0 0
        %2513 = vmatmul.mubr.bf16.gmra.mrb[0].mxu0 %v1166
        %v2514 = vpop.f32.mrb[0].mxu0
        %v2515 = vadd.f32 0.0, %v2514
        %v2516 = vpop.f32.mrb[0].mxu0
        %v2517 = vpop.f32.mrb[0].mxu0
        %v2518 = vadd.f32 0.0, %v2517
        %v2519 = vpop.f32.mrb[0].mxu0
        %2520 = vmatprep.mubr.bf16.mxu0 0
        %2521 = vmatmul.mubr.bf16.gmra.mrb[0].mxu0 %v1169
        %v2522 = vpop.f32.mrb[0].mxu0
        %v2523 = vadd.f32 0.0, %v2522
        %v2524 = vpop.f32.mrb[0].mxu0
        %v2525 = vpop.f32.mrb[0].mxu0
        %v2526 = vadd.f32 0.0, %v2525
        %v2527 = vpop.f32.mrb[0].mxu0
        %2528 = vmatprep.mubr.bf16.mxu0 0
        %2529 = vmatmul.mubr.bf16.gmra.mrb[0].mxu0 %v1172
        %v2530 = vpop.f32.mrb[0].mxu0
        %v2531 = vadd.f32 0.0, %v2530
        %v2532 = vpop.f32.mrb[0].mxu0
        %v2533 = vpop.f32.mrb[0].mxu0
        %v2534 = vadd.f32 0.0, %v2533
        %v2535 = vpop.f32.mrb[0].mxu0
        %2536 = vmatprep.mubr.bf16.mxu0 0
        %2537 = vmatmul.mubr.bf16.gmra.mrb[0].mxu0 %v1175
        %v2538 = vpop.f32.mrb[0].mxu0
        %v2539 = vadd.f32 0.0, %v2538
        %v2540 = vpop.f32.mrb[0].mxu0
        %v2541 = vpop.f32.mrb[0].mxu0
        %v2542 = vadd.f32 0.0, %v2541
        %v2543 = vpop.f32.mrb[0].mxu0
        %2544 = vmatprep.mubr.bf16.mxu0 0
        %2545 = vmatmul.mubr.bf16.gmra.mrb[0].mxu0 %v1178
        %v2546 = vpop.f32.mrb[0].mxu0
        %v2547 = vadd.f32 0.0, %v2546
        %v2548 = vpop.f32.mrb[0].mxu0
        %v2549 = vpop.f32.mrb[0].mxu0
        %v2550 = vadd.f32 0.0, %v2549
        %v2551 = vpop.f32.mrb[0].mxu0
        %2552 = vmatprep.mubr.bf16.mxu0 0
        %2553 = vmatmul.mubr.bf16.gmra.mrb[0].mxu0 %v1181
        %v2554 = vpop.f32.mrb[0].mxu0
        %v2555 = vadd.f32 0.0, %v2554
        %v2556 = vpop.f32.mrb[0].mxu0
        %v2557 = vpop.f32.mrb[0].mxu0
        %v2558 = vadd.f32 0.0, %v2557
        %v2559 = vpop.f32.mrb[0].mxu0
        %2560 = vmatprep.mubr.bf16.mxu0 0
        %2561 = vmatmul.mubr.bf16.gmra.mrb[0].mxu0 %v1184
        %v2562 = vpop.f32.mrb[0].mxu0
        %v2563 = vadd.f32 0.0, %v2562
        %v2564 = vpop.f32.mrb[0].mxu0
        %v2565 = vpop.f32.mrb[0].mxu0
        %v2566 = vadd.f32 0.0, %v2565
        %v2567 = vpop.f32.mrb[0].mxu0
        %2568 = vmatprep.mubr.bf16.mxu0 0
        %2569 = vmatmul.mubr.bf16.gmra.mrb[0].mxu0 %v1187
        %v2570 = vpop.f32.mrb[0].mxu0
        %v2571 = vadd.f32 0.0, %v2570
        %v2572 = vpop.f32.mrb[0].mxu0
        %v2573 = vpop.f32.mrb[0].mxu0
        %v2574 = vadd.f32 0.0, %v2573
        %v2575 = vpop.f32.mrb[0].mxu0
        %2576 = vmatprep.mubr.bf16.mxu0 0
        %2577 = vmatmul.mubr.bf16.gmra.mrb[0].mxu0 %v1190
        %v2578 = vpop.f32.mrb[0].mxu0
        %v2579 = vadd.f32 0.0, %v2578
        %v2580 = vpop.f32.mrb[0].mxu0
        %v2581 = vpop.f32.mrb[0].mxu0
        %v2582 = vadd.f32 0.0, %v2581
        %v2583 = vpop.f32.mrb[0].mxu0
        %2584 = vmatprep.mubr.bf16.mxu0 0
        %2585 = vmatmul.mubr.bf16.gmra.mrb[0].mxu0 %v1789
        %v2586 = vpop.f32.mrb[0].mxu0
        %v2587 = vadd.f32 0.0, %v2586
        %v2588 = vpop.f32.mrb[0].mxu0
        %v2589 = vpop.f32.mrb[0].mxu0
        %v2590 = vadd.f32 0.0, %v2589
        %v2591 = vpop.f32.mrb[0].mxu0
        %2592 = vmatprep.mubr.bf16.mxu0 0
        %2593 = vmatmul.mubr.bf16.gmra.mrb[0].mxu0 %v2435
        %v2594 = vpop.f32.mrb[0].mxu0
        %v2595 = vadd.f32 0.0, %v2594
        %v2596 = vpop.f32.mrb[0].mxu0
        %v2597 = vpop.f32.mrb[0].mxu0
        %v2598 = vadd.f32 0.0, %v2597
        %v2599 = vpop.f32.mrb[0].mxu0
        %2600 = vdwg.mxu0
        %v2601 = vadd.f32 %v2395, %v2475
        %v2602 = vadd.f32 %v2396, %v2478
        %v2603 = vadd.f32 %v2397, %v2483
        %v2604 = vadd.f32 %v2398, %v2486
        %v2605 = vadd.f32 %v2399, %v2491
        %v2606 = vadd.f32 %v2400, %v2494
        %v2607 = vadd.f32 %v2401, %v2499
        %v2608 = vadd.f32 %v2402, %v2502
        %v2609 = vadd.f32 %v2403, %v2507
        %v2610 = vadd.f32 %v2404, %v2510
        %v2611 = vadd.f32 %v2405, %v2515
        %v2612 = vadd.f32 %v2406, %v2518
        %v2613 = vadd.f32 %v2407, %v2523
        %v2614 = vadd.f32 %v2408, %v2526
        %v2615 = vadd.f32 %v2409, %v2531
        %v2616 = vadd.f32 %v2410, %v2534
        %v2617 = vadd.f32 %v2411, %v2539
        %v2618 = vadd.f32 %v2412, %v2542
        %v2619 = vadd.f32 %v2413, %v2547
        %v2620 = vadd.f32 %v2414, %v2550
        %v2621 = vadd.f32 %v2415, %v2555
        %v2622 = vadd.f32 %v2416, %v2558
        %v2623 = vadd.f32 %v2417, %v2563
        %v2624 = vadd.f32 %v2418, %v2566
        %v2625 = vadd.f32 %v2419, %v2571
        %v2626 = vadd.f32 %v2420, %v2574
        %v2627 = vadd.f32 %v2421, %v2579
        %v2628 = vadd.f32 %v2422, %v2582
        %v2629 = vadd.f32 %v2423, %v2587
        %v2630 = vadd.f32 %v2424, %v2590
        %v2631 = vadd.f32 %v2425, %v2595
        %v2632 = vadd.f32 %v2426, %v2598
        %v2634 = vshrl.u32 %v409, 16
        %v2636 = vrot.slane %v2634, 4
        %v2637 = vshll.u32 %v409, 16
        %v2639 = vrot.slane %v2637, 5
        %v2640 = vor.u32 %v2636, %v2639
        %v2641 = vrot.slane %v2640, 4
        %v2643 = vshll.u32 %v410, 16
        %v2645 = vrot.slane %v2643, 5
        %v2646 = vsel %vm415, %v2641, %v2645
        %v2647 = vshrl.u32 %v410, 16
        %v2649 = vrot.slane %v2647, 4
        %v2650 = vor.u32 %v2649, %v2645
        %v2651 = vrot.slane %v2650, 4
        %v2653 = vshll.u32 %v411, 16
        %v2655 = vrot.slane %v2653, 5
        %v2656 = vsel %vm415, %v2651, %v2655
        %s2657 = scalar_lea.vmem %s1, 28
        %v2658 = vld [vmem:[%s2657] sm:$0xf]
        %v2659 = vunpack.c.l.b16 %v2646
        %v2660 = vunpack.c.l.b16 %v2656
        %v2661 = vpack.c.b16 %v2660, %v2659
        %v2663 = vsel %vm850, %v2661, 0
        %v2666 = vsel %vm899, %v2658, 0
        %2668 = vmatprep.subr.bf16.mxu0 0
        %2669 = vmatpush1.bf16.msra.mxu0 %v2666
        %2670 = vmatprep.subr.bf16.mxu0 0
        %2671 = vmatpush1.bf16.msra.mxu0 0
        %2672 = vmatprep.subr.bf16.mxu0 0
        %2673 = vmatpush1.bf16.msra.mxu0 0
        %2674 = vmatprep.subr.bf16.mxu0 0
        %2675 = vmatpush1.bf16.msra.mxu0 0
        %2676 = vmatprep.subr.bf16.mxu0 0
        %2677 = vmatpush1.bf16.msra.mxu0 0
        %2678 = vmatprep.subr.bf16.mxu0 0
        %2679 = vmatpush1.bf16.msra.mxu0 0
        %2680 = vmatprep.subr.bf16.mxu0 0
        %2681 = vmatpush1.bf16.msra.mxu0 0
        %2682 = vmatprep.subr.bf16.mxu0 0
        %2683 = vmatpush1.bf16.msra.mxu0 0
        %2684 = vmatprep.subr.bf16.mxu0 0
        %2685 = vmatpush1.bf16.msra.mxu0 0
        %2686 = vmatprep.subr.bf16.mxu0 0
        %2687 = vmatpush1.bf16.msra.mxu0 0
        %2688 = vmatprep.subr.bf16.mxu0 0
        %2689 = vmatpush1.bf16.msra.mxu0 0
        %2690 = vmatprep.subr.bf16.mxu0 0
        %2691 = vmatpush1.bf16.msra.mxu0 0
        %2692 = vmatprep.subr.bf16.mxu0 0
        %2693 = vmatpush1.bf16.msra.mxu0 0
        %2694 = vmatprep.subr.bf16.mxu0 0
        %2695 = vmatpush1.bf16.msra.mxu0 0
        %2696 = vmatprep.subr.bf16.mxu0 0
        %2697 = vmatpush1.bf16.msra.mxu0 0
        %2698 = vmatprep.subr.bf16.mxu0 0
        %2699 = vmatpush1.bf16.msra.mxu0 0
        %2700 = vmatprep.mubr.bf16.mxu0 0
        %2701 = vmatmul.mubr.bf16.gmra.mrb[0].mxu0 %v858
        %v2702 = vpop.f32.mrb[0].mxu0
        %v2703 = vadd.f32 0.0, %v2702
        %v2704 = vpop.f32.mrb[0].mxu0
        %v2705 = vpop.f32.mrb[0].mxu0
        %v2706 = vadd.f32 0.0, %v2705
        %v2707 = vpop.f32.mrb[0].mxu0
        %2708 = vmatprep.mubr.bf16.mxu0 0
        %2709 = vmatmul.mubr.bf16.gmra.mrb[0].mxu0 %v861
        %v2710 = vpop.f32.mrb[0].mxu0
        %v2711 = vadd.f32 0.0, %v2710
        %v2712 = vpop.f32.mrb[0].mxu0
        %v2713 = vpop.f32.mrb[0].mxu0
        %v2714 = vadd.f32 0.0, %v2713
        %v2715 = vpop.f32.mrb[0].mxu0
        %2716 = vmatprep.mubr.bf16.mxu0 0
        %2717 = vmatmul.mubr.bf16.gmra.mrb[0].mxu0 %v864
        %v2718 = vpop.f32.mrb[0].mxu0
        %v2719 = vadd.f32 0.0, %v2718
        %v2720 = vpop.f32.mrb[0].mxu0
        %v2721 = vpop.f32.mrb[0].mxu0
        %v2722 = vadd.f32 0.0, %v2721
        %v2723 = vpop.f32.mrb[0].mxu0
        %2724 = vmatprep.mubr.bf16.mxu0 0
        %2725 = vmatmul.mubr.bf16.gmra.mrb[0].mxu0 %v867
        %v2726 = vpop.f32.mrb[0].mxu0
        %v2727 = vadd.f32 0.0, %v2726
        %v2728 = vpop.f32.mrb[0].mxu0
        %v2729 = vpop.f32.mrb[0].mxu0
        %v2730 = vadd.f32 0.0, %v2729
        %v2731 = vpop.f32.mrb[0].mxu0
        %2732 = vmatprep.mubr.bf16.mxu0 0
        %2733 = vmatmul.mubr.bf16.gmra.mrb[0].mxu0 %v870
        %v2734 = vpop.f32.mrb[0].mxu0
        %v2735 = vadd.f32 0.0, %v2734
        %v2736 = vpop.f32.mrb[0].mxu0
        %v2737 = vpop.f32.mrb[0].mxu0
        %v2738 = vadd.f32 0.0, %v2737
        %v2739 = vpop.f32.mrb[0].mxu0
        %2740 = vmatprep.mubr.bf16.mxu0 0
        %2741 = vmatmul.mubr.bf16.gmra.mrb[0].mxu0 %v873
        %v2742 = vpop.f32.mrb[0].mxu0
        %v2743 = vadd.f32 0.0, %v2742
        %v2744 = vpop.f32.mrb[0].mxu0
        %v2745 = vpop.f32.mrb[0].mxu0
        %v2746 = vadd.f32 0.0, %v2745
        %v2747 = vpop.f32.mrb[0].mxu0
        %2748 = vmatprep.mubr.bf16.mxu0 0
        %2749 = vmatmul.mubr.bf16.gmra.mrb[0].mxu0 %v876
        %v2750 = vpop.f32.mrb[0].mxu0
        %v2751 = vadd.f32 0.0, %v2750
        %v2752 = vpop.f32.mrb[0].mxu0
        %v2753 = vpop.f32.mrb[0].mxu0
        %v2754 = vadd.f32 0.0, %v2753
        %v2755 = vpop.f32.mrb[0].mxu0
        %2756 = vmatprep.mubr.bf16.mxu0 0
        %2757 = vmatmul.mubr.bf16.gmra.mrb[0].mxu0 %v879
        %v2758 = vpop.f32.mrb[0].mxu0
        %v2759 = vadd.f32 0.0, %v2758
        %v2760 = vpop.f32.mrb[0].mxu0
        %v2761 = vpop.f32.mrb[0].mxu0
        %v2762 = vadd.f32 0.0, %v2761
        %v2763 = vpop.f32.mrb[0].mxu0
        %2764 = vmatprep.mubr.bf16.mxu0 0
        %2765 = vmatmul.mubr.bf16.gmra.mrb[0].mxu0 %v882
        %v2766 = vpop.f32.mrb[0].mxu0
        %v2767 = vadd.f32 0.0, %v2766
        %v2768 = vpop.f32.mrb[0].mxu0
        %v2769 = vpop.f32.mrb[0].mxu0
        %v2770 = vadd.f32 0.0, %v2769
        %v2771 = vpop.f32.mrb[0].mxu0
        %2772 = vmatprep.mubr.bf16.mxu0 0
        %2773 = vmatmul.mubr.bf16.gmra.mrb[0].mxu0 %v885
        %v2774 = vpop.f32.mrb[0].mxu0
        %v2775 = vadd.f32 0.0, %v2774
        %v2776 = vpop.f32.mrb[0].mxu0
        %v2777 = vpop.f32.mrb[0].mxu0
        %v2778 = vadd.f32 0.0, %v2777
        %v2779 = vpop.f32.mrb[0].mxu0
        %2780 = vmatprep.mubr.bf16.mxu0 0
        %2781 = vmatmul.mubr.bf16.gmra.mrb[0].mxu0 %v888
        %v2782 = vpop.f32.mrb[0].mxu0
        %v2783 = vadd.f32 0.0, %v2782
        %v2784 = vpop.f32.mrb[0].mxu0
        %v2785 = vpop.f32.mrb[0].mxu0
        %v2786 = vadd.f32 0.0, %v2785
        %v2787 = vpop.f32.mrb[0].mxu0
        %2788 = vmatprep.mubr.bf16.mxu0 0
        %2789 = vmatmul.mubr.bf16.gmra.mrb[0].mxu0 %v891
        %v2790 = vpop.f32.mrb[0].mxu0
        %v2791 = vadd.f32 0.0, %v2790
        %v2792 = vpop.f32.mrb[0].mxu0
        %v2793 = vpop.f32.mrb[0].mxu0
        %v2794 = vadd.f32 0.0, %v2793
        %v2795 = vpop.f32.mrb[0].mxu0
        %2796 = vmatprep.mubr.bf16.mxu0 0
        %2797 = vmatmul.mubr.bf16.gmra.mrb[0].mxu0 %v894
        %v2798 = vpop.f32.mrb[0].mxu0
        %v2799 = vadd.f32 0.0, %v2798
        %v2800 = vpop.f32.mrb[0].mxu0
        %v2801 = vpop.f32.mrb[0].mxu0
        %v2802 = vadd.f32 0.0, %v2801
        %v2803 = vpop.f32.mrb[0].mxu0
        %2804 = vmatprep.mubr.bf16.mxu0 0
        %2805 = vmatmul.mubr.bf16.gmra.mrb[0].mxu0 %v897
        %v2806 = vpop.f32.mrb[0].mxu0
        %v2807 = vadd.f32 0.0, %v2806
        %v2808 = vpop.f32.mrb[0].mxu0
        %v2809 = vpop.f32.mrb[0].mxu0
        %v2810 = vadd.f32 0.0, %v2809
        %v2811 = vpop.f32.mrb[0].mxu0
        %2812 = vmatprep.mubr.bf16.mxu0 0
        %2813 = vmatmul.mubr.bf16.gmra.mrb[0].mxu0 %v2017
        %v2814 = vpop.f32.mrb[0].mxu0
        %v2815 = vadd.f32 0.0, %v2814
        %v2816 = vpop.f32.mrb[0].mxu0
        %v2817 = vpop.f32.mrb[0].mxu0
        %v2818 = vadd.f32 0.0, %v2817
        %v2819 = vpop.f32.mrb[0].mxu0
        %2820 = vmatprep.mubr.bf16.mxu0 0
        %2821 = vmatmul.mubr.bf16.gmra.mrb[0].mxu0 %v2663
        %v2822 = vpop.f32.mrb[0].mxu0
        %v2823 = vadd.f32 0.0, %v2822
        %v2824 = vpop.f32.mrb[0].mxu0
        %v2825 = vpop.f32.mrb[0].mxu0
        %v2826 = vadd.f32 0.0, %v2825
        %v2827 = vpop.f32.mrb[0].mxu0
        %2828 = vdwg.mxu0
        %v2829 = vadd.f32 %v2601, %v2703
        %v2830 = vadd.f32 %v2602, %v2706
        %v2831 = vadd.f32 %v2603, %v2711
        %v2832 = vadd.f32 %v2604, %v2714
        %v2833 = vadd.f32 %v2605, %v2719
        %v2834 = vadd.f32 %v2606, %v2722
        %v2835 = vadd.f32 %v2607, %v2727
        %v2836 = vadd.f32 %v2608, %v2730
        %v2837 = vadd.f32 %v2609, %v2735
        %v2838 = vadd.f32 %v2610, %v2738
        %v2839 = vadd.f32 %v2611, %v2743
        %v2840 = vadd.f32 %v2612, %v2746
        %v2841 = vadd.f32 %v2613, %v2751
        %v2842 = vadd.f32 %v2614, %v2754
        %v2843 = vadd.f32 %v2615, %v2759
        %v2844 = vadd.f32 %v2616, %v2762
        %v2845 = vadd.f32 %v2617, %v2767
        %v2846 = vadd.f32 %v2618, %v2770
        %v2847 = vadd.f32 %v2619, %v2775
        %v2848 = vadd.f32 %v2620, %v2778
        %v2849 = vadd.f32 %v2621, %v2783
        %v2850 = vadd.f32 %v2622, %v2786
        %v2851 = vadd.f32 %v2623, %v2791
        %v2852 = vadd.f32 %v2624, %v2794
        %v2853 = vadd.f32 %v2625, %v2799
        %v2854 = vadd.f32 %v2626, %v2802
        %v2855 = vadd.f32 %v2627, %v2807
        %v2856 = vadd.f32 %v2628, %v2810
        %v2857 = vadd.f32 %v2629, %v2815
        %v2858 = vadd.f32 %v2630, %v2818
        %v2859 = vadd.f32 %v2631, %v2823
        %v2860 = vadd.f32 %v2632, %v2826
        %v2862 = vrot.slane %v409, 5
        %v2863 = vrot.slane %v2862, 4
        %v2864 = vrot.slane %v410, 5
        %v2865 = vsel %vm1374, %v2863, %v2864
        %v2866 = vrot.slane %v2864, 4
        %v2867 = vrot.slane %v411, 5
        %v2868 = vsel %vm1374, %v2866, %v2867
        %s2869 = scalar_lea.vmem %s1, 32
        %v2870 = vld [vmem:[%s2869] sm:$0xf]
        %v2871 = vunpack.c.l.b16 %v2865
        %v2872 = vunpack.c.l.b16 %v2868
        %v2873 = vpack.c.b16 %v2872, %v2871
        %v2875 = vsel %vm850, %v2873, 0
        %v2878 = vsel %vm899, %v2870, 0
        %2880 = vmatprep.subr.bf16.mxu0 0
        %2881 = vmatpush1.bf16.msra.mxu0 %v2878
        %2882 = vmatprep.subr.bf16.mxu0 0
        %2883 = vmatpush1.bf16.msra.mxu0 0
        %2884 = vmatprep.subr.bf16.mxu0 0
        %2885 = vmatpush1.bf16.msra.mxu0 0
        %2886 = vmatprep.subr.bf16.mxu0 0
        %2887 = vmatpush1.bf16.msra.mxu0 0
        %2888 = vmatprep.subr.bf16.mxu0 0
        %2889 = vmatpush1.bf16.msra.mxu0 0
        %2890 = vmatprep.subr.bf16.mxu0 0
        %2891 = vmatpush1.bf16.msra.mxu0 0
        %2892 = vmatprep.subr.bf16.mxu0 0
        %2893 = vmatpush1.bf16.msra.mxu0 0
        %2894 = vmatprep.subr.bf16.mxu0 0
        %2895 = vmatpush1.bf16.msra.mxu0 0
        %2896 = vmatprep.subr.bf16.mxu0 0
        %2897 = vmatpush1.bf16.msra.mxu0 0
        %2898 = vmatprep.subr.bf16.mxu0 0
        %2899 = vmatpush1.bf16.msra.mxu0 0
        %2900 = vmatprep.subr.bf16.mxu0 0
        %2901 = vmatpush1.bf16.msra.mxu0 0
        %2902 = vmatprep.subr.bf16.mxu0 0
        %2903 = vmatpush1.bf16.msra.mxu0 0
        %2904 = vmatprep.subr.bf16.mxu0 0
        %2905 = vmatpush1.bf16.msra.mxu0 0
        %2906 = vmatprep.subr.bf16.mxu0 0
        %2907 = vmatpush1.bf16.msra.mxu0 0
        %2908 = vmatprep.subr.bf16.mxu0 0
        %2909 = vmatpush1.bf16.msra.mxu0 0
        %2910 = vmatprep.subr.bf16.mxu0 0
        %2911 = vmatpush1.bf16.msra.mxu0 0
        %2912 = vmatprep.mubr.bf16.mxu0 0
        %2913 = vmatmul.mubr.bf16.gmra.mrb[0].mxu0 %v1544
        %v2914 = vpop.f32.mrb[0].mxu0
        %v2915 = vadd.f32 0.0, %v2914
        %v2916 = vpop.f32.mrb[0].mxu0
        %v2917 = vpop.f32.mrb[0].mxu0
        %v2918 = vadd.f32 0.0, %v2917
        %v2919 = vpop.f32.mrb[0].mxu0
        %2920 = vmatprep.mubr.bf16.mxu0 0
        %2921 = vmatmul.mubr.bf16.gmra.mrb[0].mxu0 %v1547
        %v2922 = vpop.f32.mrb[0].mxu0
        %v2923 = vadd.f32 0.0, %v2922
        %v2924 = vpop.f32.mrb[0].mxu0
        %v2925 = vpop.f32.mrb[0].mxu0
        %v2926 = vadd.f32 0.0, %v2925
        %v2927 = vpop.f32.mrb[0].mxu0
        %2928 = vmatprep.mubr.bf16.mxu0 0
        %2929 = vmatmul.mubr.bf16.gmra.mrb[0].mxu0 %v1550
        %v2930 = vpop.f32.mrb[0].mxu0
        %v2931 = vadd.f32 0.0, %v2930
        %v2932 = vpop.f32.mrb[0].mxu0
        %v2933 = vpop.f32.mrb[0].mxu0
        %v2934 = vadd.f32 0.0, %v2933
        %v2935 = vpop.f32.mrb[0].mxu0
        %2936 = vmatprep.mubr.bf16.mxu0 0
        %2937 = vmatmul.mubr.bf16.gmra.mrb[0].mxu0 %v1553
        %v2938 = vpop.f32.mrb[0].mxu0
        %v2939 = vadd.f32 0.0, %v2938
        %v2940 = vpop.f32.mrb[0].mxu0
        %v2941 = vpop.f32.mrb[0].mxu0
        %v2942 = vadd.f32 0.0, %v2941
        %v2943 = vpop.f32.mrb[0].mxu0
        %2944 = vmatprep.mubr.bf16.mxu0 0
        %2945 = vmatmul.mubr.bf16.gmra.mrb[0].mxu0 %v1556
        %v2946 = vpop.f32.mrb[0].mxu0
        %v2947 = vadd.f32 0.0, %v2946
        %v2948 = vpop.f32.mrb[0].mxu0
        %v2949 = vpop.f32.mrb[0].mxu0
        %v2950 = vadd.f32 0.0, %v2949
        %v2951 = vpop.f32.mrb[0].mxu0
        %2952 = vmatprep.mubr.bf16.mxu0 0
        %2953 = vmatmul.mubr.bf16.gmra.mrb[0].mxu0 %v1559
        %v2954 = vpop.f32.mrb[0].mxu0
        %v2955 = vadd.f32 0.0, %v2954
        %v2956 = vpop.f32.mrb[0].mxu0
        %v2957 = vpop.f32.mrb[0].mxu0
        %v2958 = vadd.f32 0.0, %v2957
        %v2959 = vpop.f32.mrb[0].mxu0
        %2960 = vmatprep.mubr.bf16.mxu0 0
        %2961 = vmatmul.mubr.bf16.gmra.mrb[0].mxu0 %v1562
        %v2962 = vpop.f32.mrb[0].mxu0
        %v2963 = vadd.f32 0.0, %v2962
        %v2964 = vpop.f32.mrb[0].mxu0
        %v2965 = vpop.f32.mrb[0].mxu0
        %v2966 = vadd.f32 0.0, %v2965
        %v2967 = vpop.f32.mrb[0].mxu0
        %2968 = vmatprep.mubr.bf16.mxu0 0
        %2969 = vmatmul.mubr.bf16.gmra.mrb[0].mxu0 %v1565
        %v2970 = vpop.f32.mrb[0].mxu0
        %v2971 = vadd.f32 0.0, %v2970
        %v2972 = vpop.f32.mrb[0].mxu0
        %v2973 = vpop.f32.mrb[0].mxu0
        %v2974 = vadd.f32 0.0, %v2973
        %v2975 = vpop.f32.mrb[0].mxu0
        %2976 = vmatprep.mubr.bf16.mxu0 0
        %2977 = vmatmul.mubr.bf16.gmra.mrb[0].mxu0 %v1568
        %v2978 = vpop.f32.mrb[0].mxu0
        %v2979 = vadd.f32 0.0, %v2978
        %v2980 = vpop.f32.mrb[0].mxu0
        %v2981 = vpop.f32.mrb[0].mxu0
        %v2982 = vadd.f32 0.0, %v2981
        %v2983 = vpop.f32.mrb[0].mxu0
        %2984 = vmatprep.mubr.bf16.mxu0 0
        %2985 = vmatmul.mubr.bf16.gmra.mrb[0].mxu0 %v1571
        %v2986 = vpop.f32.mrb[0].mxu0
        %v2987 = vadd.f32 0.0, %v2986
        %v2988 = vpop.f32.mrb[0].mxu0
        %v2989 = vpop.f32.mrb[0].mxu0
        %v2990 = vadd.f32 0.0, %v2989
        %v2991 = vpop.f32.mrb[0].mxu0
        %2992 = vmatprep.mubr.bf16.mxu0 0
        %2993 = vmatmul.mubr.bf16.gmra.mrb[0].mxu0 %v1574
        %v2994 = vpop.f32.mrb[0].mxu0
        %v2995 = vadd.f32 0.0, %v2994
        %v2996 = vpop.f32.mrb[0].mxu0
        %v2997 = vpop.f32.mrb[0].mxu0
        %v2998 = vadd.f32 0.0, %v2997
        %v2999 = vpop.f32.mrb[0].mxu0
        %3000 = vmatprep.mubr.bf16.mxu0 0
        %3001 = vmatmul.mubr.bf16.gmra.mrb[0].mxu0 %v1577
        %v3002 = vpop.f32.mrb[0].mxu0
        %v3003 = vadd.f32 0.0, %v3002
        %v3004 = vpop.f32.mrb[0].mxu0
        %v3005 = vpop.f32.mrb[0].mxu0
        %v3006 = vadd.f32 0.0, %v3005
        %v3007 = vpop.f32.mrb[0].mxu0
        %3008 = vmatprep.mubr.bf16.mxu0 0
        %3009 = vmatmul.mubr.bf16.gmra.mrb[0].mxu0 %v1580
        %v3010 = vpop.f32.mrb[0].mxu0
        %v3011 = vadd.f32 0.0, %v3010
        %v3012 = vpop.f32.mrb[0].mxu0
        %v3013 = vpop.f32.mrb[0].mxu0
        %v3014 = vadd.f32 0.0, %v3013
        %v3015 = vpop.f32.mrb[0].mxu0
        %3016 = vmatprep.mubr.bf16.mxu0 0
        %3017 = vmatmul.mubr.bf16.gmra.mrb[0].mxu0 %v1583
        %v3018 = vpop.f32.mrb[0].mxu0
        %v3019 = vadd.f32 0.0, %v3018
        %v3020 = vpop.f32.mrb[0].mxu0
        %v3021 = vpop.f32.mrb[0].mxu0
        %v3022 = vadd.f32 0.0, %v3021
        %v3023 = vpop.f32.mrb[0].mxu0
        %3024 = vmatprep.mubr.bf16.mxu0 0
        %3025 = vmatmul.mubr.bf16.gmra.mrb[0].mxu0 %v2229
        %v3026 = vpop.f32.mrb[0].mxu0
        %v3027 = vadd.f32 0.0, %v3026
        %v3028 = vpop.f32.mrb[0].mxu0
        %v3029 = vpop.f32.mrb[0].mxu0
        %v3030 = vadd.f32 0.0, %v3029
        %v3031 = vpop.f32.mrb[0].mxu0
        %3032 = vmatprep.mubr.bf16.mxu0 0
        %3033 = vmatmul.mubr.bf16.gmra.mrb[0].mxu0 %v2875
        %v3034 = vpop.f32.mrb[0].mxu0
        %v3035 = vadd.f32 0.0, %v3034
        %v3036 = vpop.f32.mrb[0].mxu0
        %v3037 = vpop.f32.mrb[0].mxu0
        %v3038 = vadd.f32 0.0, %v3037
        %v3039 = vpop.f32.mrb[0].mxu0
        %3040 = vdwg.mxu0
        %v3041 = vadd.f32 %v2829, %v2915
        %v3042 = vadd.f32 %v2830, %v2918
        %v3043 = vadd.f32 %v2831, %v2923
        %v3044 = vadd.f32 %v2832, %v2926
        %v3045 = vadd.f32 %v2833, %v2931
        %v3046 = vadd.f32 %v2834, %v2934
        %v3047 = vadd.f32 %v2835, %v2939
        %v3048 = vadd.f32 %v2836, %v2942
        %v3049 = vadd.f32 %v2837, %v2947
        %v3050 = vadd.f32 %v2838, %v2950
        %v3051 = vadd.f32 %v2839, %v2955
        %v3052 = vadd.f32 %v2840, %v2958
        %v3053 = vadd.f32 %v2841, %v2963
        %v3054 = vadd.f32 %v2842, %v2966
        %v3055 = vadd.f32 %v2843, %v2971
        %v3056 = vadd.f32 %v2844, %v2974
        %v3057 = vadd.f32 %v2845, %v2979
        %v3058 = vadd.f32 %v2846, %v2982
        %v3059 = vadd.f32 %v2847, %v2987
        %v3060 = vadd.f32 %v2848, %v2990
        %v3061 = vadd.f32 %v2849, %v2995
        %v3062 = vadd.f32 %v2850, %v2998
        %v3063 = vadd.f32 %v2851, %v3003
        %v3064 = vadd.f32 %v2852, %v3006
        %v3065 = vadd.f32 %v2853, %v3011
        %v3066 = vadd.f32 %v2854, %v3014
        %v3067 = vadd.f32 %v2855, %v3019
        %v3068 = vadd.f32 %v2856, %v3022
        %v3069 = vadd.f32 %v2857, %v3027
        %v3070 = vadd.f32 %v2858, %v3030
        %v3071 = vadd.f32 %v2859, %v3035
        %v3072 = vadd.f32 %v2860, %v3038
        %v3073 = vld [vmem:[%s2] sm:$0x1]
        %v3075 = vlaneseq
        %v3076 = vshrl.u32 %v3075, 7
        %v3077 = vsub.s32 0, %v3076
        %v3078 = vrot.slane %v3073, %v3077
        %v3080 = vadd.f32 %v3041, %v3078
        %v3081 = vadd.f32 %v3042, %v3078
        %v3082 = vadd.f32 %v3043, %v3078
        %v3083 = vadd.f32 %v3044, %v3078
        %v3084 = vadd.f32 %v3045, %v3078
        %v3085 = vadd.f32 %v3046, %v3078
        %v3086 = vadd.f32 %v3047, %v3078
        %v3087 = vadd.f32 %v3048, %v3078
        %v3088 = vadd.f32 %v3049, %v3078
        %v3089 = vadd.f32 %v3050, %v3078
        %v3090 = vadd.f32 %v3051, %v3078
        %v3091 = vadd.f32 %v3052, %v3078
        %v3092 = vadd.f32 %v3053, %v3078
        %v3093 = vadd.f32 %v3054, %v3078
        %v3094 = vadd.f32 %v3055, %v3078
        %v3095 = vadd.f32 %v3056, %v3078
        %v3096 = vadd.f32 %v3057, %v3078
        %v3097 = vadd.f32 %v3058, %v3078
        %v3098 = vadd.f32 %v3059, %v3078
        %v3099 = vadd.f32 %v3060, %v3078
        %v3100 = vadd.f32 %v3061, %v3078
        %v3101 = vadd.f32 %v3062, %v3078
        %v3102 = vadd.f32 %v3063, %v3078
        %v3103 = vadd.f32 %v3064, %v3078
        %v3104 = vadd.f32 %v3065, %v3078
        %v3105 = vadd.f32 %v3066, %v3078
        %v3106 = vadd.f32 %v3067, %v3078
        %v3107 = vadd.f32 %v3068, %v3078
        %v3108 = vadd.f32 %v3069, %v3078
        %v3109 = vadd.f32 %v3070, %v3078
        %v3110 = vadd.f32 %v3071, %v3078
        %v3111 = vadd.f32 %v3072, %v3078
        %v3112 = vmax.f32 %v3080, 0.0
        %v3113 = vmax.f32 %v3081, 0.0
        %v3114 = vmax.f32 %v3082, 0.0
        %v3115 = vmax.f32 %v3083, 0.0
        %v3116 = vmax.f32 %v3084, 0.0
        %v3117 = vmax.f32 %v3085, 0.0
        %v3118 = vmax.f32 %v3086, 0.0
        %v3119 = vmax.f32 %v3087, 0.0
        %v3120 = vmax.f32 %v3088, 0.0
        %v3121 = vmax.f32 %v3089, 0.0
        %v3122 = vmax.f32 %v3090, 0.0
        %v3123 = vmax.f32 %v3091, 0.0
        %v3124 = vmax.f32 %v3092, 0.0
        %v3125 = vmax.f32 %v3093, 0.0
        %v3126 = vmax.f32 %v3094, 0.0
        %v3127 = vmax.f32 %v3095, 0.0
        %v3128 = vmax.f32 %v3096, 0.0
        %v3129 = vmax.f32 %v3097, 0.0
        %v3130 = vmax.f32 %v3098, 0.0
        %v3131 = vmax.f32 %v3099, 0.0
        %v3132 = vmax.f32 %v3100, 0.0
        %v3133 = vmax.f32 %v3101, 0.0
        %v3134 = vmax.f32 %v3102, 0.0
        %v3135 = vmax.f32 %v3103, 0.0
        %v3136 = vmax.f32 %v3104, 0.0
        %v3137 = vmax.f32 %v3105, 0.0
        %v3138 = vmax.f32 %v3106, 0.0
        %v3139 = vmax.f32 %v3107, 0.0
        %v3140 = vmax.f32 %v3108, 0.0
        %v3141 = vmax.f32 %v3109, 0.0
        %v3142 = vmax.f32 %v3110, 0.0
        %v3143 = vmax.f32 %v3111, 0.0
        %v3144 = vpack.c.bf16 %v3113, %v3112
        %v3145 = vpack.c.bf16 %v3115, %v3114
        %v3146 = vpack.c.bf16 %v3117, %v3116
        %v3147 = vpack.c.bf16 %v3119, %v3118
        %v3148 = vpack.c.bf16 %v3121, %v3120
        %v3149 = vpack.c.bf16 %v3123, %v3122
        %v3150 = vpack.c.bf16 %v3125, %v3124
        %v3151 = vpack.c.bf16 %v3127, %v3126
        %v3152 = vpack.c.bf16 %v3129, %v3128
        %v3153 = vpack.c.bf16 %v3131, %v3130
        %v3154 = vpack.c.bf16 %v3133, %v3132
        %v3155 = vpack.c.bf16 %v3135, %v3134
        %v3156 = vpack.c.bf16 %v3137, %v3136
        %v3157 = vpack.c.bf16 %v3139, %v3138
        %v3158 = vpack.c.bf16 %v3141, %v3140
        %v3159 = vpack.c.bf16 %v3143, %v3142
        %v3160 = vld [vmem:[#allocation2] sm:$0xff]
        %v3161 = vld [vmem:[#allocation2 + $0x8] sm:$0xff]
        %v3162 = vld [vmem:[#allocation2 + $0x10] sm:$0xff]
        %v3163 = vld [vmem:[#allocation2 + $0x18] sm:$0xff]
        %v3164 = vld [vmem:[#allocation2 + $0x20] sm:$0xff]
        %v3165 = vld [vmem:[#allocation2 + $0x28] sm:$0xff]
        %v3166 = vld [vmem:[#allocation2 + $0x30] sm:$0xff]
        %v3167 = vld [vmem:[#allocation2 + $0x38] sm:$0xff]
        %v3168 = vld [vmem:[#allocation2 + $0x40] sm:$0xff]
        %v3169 = vld [vmem:[#allocation2 + $0x48] sm:$0xff]
        %v3170 = vld [vmem:[#allocation2 + $0x50] sm:$0xff]
        %v3171 = vld [vmem:[#allocation2 + $0x58] sm:$0xff]
        %v3172 = vld [vmem:[#allocation2 + $0x60] sm:$0xff]
        %v3173 = vld [vmem:[#allocation2 + $0x68] sm:$0xff]
        %v3174 = vld [vmem:[#allocation2 + $0x70] sm:$0xff]
        %v3175 = vld [vmem:[#allocation2 + $0x78] sm:$0xff]
        %v3176 = vld [vmem:[%s4] sm:$0x3]
        %v3178 = vlaneseq
        %v3179 = vshrl.u32 %v3178, 7
        %v3180 = vsub.s32 0, %v3179
        %v3181 = vrot.slane %v3176, %v3180
        %v3182 = vlaneseq
        %v3183 = vshrl.u32 %v3182, 7
        %v3184 = vsub.s32 1, %v3183
        %v3185 = vrot.slane %v3176, %v3184
        %v3204 = vunpack.c.l.b16 %v3160
        %v3205 = vunpack.c.h.b16 %v3160
        %v3206 = vunpack.c.l.b16 %v3161
        %v3207 = vunpack.c.h.b16 %v3161
        %v3208 = vunpack.c.l.b16 %v3162
        %v3209 = vunpack.c.h.b16 %v3162
        %v3210 = vunpack.c.l.b16 %v3163
        %v3211 = vunpack.c.h.b16 %v3163
        %v3212 = vunpack.c.l.b16 %v3164
        %v3213 = vunpack.c.h.b16 %v3164
        %v3214 = vunpack.c.l.b16 %v3165
        %v3215 = vunpack.c.h.b16 %v3165
        %v3216 = vunpack.c.l.b16 %v3166
        %v3217 = vunpack.c.h.b16 %v3166
        %v3218 = vunpack.c.l.b16 %v3167
        %v3219 = vunpack.c.h.b16 %v3167
        %v3220 = vunpack.c.l.b16 %v3168
        %v3221 = vunpack.c.h.b16 %v3168
        %v3222 = vunpack.c.l.b16 %v3169
        %v3223 = vunpack.c.h.b16 %v3169
        %v3224 = vunpack.c.l.b16 %v3170
        %v3225 = vunpack.c.h.b16 %v3170
        %v3226 = vunpack.c.l.b16 %v3171
        %v3227 = vunpack.c.h.b16 %v3171
        %v3228 = vunpack.c.l.b16 %v3172
        %v3229 = vunpack.c.h.b16 %v3172
        %v3230 = vunpack.c.l.b16 %v3173
        %v3231 = vunpack.c.h.b16 %v3173
        %v3232 = vunpack.c.l.b16 %v3174
        %v3233 = vunpack.c.h.b16 %v3174
        %v3234 = vunpack.c.l.b16 %v3175
        %v3235 = vunpack.c.h.b16 %v3175
        %v3236 = vpack.c.b16 %v3206, %v3204
        %v3237 = vpack.c.b16 %v3207, %v3205
        %v3238 = vpack.c.b16 %v3210, %v3208
        %v3239 = vpack.c.b16 %v3211, %v3209
        %v3240 = vpack.c.b16 %v3214, %v3212
        %v3241 = vpack.c.b16 %v3215, %v3213
        %v3242 = vpack.c.b16 %v3218, %v3216
        %v3243 = vpack.c.b16 %v3219, %v3217
        %v3244 = vpack.c.b16 %v3222, %v3220
        %v3245 = vpack.c.b16 %v3223, %v3221
        %v3246 = vpack.c.b16 %v3226, %v3224
        %v3247 = vpack.c.b16 %v3227, %v3225
        %v3248 = vpack.c.b16 %v3230, %v3228
        %v3249 = vpack.c.b16 %v3231, %v3229
        %v3250 = vpack.c.b16 %v3234, %v3232
        %v3251 = vpack.c.b16 %v3235, %v3233
        %3268 = vmatprep.subr.bf16.mxu0 %v3237
        %3269 = vmatpush1.bf16.msra.mxu0 %v3236
        %3270 = vmatprep.subr.bf16.mxu0 %v3239
        %3271 = vmatpush1.bf16.msra.mxu0 %v3238
        %3272 = vmatprep.subr.bf16.mxu0 %v3241
        %3273 = vmatpush1.bf16.msra.mxu0 %v3240
        %3274 = vmatprep.subr.bf16.mxu0 %v3243
        %3275 = vmatpush1.bf16.msra.mxu0 %v3242
        %3276 = vmatprep.subr.bf16.mxu0 %v3245
        %3277 = vmatpush1.bf16.msra.mxu0 %v3244
        %3278 = vmatprep.subr.bf16.mxu0 %v3247
        %3279 = vmatpush1.bf16.msra.mxu0 %v3246
        %3280 = vmatprep.subr.bf16.mxu0 %v3249
        %3281 = vmatpush1.bf16.msra.mxu0 %v3248
        %3282 = vmatprep.subr.bf16.mxu0 %v3251
        %3283 = vmatpush1.bf16.msra.mxu0 %v3250
        %3284 = vmatprep.subr.bf16.mxu0 0
        %3285 = vmatpush1.bf16.msra.mxu0 0
        %3286 = vmatprep.subr.bf16.mxu0 0
        %3287 = vmatpush1.bf16.msra.mxu0 0
        %3288 = vmatprep.subr.bf16.mxu0 0
        %3289 = vmatpush1.bf16.msra.mxu0 0
        %3290 = vmatprep.subr.bf16.mxu0 0
        %3291 = vmatpush1.bf16.msra.mxu0 0
        %3292 = vmatprep.subr.bf16.mxu0 0
        %3293 = vmatpush1.bf16.msra.mxu0 0
        %3294 = vmatprep.subr.bf16.mxu0 0
        %3295 = vmatpush1.bf16.msra.mxu0 0
        %3296 = vmatprep.subr.bf16.mxu0 0
        %3297 = vmatpush1.bf16.msra.mxu0 0
        %3298 = vmatprep.subr.bf16.mxu0 0
        %3299 = vmatpush1.bf16.msra.mxu0 0
        %3300 = vmatprep.mubr.bf16.mxu0 0
        %3301 = vmatmul.mubr.bf16.gmra.mrb[0].mxu0 %v3144
        %v3302 = vpop.f32.mrb[0].mxu0
        %v3303 = vadd.f32 %v3181, %v3302
        %v3304 = vpop.f32.mrb[0].mxu0
        %v3305 = vadd.f32 %v3185, %v3304
        %v3306 = vpop.f32.mrb[0].mxu0
        %v3307 = vadd.f32 %v3181, %v3306
        %v3308 = vpop.f32.mrb[0].mxu0
        %v3309 = vadd.f32 %v3185, %v3308
        %3310 = vmatprep.mubr.bf16.mxu0 0
        %3311 = vmatmul.mubr.bf16.gmra.mrb[0].mxu0 %v3145
        %v3312 = vpop.f32.mrb[0].mxu0
        %v3313 = vadd.f32 %v3181, %v3312
        %v3314 = vpop.f32.mrb[0].mxu0
        %v3315 = vadd.f32 %v3185, %v3314
        %v3316 = vpop.f32.mrb[0].mxu0
        %v3317 = vadd.f32 %v3181, %v3316
        %v3318 = vpop.f32.mrb[0].mxu0
        %v3319 = vadd.f32 %v3185, %v3318
        %3320 = vmatprep.mubr.bf16.mxu0 0
        %3321 = vmatmul.mubr.bf16.gmra.mrb[0].mxu0 %v3146
        %v3322 = vpop.f32.mrb[0].mxu0
        %v3323 = vadd.f32 %v3181, %v3322
        %v3324 = vpop.f32.mrb[0].mxu0
        %v3325 = vadd.f32 %v3185, %v3324
        %v3326 = vpop.f32.mrb[0].mxu0
        %v3327 = vadd.f32 %v3181, %v3326
        %v3328 = vpop.f32.mrb[0].mxu0
        %v3329 = vadd.f32 %v3185, %v3328
        %3330 = vmatprep.mubr.bf16.mxu0 0
        %3331 = vmatmul.mubr.bf16.gmra.mrb[0].mxu0 %v3147
        %v3332 = vpop.f32.mrb[0].mxu0
        %v3333 = vadd.f32 %v3181, %v3332
        %v3334 = vpop.f32.mrb[0].mxu0
        %v3335 = vadd.f32 %v3185, %v3334
        %v3336 = vpop.f32.mrb[0].mxu0
        %v3337 = vadd.f32 %v3181, %v3336
        %v3338 = vpop.f32.mrb[0].mxu0
        %v3339 = vadd.f32 %v3185, %v3338
        %3340 = vmatprep.mubr.bf16.mxu0 0
        %3341 = vmatmul.mubr.bf16.gmra.mrb[0].mxu0 %v3148
        %v3342 = vpop.f32.mrb[0].mxu0
        %v3343 = vadd.f32 %v3181, %v3342
        %v3344 = vpop.f32.mrb[0].mxu0
        %v3345 = vadd.f32 %v3185, %v3344
        %v3346 = vpop.f32.mrb[0].mxu0
        %v3347 = vadd.f32 %v3181, %v3346
        %v3348 = vpop.f32.mrb[0].mxu0
        %v3349 = vadd.f32 %v3185, %v3348
        %3350 = vmatprep.mubr.bf16.mxu0 0
        %3351 = vmatmul.mubr.bf16.gmra.mrb[0].mxu0 %v3149
        %v3352 = vpop.f32.mrb[0].mxu0
        %v3353 = vadd.f32 %v3181, %v3352
        %v3354 = vpop.f32.mrb[0].mxu0
        %v3355 = vadd.f32 %v3185, %v3354
        %v3356 = vpop.f32.mrb[0].mxu0
        %v3357 = vadd.f32 %v3181, %v3356
        %v3358 = vpop.f32.mrb[0].mxu0
        %v3359 = vadd.f32 %v3185, %v3358
        %3360 = vmatprep.mubr.bf16.mxu0 0
        %3361 = vmatmul.mubr.bf16.gmra.mrb[0].mxu0 %v3150
        %v3362 = vpop.f32.mrb[0].mxu0
        %v3363 = vadd.f32 %v3181, %v3362
        %v3364 = vpop.f32.mrb[0].mxu0
        %v3365 = vadd.f32 %v3185, %v3364
        %v3366 = vpop.f32.mrb[0].mxu0
        %v3367 = vadd.f32 %v3181, %v3366
        %v3368 = vpop.f32.mrb[0].mxu0
        %v3369 = vadd.f32 %v3185, %v3368
        %3370 = vmatprep.mubr.bf16.mxu0 0
        %3371 = vmatmul.mubr.bf16.gmra.mrb[0].mxu0 %v3151
        %v3372 = vpop.f32.mrb[0].mxu0
        %v3373 = vadd.f32 %v3181, %v3372
        %v3374 = vpop.f32.mrb[0].mxu0
        %v3375 = vadd.f32 %v3185, %v3374
        %v3376 = vpop.f32.mrb[0].mxu0
        %v3377 = vadd.f32 %v3181, %v3376
        %v3378 = vpop.f32.mrb[0].mxu0
        %v3379 = vadd.f32 %v3185, %v3378
        %3380 = vmatprep.mubr.bf16.mxu0 0
        %3381 = vmatmul.mubr.bf16.gmra.mrb[0].mxu0 %v3152
        %v3382 = vpop.f32.mrb[0].mxu0
        %v3383 = vadd.f32 %v3181, %v3382
        %v3384 = vpop.f32.mrb[0].mxu0
        %v3385 = vadd.f32 %v3185, %v3384
        %v3386 = vpop.f32.mrb[0].mxu0
        %v3387 = vadd.f32 %v3181, %v3386
        %v3388 = vpop.f32.mrb[0].mxu0
        %v3389 = vadd.f32 %v3185, %v3388
        %3390 = vmatprep.mubr.bf16.mxu0 0
        %3391 = vmatmul.mubr.bf16.gmra.mrb[0].mxu0 %v3153
        %v3392 = vpop.f32.mrb[0].mxu0
        %v3393 = vadd.f32 %v3181, %v3392
        %v3394 = vpop.f32.mrb[0].mxu0
        %v3395 = vadd.f32 %v3185, %v3394
        %v3396 = vpop.f32.mrb[0].mxu0
        %v3397 = vadd.f32 %v3181, %v3396
        %v3398 = vpop.f32.mrb[0].mxu0
        %v3399 = vadd.f32 %v3185, %v3398
        %3400 = vmatprep.mubr.bf16.mxu0 0
        %3401 = vmatmul.mubr.bf16.gmra.mrb[0].mxu0 %v3154
        %v3402 = vpop.f32.mrb[0].mxu0
        %v3403 = vadd.f32 %v3181, %v3402
        %v3404 = vpop.f32.mrb[0].mxu0
        %v3405 = vadd.f32 %v3185, %v3404
        %v3406 = vpop.f32.mrb[0].mxu0
        %v3407 = vadd.f32 %v3181, %v3406
        %v3408 = vpop.f32.mrb[0].mxu0
        %v3409 = vadd.f32 %v3185, %v3408
        %3410 = vmatprep.mubr.bf16.mxu0 0
        %3411 = vmatmul.mubr.bf16.gmra.mrb[0].mxu0 %v3155
        %v3412 = vpop.f32.mrb[0].mxu0
        %v3413 = vadd.f32 %v3181, %v3412
        %v3414 = vpop.f32.mrb[0].mxu0
        %v3415 = vadd.f32 %v3185, %v3414
        %v3416 = vpop.f32.mrb[0].mxu0
        %v3417 = vadd.f32 %v3181, %v3416
        %v3418 = vpop.f32.mrb[0].mxu0
        %v3419 = vadd.f32 %v3185, %v3418
        %3420 = vmatprep.mubr.bf16.mxu0 0
        %3421 = vmatmul.mubr.bf16.gmra.mrb[0].mxu0 %v3156
        %v3422 = vpop.f32.mrb[0].mxu0
        %v3423 = vadd.f32 %v3181, %v3422
        %v3424 = vpop.f32.mrb[0].mxu0
        %v3425 = vadd.f32 %v3185, %v3424
        %v3426 = vpop.f32.mrb[0].mxu0
        %v3427 = vadd.f32 %v3181, %v3426
        %v3428 = vpop.f32.mrb[0].mxu0
        %v3429 = vadd.f32 %v3185, %v3428
        %3430 = vmatprep.mubr.bf16.mxu0 0
        %3431 = vmatmul.mubr.bf16.gmra.mrb[0].mxu0 %v3157
        %v3432 = vpop.f32.mrb[0].mxu0
        %v3433 = vadd.f32 %v3181, %v3432
        %v3434 = vpop.f32.mrb[0].mxu0
        %v3435 = vadd.f32 %v3185, %v3434
        %v3436 = vpop.f32.mrb[0].mxu0
        %v3437 = vadd.f32 %v3181, %v3436
        %v3438 = vpop.f32.mrb[0].mxu0
        %v3439 = vadd.f32 %v3185, %v3438
        %3440 = vmatprep.mubr.bf16.mxu0 0
        %3441 = vmatmul.mubr.bf16.gmra.mrb[0].mxu0 %v3158
        %v3442 = vpop.f32.mrb[0].mxu0
        %v3443 = vadd.f32 %v3181, %v3442
        %v3444 = vpop.f32.mrb[0].mxu0
        %v3445 = vadd.f32 %v3185, %v3444
        %v3446 = vpop.f32.mrb[0].mxu0
        %v3447 = vadd.f32 %v3181, %v3446
        %v3448 = vpop.f32.mrb[0].mxu0
        %v3449 = vadd.f32 %v3185, %v3448
        %3450 = vmatprep.mubr.bf16.mxu0 0
        %3451 = vmatmul.mubr.bf16.gmra.mrb[0].mxu0 %v3159
        %v3452 = vpop.f32.mrb[0].mxu0
        %v3453 = vadd.f32 %v3181, %v3452
        %v3454 = vpop.f32.mrb[0].mxu0
        %v3455 = vadd.f32 %v3185, %v3454
        %v3456 = vpop.f32.mrb[0].mxu0
        %v3457 = vadd.f32 %v3181, %v3456
        %v3458 = vpop.f32.mrb[0].mxu0
        %v3459 = vadd.f32 %v3185, %v3458
        %3460 = vdwg.mxu0
        %v3461 = vmax.f32 %v3305, -30.0
        %v3462 = vmax.f32 %v3309, -30.0
        %v3463 = vmax.f32 %v3315, -30.0
        %v3464 = vmax.f32 %v3319, -30.0
        %v3465 = vmax.f32 %v3325, -30.0
        %v3466 = vmax.f32 %v3329, -30.0
        %v3467 = vmax.f32 %v3335, -30.0
        %v3468 = vmax.f32 %v3339, -30.0
        %v3469 = vmax.f32 %v3345, -30.0
        %v3470 = vmax.f32 %v3349, -30.0
        %v3471 = vmax.f32 %v3355, -30.0
        %v3472 = vmax.f32 %v3359, -30.0
        %v3473 = vmax.f32 %v3365, -30.0
        %v3474 = vmax.f32 %v3369, -30.0
        %v3475 = vmax.f32 %v3375, -30.0
        %v3476 = vmax.f32 %v3379, -30.0
        %v3477 = vmax.f32 %v3385, -30.0
        %v3478 = vmax.f32 %v3389, -30.0
        %v3479 = vmax.f32 %v3395, -30.0
        %v3480 = vmax.f32 %v3399, -30.0
        %v3481 = vmax.f32 %v3405, -30.0
        %v3482 = vmax.f32 %v3409, -30.0
        %v3483 = vmax.f32 %v3415, -30.0
        %v3484 = vmax.f32 %v3419, -30.0
        %v3485 = vmax.f32 %v3425, -30.0
        %v3486 = vmax.f32 %v3429, -30.0
        %v3487 = vmax.f32 %v3435, -30.0
        %v3488 = vmax.f32 %v3439, -30.0
        %v3489 = vmax.f32 %v3445, -30.0
        %v3490 = vmax.f32 %v3449, -30.0
        %v3491 = vmax.f32 %v3455, -30.0
        %v3492 = vmax.f32 %v3459, -30.0
        %v3493 = vmin.f32 %v3461, 20.0
        %v3494 = vmin.f32 %v3462, 20.0
        %v3495 = vmin.f32 %v3463, 20.0
        %v3496 = vmin.f32 %v3464, 20.0
        %v3497 = vmin.f32 %v3465, 20.0
        %v3498 = vmin.f32 %v3466, 20.0
        %v3499 = vmin.f32 %v3467, 20.0
        %v3500 = vmin.f32 %v3468, 20.0
        %v3501 = vmin.f32 %v3469, 20.0
        %v3502 = vmin.f32 %v3470, 20.0
        %v3503 = vmin.f32 %v3471, 20.0
        %v3504 = vmin.f32 %v3472, 20.0
        %v3505 = vmin.f32 %v3473, 20.0
        %v3506 = vmin.f32 %v3474, 20.0
        %v3507 = vmin.f32 %v3475, 20.0
        %v3508 = vmin.f32 %v3476, 20.0
        %v3509 = vmin.f32 %v3477, 20.0
        %v3510 = vmin.f32 %v3478, 20.0
        %v3511 = vmin.f32 %v3479, 20.0
        %v3512 = vmin.f32 %v3480, 20.0
        %v3513 = vmin.f32 %v3481, 20.0
        %v3514 = vmin.f32 %v3482, 20.0
        %v3515 = vmin.f32 %v3483, 20.0
        %v3516 = vmin.f32 %v3484, 20.0
        %v3517 = vmin.f32 %v3485, 20.0
        %v3518 = vmin.f32 %v3486, 20.0
        %v3519 = vmin.f32 %v3487, 20.0
        %v3520 = vmin.f32 %v3488, 20.0
        %v3521 = vmin.f32 %v3489, 20.0
        %v3522 = vmin.f32 %v3490, 20.0
        %v3523 = vmin.f32 %v3491, 20.0
        %v3524 = vmin.f32 %v3492, 20.0
        %v3525 = vmul.f32 %v3493, 0.5
        %v3526 = vmul.f32 %v3494, 0.5
        %v3527 = vmul.f32 %v3495, 0.5
        %v3528 = vmul.f32 %v3496, 0.5
        %v3529 = vmul.f32 %v3497, 0.5
        %v3530 = vmul.f32 %v3498, 0.5
        %v3531 = vmul.f32 %v3499, 0.5
        %v3532 = vmul.f32 %v3500, 0.5
        %v3533 = vmul.f32 %v3501, 0.5
        %v3534 = vmul.f32 %v3502, 0.5
        %v3535 = vmul.f32 %v3503, 0.5
        %v3536 = vmul.f32 %v3504, 0.5
        %v3537 = vmul.f32 %v3505, 0.5
        %v3538 = vmul.f32 %v3506, 0.5
        %v3539 = vmul.f32 %v3507, 0.5
        %v3540 = vmul.f32 %v3508, 0.5
        %v3541 = vmul.f32 %v3509, 0.5
        %v3542 = vmul.f32 %v3510, 0.5
        %v3543 = vmul.f32 %v3511, 0.5
        %v3544 = vmul.f32 %v3512, 0.5
        %v3545 = vmul.f32 %v3513, 0.5
        %v3546 = vmul.f32 %v3514, 0.5
        %v3547 = vmul.f32 %v3515, 0.5
        %v3548 = vmul.f32 %v3516, 0.5
        %v3549 = vmul.f32 %v3517, 0.5
        %v3550 = vmul.f32 %v3518, 0.5
        %v3551 = vmul.f32 %v3519, 0.5
        %v3552 = vmul.f32 %v3520, 0.5
        %v3553 = vmul.f32 %v3521, 0.5
        %v3554 = vmul.f32 %v3522, 0.5
        %v3555 = vmul.f32 %v3523, 0.5
        %v3556 = vmul.f32 %v3524, 0.5
        %v3557 = vmul.f32 %v3525, 1.442695
        %v3558 = vpow.pop %v3557
        %v3559 = vmul.f32 %v3526, 1.442695
        %v3560 = vpow.pop %v3559
        %v3561 = vmul.f32 %v3527, 1.442695
        %v3562 = vpow.pop %v3561
        %v3563 = vmul.f32 %v3528, 1.442695
        %v3564 = vpow.pop %v3563
        %v3565 = vmul.f32 %v3529, 1.442695
        %v3566 = vpow.pop %v3565
        %v3567 = vmul.f32 %v3530, 1.442695
        %v3568 = vpow.pop %v3567
        %v3569 = vmul.f32 %v3531, 1.442695
        %v3570 = vpow.pop %v3569
        %v3571 = vmul.f32 %v3532, 1.442695
        %v3572 = vpow.pop %v3571
        %v3573 = vmul.f32 %v3533, 1.442695
        %v3574 = vpow.pop %v3573
        %v3575 = vmul.f32 %v3534, 1.442695
        %v3576 = vpow.pop %v3575
        %v3577 = vmul.f32 %v3535, 1.442695
        %v3578 = vpow.pop %v3577
        %v3579 = vmul.f32 %v3536, 1.442695
        %v3580 = vpow.pop %v3579
        %v3581 = vmul.f32 %v3537, 1.442695
        %v3582 = vpow.pop %v3581
        %v3583 = vmul.f32 %v3538, 1.442695
        %v3584 = vpow.pop %v3583
        %v3585 = vmul.f32 %v3539, 1.442695
        %v3586 = vpow.pop %v3585
        %v3587 = vmul.f32 %v3540, 1.442695
        %v3588 = vpow.pop %v3587
        %v3589 = vmul.f32 %v3541, 1.442695
        %v3590 = vpow.pop %v3589
        %v3591 = vmul.f32 %v3542, 1.442695
        %v3592 = vpow.pop %v3591
        %v3593 = vmul.f32 %v3543, 1.442695
        %v3594 = vpow.pop %v3593
        %v3595 = vmul.f32 %v3544, 1.442695
        %v3596 = vpow.pop %v3595
        %v3597 = vmul.f32 %v3545, 1.442695
        %v3598 = vpow.pop %v3597
        %v3599 = vmul.f32 %v3546, 1.442695
        %v3600 = vpow.pop %v3599
        %v3601 = vmul.f32 %v3547, 1.442695
        %v3602 = vpow.pop %v3601
        %v3603 = vmul.f32 %v3548, 1.442695
        %v3604 = vpow.pop %v3603
        %v3605 = vmul.f32 %v3549, 1.442695
        %v3606 = vpow.pop %v3605
        %v3607 = vmul.f32 %v3550, 1.442695
        %v3608 = vpow.pop %v3607
        %v3609 = vmul.f32 %v3551, 1.442695
        %v3610 = vpow.pop %v3609
        %v3611 = vmul.f32 %v3552, 1.442695
        %v3612 = vpow.pop %v3611
        %v3613 = vmul.f32 %v3553, 1.442695
        %v3614 = vpow.pop %v3613
        %v3615 = vmul.f32 %v3554, 1.442695
        %v3616 = vpow.pop %v3615
        %v3617 = vmul.f32 %v3555, 1.442695
        %v3618 = vpow.pop %v3617
        %v3619 = vmul.f32 %v3556, 1.442695
        %v3620 = vpow.pop %v3619
        %v3621 = vld [vmem:[%s356] sm:$0xff]
        %v3622 = vld [vmem:[%s356 + $0x8] sm:$0xff]
        %v3623 = vld [vmem:[%s356 + $0x10] sm:$0xff]
        %v3624 = vld [vmem:[%s356 + $0x18] sm:$0xff]
        %v3625 = vld [vmem:[%s356 + $0x20] sm:$0xff]
        %v3626 = vld [vmem:[%s356 + $0x28] sm:$0xff]
        %v3627 = vld [vmem:[%s356 + $0x30] sm:$0xff]
        %v3628 = vld [vmem:[%s356 + $0x38] sm:$0xff]
        %v3629 = vld [vmem:[%s356 + $0x40] sm:$0xff]
        %v3630 = vld [vmem:[%s356 + $0x48] sm:$0xff]
        %v3631 = vld [vmem:[%s356 + $0x50] sm:$0xff]
        %v3632 = vld [vmem:[%s356 + $0x58] sm:$0xff]
        %v3633 = vld [vmem:[%s356 + $0x60] sm:$0xff]
        %v3634 = vld [vmem:[%s356 + $0x68] sm:$0xff]
        %v3635 = vld [vmem:[%s356 + $0x70] sm:$0xff]
        %v3636 = vld [vmem:[%s356 + $0x78] sm:$0xff]
        %v3637 = vld [vmem:[%s356 + $0x80] sm:$0xff]
        %v3638 = vld [vmem:[%s356 + $0x88] sm:$0xff]
        %v3639 = vld [vmem:[%s356 + $0x90] sm:$0xff]
        %v3640 = vld [vmem:[%s356 + $0x98] sm:$0xff]
        %v3641 = vld [vmem:[%s356 + $0xa0] sm:$0xff]
        %v3642 = vld [vmem:[%s356 + $0xa8] sm:$0xff]
        %v3643 = vld [vmem:[%s356 + $0xb0] sm:$0xff]
        %v3644 = vld [vmem:[%s356 + $0xb8] sm:$0xff]
        %v3645 = vld [vmem:[%s356 + $0xc0] sm:$0xff]
        %v3646 = vld [vmem:[%s356 + $0xc8] sm:$0xff]
        %v3647 = vld [vmem:[%s356 + $0xd0] sm:$0xff]
        %v3648 = vld [vmem:[%s356 + $0xd8] sm:$0xff]
        %v3649 = vld [vmem:[%s356 + $0xe0] sm:$0xff]
        %v3650 = vld [vmem:[%s356 + $0xe8] sm:$0xff]
        %v3651 = vld [vmem:[%s356 + $0xf0] sm:$0xff]
        %v3652 = vld [vmem:[%s356 + $0xf8] sm:$0xff]
        %v3653 = vmul.f32 %v3558, %v3621
        %v3654 = vmul.f32 %v3560, %v3622
        %v3655 = vmul.f32 %v3562, %v3623
        %v3656 = vmul.f32 %v3564, %v3624
        %v3657 = vmul.f32 %v3566, %v3625
        %v3658 = vmul.f32 %v3568, %v3626
        %v3659 = vmul.f32 %v3570, %v3627
        %v3660 = vmul.f32 %v3572, %v3628
        %v3661 = vmul.f32 %v3574, %v3629
        %v3662 = vmul.f32 %v3576, %v3630
        %v3663 = vmul.f32 %v3578, %v3631
        %v3664 = vmul.f32 %v3580, %v3632
        %v3665 = vmul.f32 %v3582, %v3633
        %v3666 = vmul.f32 %v3584, %v3634
        %v3667 = vmul.f32 %v3586, %v3635
        %v3668 = vmul.f32 %v3588, %v3636
        %v3669 = vmul.f32 %v3590, %v3637
        %v3670 = vmul.f32 %v3592, %v3638
        %v3671 = vmul.f32 %v3594, %v3639
        %v3672 = vmul.f32 %v3596, %v3640
        %v3673 = vmul.f32 %v3598, %v3641
        %v3674 = vmul.f32 %v3600, %v3642
        %v3675 = vmul.f32 %v3602, %v3643
        %v3676 = vmul.f32 %v3604, %v3644
        %v3677 = vmul.f32 %v3606, %v3645
        %v3678 = vmul.f32 %v3608, %v3646
        %v3679 = vmul.f32 %v3610, %v3647
        %v3680 = vmul.f32 %v3612, %v3648
        %v3681 = vmul.f32 %v3614, %v3649
        %v3682 = vmul.f32 %v3616, %v3650
        %v3683 = vmul.f32 %v3618, %v3651
        %v3684 = vmul.f32 %v3620, %v3652
        %v3685 = vadd.f32 %v3303, %v3653
        %v3686 = vadd.f32 %v3307, %v3654
        %v3687 = vadd.f32 %v3313, %v3655
        %v3688 = vadd.f32 %v3317, %v3656
        %v3689 = vadd.f32 %v3323, %v3657
        %v3690 = vadd.f32 %v3327, %v3658
        %v3691 = vadd.f32 %v3333, %v3659
        %v3692 = vadd.f32 %v3337, %v3660
        %v3693 = vadd.f32 %v3343, %v3661
        %v3694 = vadd.f32 %v3347, %v3662
        %v3695 = vadd.f32 %v3353, %v3663
        %v3696 = vadd.f32 %v3357, %v3664
        %v3697 = vadd.f32 %v3363, %v3665
        %v3698 = vadd.f32 %v3367, %v3666
        %v3699 = vadd.f32 %v3373, %v3667
        %v3700 = vadd.f32 %v3377, %v3668
        %v3701 = vadd.f32 %v3383, %v3669
        %v3702 = vadd.f32 %v3387, %v3670
        %v3703 = vadd.f32 %v3393, %v3671
        %v3704 = vadd.f32 %v3397, %v3672
        %v3705 = vadd.f32 %v3403, %v3673
        %v3706 = vadd.f32 %v3407, %v3674
        %v3707 = vadd.f32 %v3413, %v3675
        %v3708 = vadd.f32 %v3417, %v3676
        %v3709 = vadd.f32 %v3423, %v3677
        %v3710 = vadd.f32 %v3427, %v3678
        %v3711 = vadd.f32 %v3433, %v3679
        %v3712 = vadd.f32 %v3437, %v3680
        %v3713 = vadd.f32 %v3443, %v3681
        %v3714 = vadd.f32 %v3447, %v3682
        %v3715 = vadd.f32 %v3453, %v3683
        %v3716 = vadd.f32 %v3457, %v3684
        %3717 = vst [vmem:[%s332] sm:$0xff] %v3303
        %3718 = vst [vmem:[%s332 + $0x8] sm:$0xff] %v3307
        %3719 = vst [vmem:[%s332 + $0x10] sm:$0xff] %v3313
        %3720 = vst [vmem:[%s332 + $0x18] sm:$0xff] %v3317
        %3721 = vst [vmem:[%s332 + $0x20] sm:$0xff] %v3323
        %3722 = vst [vmem:[%s332 + $0x28] sm:$0xff] %v3327
        %3723 = vst [vmem:[%s332 + $0x30] sm:$0xff] %v3333
        %3724 = vst [vmem:[%s332 + $0x38] sm:$0xff] %v3337
        %3725 = vst [vmem:[%s332 + $0x40] sm:$0xff] %v3343
        %3726 = vst [vmem:[%s332 + $0x48] sm:$0xff] %v3347
        %3727 = vst [vmem:[%s332 + $0x50] sm:$0xff] %v3353
        %3728 = vst [vmem:[%s332 + $0x58] sm:$0xff] %v3357
        %3729 = vst [vmem:[%s332 + $0x60] sm:$0xff] %v3363
        %3730 = vst [vmem:[%s332 + $0x68] sm:$0xff] %v3367
        %3731 = vst [vmem:[%s332 + $0x70] sm:$0xff] %v3373
        %3732 = vst [vmem:[%s332 + $0x78] sm:$0xff] %v3377
        %3733 = vst [vmem:[%s332 + $0x80] sm:$0xff] %v3383
        %3734 = vst [vmem:[%s332 + $0x88] sm:$0xff] %v3387
        %3735 = vst [vmem:[%s332 + $0x90] sm:$0xff] %v3393
        %3736 = vst [vmem:[%s332 + $0x98] sm:$0xff] %v3397
        %3737 = vst [vmem:[%s332 + $0xa0] sm:$0xff] %v3403
        %3738 = vst [vmem:[%s332 + $0xa8] sm:$0xff] %v3407
        %3739 = vst [vmem:[%s332 + $0xb0] sm:$0xff] %v3413
        %3740 = vst [vmem:[%s332 + $0xb8] sm:$0xff] %v3417
        %3741 = vst [vmem:[%s332 + $0xc0] sm:$0xff] %v3423
        %3742 = vst [vmem:[%s332 + $0xc8] sm:$0xff] %v3427
        %3743 = vst [vmem:[%s332 + $0xd0] sm:$0xff] %v3433
        %3744 = vst [vmem:[%s332 + $0xd8] sm:$0xff] %v3437
        %3745 = vst [vmem:[%s332 + $0xe0] sm:$0xff] %v3443
        %3746 = vst [vmem:[%s332 + $0xe8] sm:$0xff] %v3447
        %3747 = vst [vmem:[%s332 + $0xf0] sm:$0xff] %v3453
        %3748 = vst [vmem:[%s332 + $0xf8] sm:$0xff] %v3457
        %3749 = vst [vmem:[%s339] sm:$0xff] %v3305
        %3750 = vst [vmem:[%s339 + $0x8] sm:$0xff] %v3309
        %3751 = vst [vmem:[%s339 + $0x10] sm:$0xff] %v3315
        %3752 = vst [vmem:[%s339 + $0x18] sm:$0xff] %v3319
        %3753 = vst [vmem:[%s339 + $0x20] sm:$0xff] %v3325
        %3754 = vst [vmem:[%s339 + $0x28] sm:$0xff] %v3329
        %3755 = vst [vmem:[%s339 + $0x30] sm:$0xff] %v3335
        %3756 = vst [vmem:[%s339 + $0x38] sm:$0xff] %v3339
        %3757 = vst [vmem:[%s339 + $0x40] sm:$0xff] %v3345
        %3758 = vst [vmem:[%s339 + $0x48] sm:$0xff] %v3349
        %3759 = vst [vmem:[%s339 + $0x50] sm:$0xff] %v3355
        %3760 = vst [vmem:[%s339 + $0x58] sm:$0xff] %v3359
        %3761 = vst [vmem:[%s339 + $0x60] sm:$0xff] %v3365
        %3762 = vst [vmem:[%s339 + $0x68] sm:$0xff] %v3369
        %3763 = vst [vmem:[%s339 + $0x70] sm:$0xff] %v3375
        %3764 = vst [vmem:[%s339 + $0x78] sm:$0xff] %v3379
        %3765 = vst [vmem:[%s339 + $0x80] sm:$0xff] %v3385
        %3766 = vst [vmem:[%s339 + $0x88] sm:$0xff] %v3389
        %3767 = vst [vmem:[%s339 + $0x90] sm:$0xff] %v3395
        %3768 = vst [vmem:[%s339 + $0x98] sm:$0xff] %v3399
        %3769 = vst [vmem:[%s339 + $0xa0] sm:$0xff] %v3405
        %3770 = vst [vmem:[%s339 + $0xa8] sm:$0xff] %v3409
        %3771 = vst [vmem:[%s339 + $0xb0] sm:$0xff] %v3415
        %3772 = vst [vmem:[%s339 + $0xb8] sm:$0xff] %v3419
        %3773 = vst [vmem:[%s339 + $0xc0] sm:$0xff] %v3425
        %3774 = vst [vmem:[%s339 + $0xc8] sm:$0xff] %v3429
        %3775 = vst [vmem:[%s339 + $0xd0] sm:$0xff] %v3435
        %3776 = vst [vmem:[%s339 + $0xd8] sm:$0xff] %v3439
        %3777 = vst [vmem:[%s339 + $0xe0] sm:$0xff] %v3445
        %3778 = vst [vmem:[%s339 + $0xe8] sm:$0xff] %v3449
        %3779 = vst [vmem:[%s339 + $0xf0] sm:$0xff] %v3455
        %3780 = vst [vmem:[%s339 + $0xf8] sm:$0xff] %v3459
        %v3781 = vpack.c.bf16 %v3686, %v3685
        %v3782 = vpack.c.bf16 %v3688, %v3687
        %v3783 = vpack.c.bf16 %v3690, %v3689
        %v3784 = vpack.c.bf16 %v3692, %v3691
        %v3785 = vpack.c.bf16 %v3694, %v3693
        %v3786 = vpack.c.bf16 %v3696, %v3695
        %v3787 = vpack.c.bf16 %v3698, %v3697
        %v3788 = vpack.c.bf16 %v3700, %v3699
        %v3789 = vpack.c.bf16 %v3702, %v3701
        %v3790 = vpack.c.bf16 %v3704, %v3703
        %v3791 = vpack.c.bf16 %v3706, %v3705
        %v3792 = vpack.c.bf16 %v3708, %v3707
        %v3793 = vpack.c.bf16 %v3710, %v3709
        %v3794 = vpack.c.bf16 %v3712, %v3711
        %v3795 = vpack.c.bf16 %v3714, %v3713
        %v3796 = vpack.c.bf16 %v3716, %v3715
        %v3813 = vunpack.c.l.b16 %v3781
        %v3814 = vunpack.c.h.b16 %v3781
        %v3815 = vunpack.c.l.b16 %v3782
        %v3816 = vunpack.c.h.b16 %v3782
        %v3817 = vunpack.c.l.b16 %v3783
        %v3818 = vunpack.c.h.b16 %v3783
        %v3819 = vunpack.c.l.b16 %v3784
        %v3820 = vunpack.c.h.b16 %v3784
        %v3821 = vunpack.c.l.b16 %v3785
        %v3822 = vunpack.c.h.b16 %v3785
        %v3823 = vunpack.c.l.b16 %v3786
        %v3824 = vunpack.c.h.b16 %v3786
        %v3825 = vunpack.c.l.b16 %v3787
        %v3826 = vunpack.c.h.b16 %v3787
        %v3827 = vunpack.c.l.b16 %v3788
        %v3828 = vunpack.c.h.b16 %v3788
        %v3829 = vunpack.c.l.b16 %v3789
        %v3830 = vunpack.c.h.b16 %v3789
        %v3831 = vunpack.c.l.b16 %v3790
        %v3832 = vunpack.c.h.b16 %v3790
        %v3833 = vunpack.c.l.b16 %v3791
        %v3834 = vunpack.c.h.b16 %v3791
        %v3835 = vunpack.c.l.b16 %v3792
        %v3836 = vunpack.c.h.b16 %v3792
        %v3837 = vunpack.c.l.b16 %v3793
        %v3838 = vunpack.c.h.b16 %v3793
        %v3839 = vunpack.c.l.b16 %v3794
        %v3840 = vunpack.c.h.b16 %v3794
        %v3841 = vunpack.c.l.b16 %v3795
        %v3842 = vunpack.c.h.b16 %v3795
        %v3843 = vunpack.c.l.b16 %v3796
        %v3844 = vunpack.c.h.b16 %v3796
        %v3845 = vpack.c.b16 %v3813, %v3813
        %v3846 = vpack.c.b16 %v3814, %v3814
        %v3847 = vpack.c.b16 %v3815, %v3815
        %v3848 = vpack.c.b16 %v3816, %v3816
        %v3849 = vpack.c.b16 %v3817, %v3817
        %v3850 = vpack.c.b16 %v3818, %v3818
        %v3851 = vpack.c.b16 %v3819, %v3819
        %v3852 = vpack.c.b16 %v3820, %v3820
        %v3853 = vpack.c.b16 %v3821, %v3821
        %v3854 = vpack.c.b16 %v3822, %v3822
        %v3855 = vpack.c.b16 %v3823, %v3823
        %v3856 = vpack.c.b16 %v3824, %v3824
        %v3857 = vpack.c.b16 %v3825, %v3825
        %v3858 = vpack.c.b16 %v3826, %v3826
        %v3859 = vpack.c.b16 %v3827, %v3827
        %v3860 = vpack.c.b16 %v3828, %v3828
        %v3861 = vpack.c.b16 %v3829, %v3829
        %v3862 = vpack.c.b16 %v3830, %v3830
        %v3863 = vpack.c.b16 %v3831, %v3831
        %v3864 = vpack.c.b16 %v3832, %v3832
        %v3865 = vpack.c.b16 %v3833, %v3833
        %v3866 = vpack.c.b16 %v3834, %v3834
        %v3867 = vpack.c.b16 %v3835, %v3835
        %v3868 = vpack.c.b16 %v3836, %v3836
        %v3869 = vpack.c.b16 %v3837, %v3837
        %v3870 = vpack.c.b16 %v3838, %v3838
        %v3871 = vpack.c.b16 %v3839, %v3839
        %v3872 = vpack.c.b16 %v3840, %v3840
        %v3873 = vpack.c.b16 %v3841, %v3841
        %v3874 = vpack.c.b16 %v3842, %v3842
        %v3875 = vpack.c.b16 %v3843, %v3843
        %v3876 = vpack.c.b16 %v3844, %v3844
        %3909 = vst [vmem:[%s346] sm:$0xf] %v3845
        %3910 = vst [vmem:[%s346 + $0x4] sm:$0xf] %v3846
        %3911 = vst [vmem:[%s346 + $0x8] sm:$0xf] %v3847
        %3912 = vst [vmem:[%s346 + $0xc] sm:$0xf] %v3848
        %3913 = vst [vmem:[%s346 + $0x10] sm:$0xf] %v3849
        %3914 = vst [vmem:[%s346 + $0x14] sm:$0xf] %v3850
        %3915 = vst [vmem:[%s346 + $0x18] sm:$0xf] %v3851
        %3916 = vst [vmem:[%s346 + $0x1c] sm:$0xf] %v3852
        %3917 = vst [vmem:[%s346 + $0x20] sm:$0xf] %v3853
        %3918 = vst [vmem:[%s346 + $0x24] sm:$0xf] %v3854
        %3919 = vst [vmem:[%s346 + $0x28] sm:$0xf] %v3855
        %3920 = vst [vmem:[%s346 + $0x2c] sm:$0xf] %v3856
        %3921 = vst [vmem:[%s346 + $0x30] sm:$0xf] %v3857
        %3922 = vst [vmem:[%s346 + $0x34] sm:$0xf] %v3858
        %3923 = vst [vmem:[%s346 + $0x38] sm:$0xf] %v3859
        %3924 = vst [vmem:[%s346 + $0x3c] sm:$0xf] %v3860
        %3925 = vst [vmem:[%s346 + $0x40] sm:$0xf] %v3861
        %3926 = vst [vmem:[%s346 + $0x44] sm:$0xf] %v3862
        %3927 = vst [vmem:[%s346 + $0x48] sm:$0xf] %v3863
        %3928 = vst [vmem:[%s346 + $0x4c] sm:$0xf] %v3864
        %3929 = vst [vmem:[%s346 + $0x50] sm:$0xf] %v3865
        %3930 = vst [vmem:[%s346 + $0x54] sm:$0xf] %v3866
        %3931 = vst [vmem:[%s346 + $0x58] sm:$0xf] %v3867
        %3932 = vst [vmem:[%s346 + $0x5c] sm:$0xf] %v3868
        %3933 = vst [vmem:[%s346 + $0x60] sm:$0xf] %v3869
        %3934 = vst [vmem:[%s346 + $0x64] sm:$0xf] %v3870
        %3935 = vst [vmem:[%s346 + $0x68] sm:$0xf] %v3871
        %3936 = vst [vmem:[%s346 + $0x6c] sm:$0xf] %v3872
        %3937 = vst [vmem:[%s346 + $0x70] sm:$0xf] %v3873
        %3938 = vst [vmem:[%s346 + $0x74] sm:$0xf] %v3874
        %3939 = vst [vmem:[%s346 + $0x78] sm:$0xf] %v3875
        %3940 = vst [vmem:[%s346 + $0x7c] sm:$0xf] %v3876
        %s3941 = sand.u32 %s171, 1
        %s3942 = scalar_lea.sflag [#allocation4], %s3941
        %s3943 = sand.u32 %s171, 1
        %s3944 = smul.addr %s3943, 256
        %s3945 = scalar_lea.vmem [#allocation5], %s3944
        %s3946 = sand.u32 %s27, 1
        %s3947 = scalar_lea.sflag [#allocation7], %s3946
        %s3948 = sand.u32 %s197, 1
        %s3949 = smul.addr %s3948, 256
        %s3950 = scalar_lea.vmem [#allocation6], %s3949
        %s3951 = sand.u32 %s27, 1
        %s3952 = scalar_lea.sflag [#allocation7], %s3951
        %s3953 = sand.u32 %s223, 1
        %s3954 = smul.addr %s3953, 128
        %s3955 = scalar_lea.vmem [#allocation8], %s3954
        // Predicated region
        $region49: #{tpu_custom_call.1} parent=43 // pred_check
          %p3956 = pneg %p181
        $region50: #{tpu_custom_call.1} parent=43 // pred_check_branch
          %3958 = sbr.rel (%p3956) target = $region52
        $region51: #{tpu_custom_call.1} parent=43 // pred_region
          %s3960 = ssub.s32 4096, 4096
          %3961 = vsyncadd %s3942, %s3960
          %s3962 = smul.addr %s27, 32
          %s3963 = smul.addr %s3962, 128
          %s3964 = scalar_lea.hbm %s6, %s3963
          %s3965 = sshll.u32 %s3945, 4
          %s3966 = int_to_ptr.vmem [resolvable:$true] %s3965
          %3971 = dma.vmem_to_hbm [thread:$0]  %s3966, 4096, %s3964, %s3942, 128, 128, 8
        $region52: #{tpu_custom_call.1} parent=43 // pred_fallthru
          _
        // Predicated region
        $region53: #{tpu_custom_call.1} parent=43 // pred_check
          %p3972 = pneg %p207
        $region54: #{tpu_custom_call.1} parent=43 // pred_check_branch
          %3974 = sbr.rel (%p3972) target = $region56
        $region55: #{tpu_custom_call.1} parent=43 // pred_region
          %s3976 = ssub.s32 4096, 4096
          %3977 = vsyncadd %s3947, %s3976
          %s3978 = smul.addr %s27, 32
          %s3979 = smul.addr %s3978, 128
          %s3980 = scalar_lea.hbm %s7, %s3979
          %s3981 = sshll.u32 %s3950, 4
          %s3982 = int_to_ptr.vmem [resolvable:$true] %s3981
          %3987 = dma.vmem_to_hbm [thread:$0]  %s3982, 4096, %s3980, %s3947, 128, 128, 8
        $region56: #{tpu_custom_call.1} parent=43 // pred_fallthru
          _
        // Predicated region
        $region57: #{tpu_custom_call.1} parent=43 // pred_check
          %p3988 = pneg %p233
        $region58: #{tpu_custom_call.1} parent=43 // pred_check_branch
          %3990 = sbr.rel (%p3988) target = $region60
        $region59: #{tpu_custom_call.1} parent=43 // pred_region
          %s3992 = ssub.s32 2048, 2048
          %3993 = vsyncadd %s3952, %s3992
          %s3994 = smul.addr %s27, 32
          %s3995 = smul.addr %s3994, 64
          %s3996 = scalar_lea.hbm %s8, %s3995
          %s3997 = sshll.u32 %s3955, 4
          %s3998 = int_to_ptr.vmem [resolvable:$true] %s3997
          %4003 = dma.vmem_to_hbm [thread:$0]  %s3998, 2048, %s3996, %s3952, 64, 64, 4
        $region60: #{tpu_custom_call.1} parent=43 // pred_fallthru
          _
      $region44: #{tpu_custom_call.1} parent=5 // pred_fallthru
        _
      %p4004 = scmp.le.s32.totalorder 2, %s22
      // Predicated region
      $region61: #{tpu_custom_call.1} parent=5 // pred_check
        %p4005 = pneg %p4004
      $region62: #{tpu_custom_call.1} parent=5 // pred_check_branch
        %4007 = sbr.rel (%p4005) target = $region64
      $region63: #{tpu_custom_call.1} parent=5 // pred_region
        %s4008 = ssub.s32 %s22, 2
        // Predicated region
        $region65: #{tpu_custom_call.1} parent=63 // pred_check
          %p4009 = pneg %p187
        $region66: #{tpu_custom_call.1} parent=63 // pred_check_branch
          %4011 = sbr.rel (%p4009) target = $region68
        $region67: #{tpu_custom_call.1} parent=63 // pred_region
          %s4012 = sand.u32 %s172, 1
          %s4013 = scalar_lea.sflag [#allocation4], %s4012
          %s4014 = sand.u32 %s172, 1
          %s4015 = smul.addr %s4014, 256
          %s4016 = scalar_lea.vmem [#allocation5], %s4015
          %4017 = dma.done %s4013, 4096
        $region68: #{tpu_custom_call.1} parent=63 // pred_fallthru
          _
        // Predicated region
        $region69: #{tpu_custom_call.1} parent=63 // pred_check
          %p4018 = pneg %p213
        $region70: #{tpu_custom_call.1} parent=63 // pred_check_branch
          %4020 = sbr.rel (%p4018) target = $region72
        $region71: #{tpu_custom_call.1} parent=63 // pred_region
          %s4021 = sand.u32 %s28, 1
          %s4022 = scalar_lea.sflag [#allocation7], %s4021
          %s4023 = sand.u32 %s198, 1
          %s4024 = smul.addr %s4023, 256
          %s4025 = scalar_lea.vmem [#allocation6], %s4024
          %4026 = dma.done %s4022, 4096
        $region72: #{tpu_custom_call.1} parent=63 // pred_fallthru
          _
        // Predicated region
        $region73: #{tpu_custom_call.1} parent=63 // pred_check
          %p4027 = pneg %p239
        $region74: #{tpu_custom_call.1} parent=63 // pred_check_branch
          %4029 = sbr.rel (%p4027) target = $region76
        $region75: #{tpu_custom_call.1} parent=63 // pred_region
          %s4030 = sand.u32 %s28, 1
          %s4031 = scalar_lea.sflag [#allocation7], %s4030
          %s4032 = sand.u32 %s224, 1
          %s4033 = smul.addr %s4032, 128
          %s4034 = scalar_lea.vmem [#allocation8], %s4033
          %4035 = dma.done %s4031, 2048
        $region76: #{tpu_custom_call.1} parent=63 // pred_fallthru
          _
      $region64: #{tpu_custom_call.1} parent=5 // pred_fallthru
        _
    $region6: #{tpu_custom_call.1} parent=1 // loop_footer
      %s26 = sadd.s32 1, %s22
    $region7: #{tpu_custom_call.1} parent=1 // loop_footer_branch
      %21 = sbr.rel target = $region3
    $region8: #{tpu_custom_call.1} parent=1 // loop_exit
      _
    %4036 = vsyncpa [#allocation3], 1
    %s4037 = scalar_lea.sflag [#allocation3], 1
    %4038 = vsyncpa %s4037, 1
    %4039 = vsyncpa [#allocation4], 1
    %s4040 = scalar_lea.sflag [#allocation4], 1
    %4041 = vsyncpa %s4040, 1
    %4042 = vsyncpa [#allocation7], 1
    %s4043 = scalar_lea.sflag [#allocation7], 1
    %4044 = vsyncpa %s4043, 1

</llo_original>
